<compile_context>
chip_gen: v6e
topology: v6e:2x2x1
jax: 0.10.0
libtpu: 0.0.40
codegen_flags: <defaults>
</compile_context>

<pallas_src>
import functools

import jax
import jax.numpy as jnp
from jax.experimental import pallas as pl


# ----------------------------------------------------------------------------
# In-kernel helpers
# ----------------------------------------------------------------------------
def _lstm_cell(gates, c_prev, H):
  """One LSTM cell update.  PyTorch gate order i, f, g, o.  gates: (B, 4H) f32."""
  i = jax.nn.sigmoid(gates[:, 0 * H:1 * H])
  f = jax.nn.sigmoid(gates[:, 1 * H:2 * H])
  g = jnp.tanh(gates[:, 2 * H:3 * H])
  o = jax.nn.sigmoid(gates[:, 3 * H:4 * H])
  c = f * c_prev + i * g
  h = o * jnp.tanh(c)
  return h, c


def _bilstm_core(x2d, wih_f, whh_f, b_f, wih_r, whh_r, b_r, *, T, B, H):
  """Both directions of one LSTM layer, fully VMEM/vreg resident.

  x2d: (T*B, Din) time-major-flattened input (row block t*B:(t+1)*B is time t).
  Returns (hs_f, hs_r): python lists of T (B, H) hidden states. hs_f[t] is the
  forward hidden after x[0..t]; hs_r[k] is the reverse hidden after x[T-1..T-1-k].
  """
  # Non-recurrent input projection hoisted out of the time loop: one MXU call
  # per direction with T*B rows instead of T tiny (B, Din) matmuls.  Bias is
  # broadcast once here, not per step.
  gx_f = jnp.dot(x2d, wih_f, preferred_element_type=jnp.float32) + b_f
  gx_r = jnp.dot(x2d, wih_r, preferred_element_type=jnp.float32) + b_r

  z = jnp.zeros((B, H), jnp.float32)
  h_f, c_f, h_r, c_r = z, z, z, z
  hs_f, hs_r = [], []
  # T is small & static -> full unroll; the LLO scheduler overlaps the two
  # directions' per-step MXU pushes and the EUP (sigmoid/tanh) work.
  # TODO(synk): for large T switch to lax.fori_loop with gx staged in VMEM scratch.
  for t in range(T):
    tr = T - 1 - t
    h_f, c_f = _lstm_cell(
        gx_f[t * B:(t + 1) * B, :]
        + jnp.dot(h_f, whh_f, preferred_element_type=jnp.float32), c_f, H)
    h_r, c_r = _lstm_cell(
        gx_r[tr * B:(tr + 1) * B, :]
        + jnp.dot(h_r, whh_r, preferred_element_type=jnp.float32), c_r, H)
    hs_f.append(h_f)
    hs_r.append(h_r)
  return hs_f, hs_r


# ----------------------------------------------------------------------------
# Pallas kernels (single grid step each; whole layer fused)
# ----------------------------------------------------------------------------
def _bilstm_layer_kernel(x_ref, wih_f_ref, whh_f_ref, b_f_ref,
                         wih_r_ref, whh_r_ref, b_r_ref, y_ref, *, T, B, H):
  hs_f, hs_r = _bilstm_core(
      x_ref[...], wih_f_ref[...], whh_f_ref[...], b_f_ref[...],
      wih_r_ref[...], whh_r_ref[...], b_r_ref[...], T=T, B=B, H=H)
  # Reverse-direction output at time t is hs_r[T-1-t] (PyTorch convention).
  # Single full-tensor store of the fused (fwd, rev) output.
  y_ref[...] = jnp.concatenate(
      [jnp.stack(hs_f), jnp.stack(hs_r[::-1])], axis=-1)        # (T, B, 2H)


def _bilstm_decoder_kernel(x_ref, wih_f_ref, whh_f_ref, b_f_ref,
                           wih_r_ref, whh_r_ref, b_r_ref,
                           dec_w_ref, dec_b_ref, logits_ref, *, T, B, H):
  hs_f, hs_r = _bilstm_core(
      x_ref[...], wih_f_ref[...], whh_f_ref[...], b_f_ref[...],
      wih_r_ref[...], whh_r_ref[...], b_r_ref[...], T=T, B=B, H=H)
  # status[0]  = [fwd h after x[0],      rev h after x[T-1..0] (final rev state)]
  # status[-1] = [fwd h after x[0..T-1], rev h after x[T-1]    (first rev step)]
  # encoding = concat([status[0], status[-1]], dim=1)  -> (B, 4H)
  encoding = jnp.concatenate([hs_f[0], hs_r[-1], hs_f[-1], hs_r[0]], axis=1)
  logits_ref[...] = (
      jnp.dot(encoding, dec_w_ref[...], preferred_element_type=jnp.float32)
      + dec_b_ref[...])


# ----------------------------------------------------------------------------
# Wrappers around pallas_call
# ----------------------------------------------------------------------------
def bilstm_layer(x2d, p, *, T, B, H):
  """One bidirectional LSTM layer.  x2d: (T*B, Din) -> (T, B, 2H)."""
  kernel = functools.partial(_bilstm_layer_kernel, T=T, B=B, H=H)
  return pl.pallas_call(
      kernel,
      out_shape=jax.ShapeDtypeStruct((T, B, 2 * H), jnp.float32),
  )(x2d, p["w_ih_f"], p["w_hh_f"], p["b_f"],
    p["w_ih_r"], p["w_hh_r"], p["b_r"])


def bilstm_decoder_layer(x2d, p, dec_w, dec_b, *, T, B, H):
  """Last bidirectional LSTM layer with the decoder Linear fused in the tail."""
  labels = dec_w.shape[1]
  kernel = functools.partial(_bilstm_decoder_kernel, T=T, B=B, H=H)
  return pl.pallas_call(
      kernel,
      out_shape=jax.ShapeDtypeStruct((B, labels), jnp.float32),
  )(x2d, p["w_ih_f"], p["w_hh_f"], p["b_f"],
    p["w_ih_r"], p["w_hh_r"], p["b_r"], dec_w, dec_b.reshape(1, labels))


# ----------------------------------------------------------------------------
# SentimentNet forward
# ----------------------------------------------------------------------------
def sentiment_net_forward(token_ids, params):
  lstm = params["lstm"]
  H = lstm[0]["w_hh_f"].shape[0]            # static (from shape) -> jit-safe
  B, T = token_ids.shape

  # Embedding gather (frozen table) in plain JAX glue; gathering with
  # token_ids.T yields time-major (T, B, E) directly — no transpose pass over
  # the embedded activations.
  x = jnp.take(params["embedding"], token_ids.T, axis=0)      # (T, B, E)
  x2d = x.reshape(T * B, -1)                # row-major leading-dim merge: free

  # 2-layer bidirectional LSTM (dropout=0): all but the last layer...
  for p in lstm[:-1]:
    y = bilstm_layer(x2d, p, T=T, B=B, H=H)                   # (T, B, 2H)
    x2d = y.reshape(T * B, 2 * H)

  # ...last layer has the Linear decoder fused into its kernel tail.
  return bilstm_decoder_layer(x2d, lstm[-1], params["dec_w"], params["dec_b"],
                              T=T, B=B, H=H)                  # (B, labels)


# ----------------------------------------------------------------------------
# Pure-JAX reference (correctness check only)
# ----------------------------------------------------------------------------
def _lstm_dir_ref(x, w_ih, w_hh, b, H, reverse):
  T, B, _ = x.shape
  xs = x[::-1] if reverse else x

  def step(carry, xt):
    h, c = carry
    gates = (jnp.dot(xt, w_ih, precision=jax.lax.Precision.HIGHEST)
             + jnp.dot(h, w_hh, precision=jax.lax.Precision.HIGHEST) + b)
    i = jax.nn.sigmoid(gates[:, 0 * H:1 * H])
    f = jax.nn.sigmoid(gates[:, 1 * H:2 * H])
    g = jnp.tanh(gates[:, 2 * H:3 * H])
    o = jax.nn.sigmoid(gates[:, 3 * H:4 * H])
    c = f * c + i * g
    h = o * jnp.tanh(c)
    return (h, c), h

  init = (jnp.zeros((B, H), jnp.float32), jnp.zeros((B, H), jnp.float32))
  _, hs = jax.lax.scan(step, init, xs)
  return hs[::-1] if reverse else hs


def sentiment_net_ref(token_ids, params):
  H = params["lstm"][0]["w_hh_f"].shape[0]
  emb = params["embedding"][token_ids]
  x = jnp.transpose(emb, (1, 0, 2))
  for p in params["lstm"]:
    fwd = _lstm_dir_ref(x, p["w_ih_f"], p["w_hh_f"], p["b_f"], H, False)
    rev = _lstm_dir_ref(x, p["w_ih_r"], p["w_hh_r"], p["b_r"], H, True)
    x = jnp.concatenate([fwd, rev], axis=-1)
  encoding = jnp.concatenate([x[0], x[-1]], axis=1)
  return (jnp.dot(encoding, params["dec_w"],
                  precision=jax.lax.Precision.HIGHEST)
          + params["dec_b"][None, :])


# ----------------------------------------------------------------------------
# Deterministic parameter construction (arrays only -> clean jit pytree)
# ----------------------------------------------------------------------------
def make_params(key, vocab_size, embed_size, num_hiddens, num_layers, labels):
  k = 1.0 / jnp.sqrt(num_hiddens)
  keys = iter(jax.random.split(key, 64))

  def uni(shape):
    return jax.random.uniform(next(keys), shape, jnp.float32, -k, k)

  # NOTE: the original script's pretrained embedding `weight` is torch.zeros;
  # here we use a small random table so the synthetic forward is non-degenerate.
  embedding = 0.1 * jax.random.normal(next(keys),
                                      (vocab_size + 1, embed_size), jnp.float32)

  lstm = []
  for layer in range(num_layers):
    din = embed_size if layer == 0 else 2 * num_hiddens
    layer_p = {}
    for tag in ("f", "r"):
      w_ih = uni((4 * num_hiddens, din))        # PyTorch shape (4H, Din)
      w_hh = uni((4 * num_hiddens, num_hiddens))
      b_ih = uni((4 * num_hiddens,))
      b_hh = uni((4 * num_hiddens,))
      layer_p[f"w_ih_{tag}"] = w_ih.T            # (Din, 4H) for x @ W
      layer_p[f"w_hh_{tag}"] = w_hh.T            # (H, 4H)
      layer_p[f"b_{tag}"] = (b_ih + b_hh).reshape(1, 4 * num_hiddens)
    lstm.append(layer_p)

  dec_w = uni((labels, 4 * num_hiddens)).T       # (4H, labels)
  dec_b = uni((labels,))

  return {"embedding": embedding, "lstm": lstm, "dec_w": dec_w, "dec_b": dec_b}


# ----------------------------------------------------------------------------
if __name__ == "__main__":
  # Small shapes consistent with the module.
  B, T = 2, 8
  VOCAB, EMBED, HIDDEN, LAYERS, LABELS = 50, 32, 32, 2, 2

  root = jax.random.PRNGKey(0)
  k_tok, k_par = jax.random.split(root)
  token_ids = jax.random.randint(k_tok, (B, T), 0, VOCAB + 1, dtype=jnp.int32)
  params = make_params(k_par, VOCAB, EMBED, HIDDEN, LAYERS, LABELS)

  logits = jax.jit(sentiment_net_forward)(token_ids, params)
  logits = jax.block_until_ready(logits)

  ref = jax.block_until_ready(sentiment_net_ref(token_ids, params))

  assert logits.shape == (B, LABELS), logits.shape
  assert bool(jnp.all(jnp.isfinite(logits)))
  assert bool(jnp.allclose(logits, ref, atol=2e-2, rtol=2e-2)), (logits, ref)

  print("KERNEL_OK")
</pallas_src>

<mosaic_0001>
module attributes {stable_mosaic.version = 11 : i64} {
  func.func @_bilstm_layer_kernel(%arg0: memref<16x32xf32, #tpu.memory_space<vmem>>, %arg1: memref<32x128xf32, #tpu.memory_space<vmem>>, %arg2: memref<32x128xf32, #tpu.memory_space<vmem>>, %arg3: memref<1x128xf32, #tpu.memory_space<vmem>>, %arg4: memref<32x128xf32, #tpu.memory_space<vmem>>, %arg5: memref<32x128xf32, #tpu.memory_space<vmem>>, %arg6: memref<1x128xf32, #tpu.memory_space<vmem>>, %arg7: memref<8x2x64xf32, #tpu.memory_space<vmem>>) attributes {dimension_semantics = [], scalar_prefetch = 0 : i64, scratch_operands = 0 : i64, tpu.core_type = #tpu.core_type<tc>} {
    %c0 = arith.constant 0 : index
    %c0_0 = arith.constant 0 : index
    %0 = vector.load %arg0[%c0, %c0_0] : memref<16x32xf32, #tpu.memory_space<vmem>>, vector<16x32xf32>
    %c0_1 = arith.constant 0 : index
    %c0_2 = arith.constant 0 : index
    %1 = vector.load %arg1[%c0_1, %c0_2] : memref<32x128xf32, #tpu.memory_space<vmem>>, vector<32x128xf32>
    %c0_3 = arith.constant 0 : index
    %c0_4 = arith.constant 0 : index
    %2 = vector.load %arg2[%c0_3, %c0_4] : memref<32x128xf32, #tpu.memory_space<vmem>>, vector<32x128xf32>
    %c0_5 = arith.constant 0 : index
    %c0_6 = arith.constant 0 : index
    %3 = vector.load %arg3[%c0_5, %c0_6] : memref<1x128xf32, #tpu.memory_space<vmem>>, vector<1x128xf32>
    %c0_7 = arith.constant 0 : index
    %c0_8 = arith.constant 0 : index
    %4 = vector.load %arg4[%c0_7, %c0_8] : memref<32x128xf32, #tpu.memory_space<vmem>>, vector<32x128xf32>
    %c0_9 = arith.constant 0 : index
    %c0_10 = arith.constant 0 : index
    %5 = vector.load %arg5[%c0_9, %c0_10] : memref<32x128xf32, #tpu.memory_space<vmem>>, vector<32x128xf32>
    %c0_11 = arith.constant 0 : index
    %c0_12 = arith.constant 0 : index
    %6 = vector.load %arg6[%c0_11, %c0_12] : memref<1x128xf32, #tpu.memory_space<vmem>>, vector<1x128xf32>
    %cst = arith.constant dense<0.000000e+00> : vector<16x128xf32>
    %7 = tpu.matmul %0, %1, %cst {dimension_numbers = #tpu.dot_dimension_numbers<[1], [0], [0], [1], [0, 0, 1, 1], [], []>} : vector<16x32xf32>, vector<32x128xf32>, vector<16x128xf32> -> vector<16x128xf32>
    %8 = vector.broadcast %3 : vector<1x128xf32> to vector<16x128xf32>
    %9 = arith.addf %7, %8 : vector<16x128xf32>
    %cst_13 = arith.constant dense<0.000000e+00> : vector<16x128xf32>
    %10 = tpu.matmul %0, %4, %cst_13 {dimension_numbers = #tpu.dot_dimension_numbers<[1], [0], [0], [1], [0, 0, 1, 1], [], []>} : vector<16x32xf32>, vector<32x128xf32>, vector<16x128xf32> -> vector<16x128xf32>
    %11 = vector.broadcast %6 : vector<1x128xf32> to vector<16x128xf32>
    %12 = arith.addf %10, %11 : vector<16x128xf32>
    %cst_14 = arith.constant 0.000000e+00 : f32
    %13 = vector.broadcast %cst_14 : f32 to vector<2x32xf32>
    %14 = vector.extract_strided_slice %9 {offsets = [0, 0], sizes = [2, 128], strides = [1, 1]} : vector<16x128xf32> to vector<2x128xf32>
    %cst_15 = arith.constant dense<0.000000e+00> : vector<2x128xf32>
    %15 = tpu.matmul %13, %2, %cst_15 {dimension_numbers = #tpu.dot_dimension_numbers<[1], [0], [0], [1], [0, 0, 1, 1], [], []>} : vector<2x32xf32>, vector<32x128xf32>, vector<2x128xf32> -> vector<2x128xf32>
    %16 = arith.addf %14, %15 : vector<2x128xf32>
    %17 = vector.extract_strided_slice %16 {offsets = [0, 0], sizes = [2, 32], strides = [1, 1]} : vector<2x128xf32> to vector<2x32xf32>
    %18 = arith.negf %17 : vector<2x32xf32>
    %19 = math.exp %18 : vector<2x32xf32>
    %cst_16 = arith.constant 1.000000e+00 : f32
    %20 = vector.broadcast %cst_16 : f32 to vector<2x32xf32>
    %21 = arith.addf %20, %19 : vector<2x32xf32>
    %22 = arith.divf %20, %21 : vector<2x32xf32>
    %23 = vector.extract_strided_slice %16 {offsets = [0, 32], sizes = [2, 32], strides = [1, 1]} : vector<2x128xf32> to vector<2x32xf32>
    %24 = arith.negf %23 : vector<2x32xf32>
    %25 = math.exp %24 : vector<2x32xf32>
    %cst_17 = arith.constant 1.000000e+00 : f32
    %26 = vector.broadcast %cst_17 : f32 to vector<2x32xf32>
    %27 = arith.addf %26, %25 : vector<2x32xf32>
    %28 = arith.divf %26, %27 : vector<2x32xf32>
    %29 = vector.extract_strided_slice %16 {offsets = [0, 64], sizes = [2, 32], strides = [1, 1]} : vector<2x128xf32> to vector<2x32xf32>
    %30 = math.tanh %29 : vector<2x32xf32>
    %31 = vector.extract_strided_slice %16 {offsets = [0, 96], sizes = [2, 32], strides = [1, 1]} : vector<2x128xf32> to vector<2x32xf32>
    %32 = arith.negf %31 : vector<2x32xf32>
    %33 = math.exp %32 : vector<2x32xf32>
    %cst_18 = arith.constant 1.000000e+00 : f32
    %34 = vector.broadcast %cst_18 : f32 to vector<2x32xf32>
    %35 = arith.addf %34, %33 : vector<2x32xf32>
    %36 = arith.divf %34, %35 : vector<2x32xf32>
    %37 = arith.mulf %28, %13 : vector<2x32xf32>
    %38 = arith.mulf %22, %30 : vector<2x32xf32>
    %39 = arith.addf %37, %38 : vector<2x32xf32>
    %40 = math.tanh %39 : vector<2x32xf32>
    %41 = arith.mulf %36, %40 : vector<2x32xf32>
    %42 = vector.extract_strided_slice %12 {offsets = [14, 0], sizes = [2, 128], strides = [1, 1]} : vector<16x128xf32> to vector<2x128xf32>
    %cst_19 = arith.constant dense<0.000000e+00> : vector<2x128xf32>
    %43 = tpu.matmul %13, %5, %cst_19 {dimension_numbers = #tpu.dot_dimension_numbers<[1], [0], [0], [1], [0, 0, 1, 1], [], []>} : vector<2x32xf32>, vector<32x128xf32>, vector<2x128xf32> -> vector<2x128xf32>
    %44 = arith.addf %42, %43 : vector<2x128xf32>
    %45 = vector.extract_strided_slice %44 {offsets = [0, 0], sizes = [2, 32], strides = [1, 1]} : vector<2x128xf32> to vector<2x32xf32>
    %46 = arith.negf %45 : vector<2x32xf32>
    %47 = math.exp %46 : vector<2x32xf32>
    %cst_20 = arith.constant 1.000000e+00 : f32
    %48 = vector.broadcast %cst_20 : f32 to vector<2x32xf32>
    %49 = arith.addf %48, %47 : vector<2x32xf32>
    %50 = arith.divf %48, %49 : vector<2x32xf32>
    %51 = vector.extract_strided_slice %44 {offsets = [0, 32], sizes = [2, 32], strides = [1, 1]} : vector<2x128xf32> to vector<2x32xf32>
    %52 = arith.negf %51 : vector<2x32xf32>
    %53 = math.exp %52 : vector<2x32xf32>
    %cst_21 = arith.constant 1.000000e+00 : f32
    %54 = vector.broadcast %cst_21 : f32 to vector<2x32xf32>
    %55 = arith.addf %54, %53 : vector<2x32xf32>
    %56 = arith.divf %54, %55 : vector<2x32xf32>
    %57 = vector.extract_strided_slice %44 {offsets = [0, 64], sizes = [2, 32], strides = [1, 1]} : vector<2x128xf32> to vector<2x32xf32>
    %58 = math.tanh %57 : vector<2x32xf32>
    %59 = vector.extract_strided_slice %44 {offsets = [0, 96], sizes = [2, 32], strides = [1, 1]} : vector<2x128xf32> to vector<2x32xf32>
    %60 = arith.negf %59 : vector<2x32xf32>
    %61 = math.exp %60 : vector<2x32xf32>
    %cst_22 = arith.constant 1.000000e+00 : f32
    %62 = vector.broadcast %cst_22 : f32 to vector<2x32xf32>
    %63 = arith.addf %62, %61 : vector<2x32xf32>
    %64 = arith.divf %62, %63 : vector<2x32xf32>
    %65 = arith.mulf %56, %13 : vector<2x32xf32>
    %66 = arith.mulf %50, %58 : vector<2x32xf32>
    %67 = arith.addf %65, %66 : vector<2x32xf32>
    %68 = math.tanh %67 : vector<2x32xf32>
    %69 = arith.mulf %64, %68 : vector<2x32xf32>
    %70 = vector.extract_strided_slice %9 {offsets = [2, 0], sizes = [2, 128], strides = [1, 1]} : vector<16x128xf32> to vector<2x128xf32>
    %cst_23 = arith.constant dense<0.000000e+00> : vector<2x128xf32>
    %71 = tpu.matmul %41, %2, %cst_23 {dimension_numbers = #tpu.dot_dimension_numbers<[1], [0], [0], [1], [0, 0, 1, 1], [], []>} : vector<2x32xf32>, vector<32x128xf32>, vector<2x128xf32> -> vector<2x128xf32>
    %72 = arith.addf %70, %71 : vector<2x128xf32>
    %73 = vector.extract_strided_slice %72 {offsets = [0, 0], sizes = [2, 32], strides = [1, 1]} : vector<2x128xf32> to vector<2x32xf32>
    %74 = arith.negf %73 : vector<2x32xf32>
    %75 = math.exp %74 : vector<2x32xf32>
    %cst_24 = arith.constant 1.000000e+00 : f32
    %76 = vector.broadcast %cst_24 : f32 to vector<2x32xf32>
    %77 = arith.addf %76, %75 : vector<2x32xf32>
    %78 = arith.divf %76, %77 : vector<2x32xf32>
    %79 = vector.extract_strided_slice %72 {offsets = [0, 32], sizes = [2, 32], strides = [1, 1]} : vector<2x128xf32> to vector<2x32xf32>
    %80 = arith.negf %79 : vector<2x32xf32>
    %81 = math.exp %80 : vector<2x32xf32>
    %cst_25 = arith.constant 1.000000e+00 : f32
    %82 = vector.broadcast %cst_25 : f32 to vector<2x32xf32>
    %83 = arith.addf %82, %81 : vector<2x32xf32>
    %84 = arith.divf %82, %83 : vector<2x32xf32>
    %85 = vector.extract_strided_slice %72 {offsets = [0, 64], sizes = [2, 32], strides = [1, 1]} : vector<2x128xf32> to vector<2x32xf32>
    %86 = math.tanh %85 : vector<2x32xf32>
    %87 = vector.extract_strided_slice %72 {offsets = [0, 96], sizes = [2, 32], strides = [1, 1]} : vector<2x128xf32> to vector<2x32xf32>
    %88 = arith.negf %87 : vector<2x32xf32>
    %89 = math.exp %88 : vector<2x32xf32>
    %cst_26 = arith.constant 1.000000e+00 : f32
    %90 = vector.broadcast %cst_26 : f32 to vector<2x32xf32>
    %91 = arith.addf %90, %89 : vector<2x32xf32>
    %92 = arith.divf %90, %91 : vector<2x32xf32>
    %93 = arith.mulf %84, %39 : vector<2x32xf32>
    %94 = arith.mulf %78, %86 : vector<2x32xf32>
    %95 = arith.addf %93, %94 : vector<2x32xf32>
    %96 = math.tanh %95 : vector<2x32xf32>
    %97 = arith.mulf %92, %96 : vector<2x32xf32>
    %98 = vector.extract_strided_slice %12 {offsets = [12, 0], sizes = [2, 128], strides = [1, 1]} : vector<16x128xf32> to vector<2x128xf32>
    %cst_27 = arith.constant dense<0.000000e+00> : vector<2x128xf32>
    %99 = tpu.matmul %69, %5, %cst_27 {dimension_numbers = #tpu.dot_dimension_numbers<[1], [0], [0], [1], [0, 0, 1, 1], [], []>} : vector<2x32xf32>, vector<32x128xf32>, vector<2x128xf32> -> vector<2x128xf32>
    %100 = arith.addf %98, %99 : vector<2x128xf32>
    %101 = vector.extract_strided_slice %100 {offsets = [0, 0], sizes = [2, 32], strides = [1, 1]} : vector<2x128xf32> to vector<2x32xf32>
    %102 = arith.negf %101 : vector<2x32xf32>
    %103 = math.exp %102 : vector<2x32xf32>
    %cst_28 = arith.constant 1.000000e+00 : f32
    %104 = vector.broadcast %cst_28 : f32 to vector<2x32xf32>
    %105 = arith.addf %104, %103 : vector<2x32xf32>
    %106 = arith.divf %104, %105 : vector<2x32xf32>
    %107 = vector.extract_strided_slice %100 {offsets = [0, 32], sizes = [2, 32], strides = [1, 1]} : vector<2x128xf32> to vector<2x32xf32>
    %108 = arith.negf %107 : vector<2x32xf32>
    %109 = math.exp %108 : vector<2x32xf32>
    %cst_29 = arith.constant 1.000000e+00 : f32
    %110 = vector.broadcast %cst_29 : f32 to vector<2x32xf32>
    %111 = arith.addf %110, %109 : vector<2x32xf32>
    %112 = arith.divf %110, %111 : vector<2x32xf32>
    %113 = vector.extract_strided_slice %100 {offsets = [0, 64], sizes = [2, 32], strides = [1, 1]} : vector<2x128xf32> to vector<2x32xf32>
    %114 = math.tanh %113 : vector<2x32xf32>
    %115 = vector.extract_strided_slice %100 {offsets = [0, 96], sizes = [2, 32], strides = [1, 1]} : vector<2x128xf32> to vector<2x32xf32>
    %116 = arith.negf %115 : vector<2x32xf32>
    %117 = math.exp %116 : vector<2x32xf32>
    %cst_30 = arith.constant 1.000000e+00 : f32
    %118 = vector.broadcast %cst_30 : f32 to vector<2x32xf32>
    %119 = arith.addf %118, %117 : vector<2x32xf32>
    %120 = arith.divf %118, %119 : vector<2x32xf32>
    %121 = arith.mulf %112, %67 : vector<2x32xf32>
    %122 = arith.mulf %106, %114 : vector<2x32xf32>
    %123 = arith.addf %121, %122 : vector<2x32xf32>
    %124 = math.tanh %123 : vector<2x32xf32>
    %125 = arith.mulf %120, %124 : vector<2x32xf32>
    %126 = vector.extract_strided_slice %9 {offsets = [4, 0], sizes = [2, 128], strides = [1, 1]} : vector<16x128xf32> to vector<2x128xf32>
    %cst_31 = arith.constant dense<0.000000e+00> : vector<2x128xf32>
    %127 = tpu.matmul %97, %2, %cst_31 {dimension_numbers = #tpu.dot_dimension_numbers<[1], [0], [0], [1], [0, 0, 1, 1], [], []>} : vector<2x32xf32>, vector<32x128xf32>, vector<2x128xf32> -> vector<2x128xf32>
    %128 = arith.addf %126, %127 : vector<2x128xf32>
    %129 = vector.extract_strided_slice %128 {offsets = [0, 0], sizes = [2, 32], strides = [1, 1]} : vector<2x128xf32> to vector<2x32xf32>
    %130 = arith.negf %129 : vector<2x32xf32>
    %131 = math.exp %130 : vector<2x32xf32>
    %cst_32 = arith.constant 1.000000e+00 : f32
    %132 = vector.broadcast %cst_32 : f32 to vector<2x32xf32>
    %133 = arith.addf %132, %131 : vector<2x32xf32>
    %134 = arith.divf %132, %133 : vector<2x32xf32>
    %135 = vector.extract_strided_slice %128 {offsets = [0, 32], sizes = [2, 32], strides = [1, 1]} : vector<2x128xf32> to vector<2x32xf32>
    %136 = arith.negf %135 : vector<2x32xf32>
    %137 = math.exp %136 : vector<2x32xf32>
    %cst_33 = arith.constant 1.000000e+00 : f32
    %138 = vector.broadcast %cst_33 : f32 to vector<2x32xf32>
    %139 = arith.addf %138, %137 : vector<2x32xf32>
    %140 = arith.divf %138, %139 : vector<2x32xf32>
    %141 = vector.extract_strided_slice %128 {offsets = [0, 64], sizes = [2, 32], strides = [1, 1]} : vector<2x128xf32> to vector<2x32xf32>
    %142 = math.tanh %141 : vector<2x32xf32>
    %143 = vector.extract_strided_slice %128 {offsets = [0, 96], sizes = [2, 32], strides = [1, 1]} : vector<2x128xf32> to vector<2x32xf32>
    %144 = arith.negf %143 : vector<2x32xf32>
    %145 = math.exp %144 : vector<2x32xf32>
    %cst_34 = arith.constant 1.000000e+00 : f32
    %146 = vector.broadcast %cst_34 : f32 to vector<2x32xf32>
    %147 = arith.addf %146, %145 : vector<2x32xf32>
    %148 = arith.divf %146, %147 : vector<2x32xf32>
    %149 = arith.mulf %140, %95 : vector<2x32xf32>
    %150 = arith.mulf %134, %142 : vector<2x32xf32>
    %151 = arith.addf %149, %150 : vector<2x32xf32>
    %152 = math.tanh %151 : vector<2x32xf32>
    %153 = arith.mulf %148, %152 : vector<2x32xf32>
    %154 = vector.extract_strided_slice %12 {offsets = [10, 0], sizes = [2, 128], strides = [1, 1]} : vector<16x128xf32> to vector<2x128xf32>
    %cst_35 = arith.constant dense<0.000000e+00> : vector<2x128xf32>
    %155 = tpu.matmul %125, %5, %cst_35 {dimension_numbers = #tpu.dot_dimension_numbers<[1], [0], [0], [1], [0, 0, 1, 1], [], []>} : vector<2x32xf32>, vector<32x128xf32>, vector<2x128xf32> -> vector<2x128xf32>
    %156 = arith.addf %154, %155 : vector<2x128xf32>
    %157 = vector.extract_strided_slice %156 {offsets = [0, 0], sizes = [2, 32], strides = [1, 1]} : vector<2x128xf32> to vector<2x32xf32>
    %158 = arith.negf %157 : vector<2x32xf32>
    %159 = math.exp %158 : vector<2x32xf32>
    %cst_36 = arith.constant 1.000000e+00 : f32
    %160 = vector.broadcast %cst_36 : f32 to vector<2x32xf32>
    %161 = arith.addf %160, %159 : vector<2x32xf32>
    %162 = arith.divf %160, %161 : vector<2x32xf32>
    %163 = vector.extract_strided_slice %156 {offsets = [0, 32], sizes = [2, 32], strides = [1, 1]} : vector<2x128xf32> to vector<2x32xf32>
    %164 = arith.negf %163 : vector<2x32xf32>
    %165 = math.exp %164 : vector<2x32xf32>
    %cst_37 = arith.constant 1.000000e+00 : f32
    %166 = vector.broadcast %cst_37 : f32 to vector<2x32xf32>
    %167 = arith.addf %166, %165 : vector<2x32xf32>
    %168 = arith.divf %166, %167 : vector<2x32xf32>
    %169 = vector.extract_strided_slice %156 {offsets = [0, 64], sizes = [2, 32], strides = [1, 1]} : vector<2x128xf32> to vector<2x32xf32>
    %170 = math.tanh %169 : vector<2x32xf32>
    %171 = vector.extract_strided_slice %156 {offsets = [0, 96], sizes = [2, 32], strides = [1, 1]} : vector<2x128xf32> to vector<2x32xf32>
    %172 = arith.negf %171 : vector<2x32xf32>
    %173 = math.exp %172 : vector<2x32xf32>
    %cst_38 = arith.constant 1.000000e+00 : f32
    %174 = vector.broadcast %cst_38 : f32 to vector<2x32xf32>
    %175 = arith.addf %174, %173 : vector<2x32xf32>
    %176 = arith.divf %174, %175 : vector<2x32xf32>
    %177 = arith.mulf %168, %123 : vector<2x32xf32>
    %178 = arith.mulf %162, %170 : vector<2x32xf32>
    %179 = arith.addf %177, %178 : vector<2x32xf32>
    %180 = math.tanh %179 : vector<2x32xf32>
    %181 = arith.mulf %176, %180 : vector<2x32xf32>
    %182 = vector.extract_strided_slice %9 {offsets = [6, 0], sizes = [2, 128], strides = [1, 1]} : vector<16x128xf32> to vector<2x128xf32>
    %cst_39 = arith.constant dense<0.000000e+00> : vector<2x128xf32>
    %183 = tpu.matmul %153, %2, %cst_39 {dimension_numbers = #tpu.dot_dimension_numbers<[1], [0], [0], [1], [0, 0, 1, 1], [], []>} : vector<2x32xf32>, vector<32x128xf32>, vector<2x128xf32> -> vector<2x128xf32>
    %184 = arith.addf %182, %183 : vector<2x128xf32>
    %185 = vector.extract_strided_slice %184 {offsets = [0, 0], sizes = [2, 32], strides = [1, 1]} : vector<2x128xf32> to vector<2x32xf32>
    %186 = arith.negf %185 : vector<2x32xf32>
    %187 = math.exp %186 : vector<2x32xf32>
    %cst_40 = arith.constant 1.000000e+00 : f32
    %188 = vector.broadcast %cst_40 : f32 to vector<2x32xf32>
    %189 = arith.addf %188, %187 : vector<2x32xf32>
    %190 = arith.divf %188, %189 : vector<2x32xf32>
    %191 = vector.extract_strided_slice %184 {offsets = [0, 32], sizes = [2, 32], strides = [1, 1]} : vector<2x128xf32> to vector<2x32xf32>
    %192 = arith.negf %191 : vector<2x32xf32>
    %193 = math.exp %192 : vector<2x32xf32>
    %cst_41 = arith.constant 1.000000e+00 : f32
    %194 = vector.broadcast %cst_41 : f32 to vector<2x32xf32>
    %195 = arith.addf %194, %193 : vector<2x32xf32>
    %196 = arith.divf %194, %195 : vector<2x32xf32>
    %197 = vector.extract_strided_slice %184 {offsets = [0, 64], sizes = [2, 32], strides = [1, 1]} : vector<2x128xf32> to vector<2x32xf32>
    %198 = math.tanh %197 : vector<2x32xf32>
    %199 = vector.extract_strided_slice %184 {offsets = [0, 96], sizes = [2, 32], strides = [1, 1]} : vector<2x128xf32> to vector<2x32xf32>
    %200 = arith.negf %199 : vector<2x32xf32>
    %201 = math.exp %200 : vector<2x32xf32>
    %cst_42 = arith.constant 1.000000e+00 : f32
    %202 = vector.broadcast %cst_42 : f32 to vector<2x32xf32>
    %203 = arith.addf %202, %201 : vector<2x32xf32>
    %204 = arith.divf %202, %203 : vector<2x32xf32>
    %205 = arith.mulf %196, %151 : vector<2x32xf32>
    %206 = arith.mulf %190, %198 : vector<2x32xf32>
    %207 = arith.addf %205, %206 : vector<2x32xf32>
    %208 = math.tanh %207 : vector<2x32xf32>
    %209 = arith.mulf %204, %208 : vector<2x32xf32>
    %210 = vector.extract_strided_slice %12 {offsets = [8, 0], sizes = [2, 128], strides = [1, 1]} : vector<16x128xf32> to vector<2x128xf32>
    %cst_43 = arith.constant dense<0.000000e+00> : vector<2x128xf32>
    %211 = tpu.matmul %181, %5, %cst_43 {dimension_numbers = #tpu.dot_dimension_numbers<[1], [0], [0], [1], [0, 0, 1, 1], [], []>} : vector<2x32xf32>, vector<32x128xf32>, vector<2x128xf32> -> vector<2x128xf32>
    %212 = arith.addf %210, %211 : vector<2x128xf32>
    %213 = vector.extract_strided_slice %212 {offsets = [0, 0], sizes = [2, 32], strides = [1, 1]} : vector<2x128xf32> to vector<2x32xf32>
    %214 = arith.negf %213 : vector<2x32xf32>
    %215 = math.exp %214 : vector<2x32xf32>
    %cst_44 = arith.constant 1.000000e+00 : f32
    %216 = vector.broadcast %cst_44 : f32 to vector<2x32xf32>
    %217 = arith.addf %216, %215 : vector<2x32xf32>
    %218 = arith.divf %216, %217 : vector<2x32xf32>
    %219 = vector.extract_strided_slice %212 {offsets = [0, 32], sizes = [2, 32], strides = [1, 1]} : vector<2x128xf32> to vector<2x32xf32>
    %220 = arith.negf %219 : vector<2x32xf32>
    %221 = math.exp %220 : vector<2x32xf32>
    %cst_45 = arith.constant 1.000000e+00 : f32
    %222 = vector.broadcast %cst_45 : f32 to vector<2x32xf32>
    %223 = arith.addf %222, %221 : vector<2x32xf32>
    %224 = arith.divf %222, %223 : vector<2x32xf32>
    %225 = vector.extract_strided_slice %212 {offsets = [0, 64], sizes = [2, 32], strides = [1, 1]} : vector<2x128xf32> to vector<2x32xf32>
    %226 = math.tanh %225 : vector<2x32xf32>
    %227 = vector.extract_strided_slice %212 {offsets = [0, 96], sizes = [2, 32], strides = [1, 1]} : vector<2x128xf32> to vector<2x32xf32>
    %228 = arith.negf %227 : vector<2x32xf32>
    %229 = math.exp %228 : vector<2x32xf32>
    %cst_46 = arith.constant 1.000000e+00 : f32
    %230 = vector.broadcast %cst_46 : f32 to vector<2x32xf32>
    %231 = arith.addf %230, %229 : vector<2x32xf32>
    %232 = arith.divf %230, %231 : vector<2x32xf32>
    %233 = arith.mulf %224, %179 : vector<2x32xf32>
    %234 = arith.mulf %218, %226 : vector<2x32xf32>
    %235 = arith.addf %233, %234 : vector<2x32xf32>
    %236 = math.tanh %235 : vector<2x32xf32>
    %237 = arith.mulf %232, %236 : vector<2x32xf32>
    %238 = vector.extract_strided_slice %9 {offsets = [8, 0], sizes = [2, 128], strides = [1, 1]} : vector<16x128xf32> to vector<2x128xf32>
    %cst_47 = arith.constant dense<0.000000e+00> : vector<2x128xf32>
    %239 = tpu.matmul %209, %2, %cst_47 {dimension_numbers = #tpu.dot_dimension_numbers<[1], [0], [0], [1], [0, 0, 1, 1], [], []>} : vector<2x32xf32>, vector<32x128xf32>, vector<2x128xf32> -> vector<2x128xf32>
    %240 = arith.addf %238, %239 : vector<2x128xf32>
    %241 = vector.extract_strided_slice %240 {offsets = [0, 0], sizes = [2, 32], strides = [1, 1]} : vector<2x128xf32> to vector<2x32xf32>
    %242 = arith.negf %241 : vector<2x32xf32>
    %243 = math.exp %242 : vector<2x32xf32>
    %cst_48 = arith.constant 1.000000e+00 : f32
    %244 = vector.broadcast %cst_48 : f32 to vector<2x32xf32>
    %245 = arith.addf %244, %243 : vector<2x32xf32>
    %246 = arith.divf %244, %245 : vector<2x32xf32>
    %247 = vector.extract_strided_slice %240 {offsets = [0, 32], sizes = [2, 32], strides = [1, 1]} : vector<2x128xf32> to vector<2x32xf32>
    %248 = arith.negf %247 : vector<2x32xf32>
    %249 = math.exp %248 : vector<2x32xf32>
    %cst_49 = arith.constant 1.000000e+00 : f32
    %250 = vector.broadcast %cst_49 : f32 to vector<2x32xf32>
    %251 = arith.addf %250, %249 : vector<2x32xf32>
    %252 = arith.divf %250, %251 : vector<2x32xf32>
    %253 = vector.extract_strided_slice %240 {offsets = [0, 64], sizes = [2, 32], strides = [1, 1]} : vector<2x128xf32> to vector<2x32xf32>
    %254 = math.tanh %253 : vector<2x32xf32>
    %255 = vector.extract_strided_slice %240 {offsets = [0, 96], sizes = [2, 32], strides = [1, 1]} : vector<2x128xf32> to vector<2x32xf32>
    %256 = arith.negf %255 : vector<2x32xf32>
    %257 = math.exp %256 : vector<2x32xf32>
    %cst_50 = arith.constant 1.000000e+00 : f32
    %258 = vector.broadcast %cst_50 : f32 to vector<2x32xf32>
    %259 = arith.addf %258, %257 : vector<2x32xf32>
    %260 = arith.divf %258, %259 : vector<2x32xf32>
    %261 = arith.mulf %252, %207 : vector<2x32xf32>
    %262 = arith.mulf %246, %254 : vector<2x32xf32>
    %263 = arith.addf %261, %262 : vector<2x32xf32>
    %264 = math.tanh %263 : vector<2x32xf32>
    %265 = arith.mulf %260, %264 : vector<2x32xf32>
    %266 = vector.extract_strided_slice %12 {offsets = [6, 0], sizes = [2, 128], strides = [1, 1]} : vector<16x128xf32> to vector<2x128xf32>
    %cst_51 = arith.constant dense<0.000000e+00> : vector<2x128xf32>
    %267 = tpu.matmul %237, %5, %cst_51 {dimension_numbers = #tpu.dot_dimension_numbers<[1], [0], [0], [1], [0, 0, 1, 1], [], []>} : vector<2x32xf32>, vector<32x128xf32>, vector<2x128xf32> -> vector<2x128xf32>
    %268 = arith.addf %266, %267 : vector<2x128xf32>
    %269 = vector.extract_strided_slice %268 {offsets = [0, 0], sizes = [2, 32], strides = [1, 1]} : vector<2x128xf32> to vector<2x32xf32>
    %270 = arith.negf %269 : vector<2x32xf32>
    %271 = math.exp %270 : vector<2x32xf32>
    %cst_52 = arith.constant 1.000000e+00 : f32
    %272 = vector.broadcast %cst_52 : f32 to vector<2x32xf32>
    %273 = arith.addf %272, %271 : vector<2x32xf32>
    %274 = arith.divf %272, %273 : vector<2x32xf32>
    %275 = vector.extract_strided_slice %268 {offsets = [0, 32], sizes = [2, 32], strides = [1, 1]} : vector<2x128xf32> to vector<2x32xf32>
    %276 = arith.negf %275 : vector<2x32xf32>
    %277 = math.exp %276 : vector<2x32xf32>
    %cst_53 = arith.constant 1.000000e+00 : f32
    %278 = vector.broadcast %cst_53 : f32 to vector<2x32xf32>
    %279 = arith.addf %278, %277 : vector<2x32xf32>
    %280 = arith.divf %278, %279 : vector<2x32xf32>
    %281 = vector.extract_strided_slice %268 {offsets = [0, 64], sizes = [2, 32], strides = [1, 1]} : vector<2x128xf32> to vector<2x32xf32>
    %282 = math.tanh %281 : vector<2x32xf32>
    %283 = vector.extract_strided_slice %268 {offsets = [0, 96], sizes = [2, 32], strides = [1, 1]} : vector<2x128xf32> to vector<2x32xf32>
    %284 = arith.negf %283 : vector<2x32xf32>
    %285 = math.exp %284 : vector<2x32xf32>
    %cst_54 = arith.constant 1.000000e+00 : f32
    %286 = vector.broadcast %cst_54 : f32 to vector<2x32xf32>
    %287 = arith.addf %286, %285 : vector<2x32xf32>
    %288 = arith.divf %286, %287 : vector<2x32xf32>
    %289 = arith.mulf %280, %235 : vector<2x32xf32>
    %290 = arith.mulf %274, %282 : vector<2x32xf32>
    %291 = arith.addf %289, %290 : vector<2x32xf32>
    %292 = math.tanh %291 : vector<2x32xf32>
    %293 = arith.mulf %288, %292 : vector<2x32xf32>
    %294 = vector.extract_strided_slice %9 {offsets = [10, 0], sizes = [2, 128], strides = [1, 1]} : vector<16x128xf32> to vector<2x128xf32>
    %cst_55 = arith.constant dense<0.000000e+00> : vector<2x128xf32>
    %295 = tpu.matmul %265, %2, %cst_55 {dimension_numbers = #tpu.dot_dimension_numbers<[1], [0], [0], [1], [0, 0, 1, 1], [], []>} : vector<2x32xf32>, vector<32x128xf32>, vector<2x128xf32> -> vector<2x128xf32>
    %296 = arith.addf %294, %295 : vector<2x128xf32>
    %297 = vector.extract_strided_slice %296 {offsets = [0, 0], sizes = [2, 32], strides = [1, 1]} : vector<2x128xf32> to vector<2x32xf32>
    %298 = arith.negf %297 : vector<2x32xf32>
    %299 = math.exp %298 : vector<2x32xf32>
    %cst_56 = arith.constant 1.000000e+00 : f32
    %300 = vector.broadcast %cst_56 : f32 to vector<2x32xf32>
    %301 = arith.addf %300, %299 : vector<2x32xf32>
    %302 = arith.divf %300, %301 : vector<2x32xf32>
    %303 = vector.extract_strided_slice %296 {offsets = [0, 32], sizes = [2, 32], strides = [1, 1]} : vector<2x128xf32> to vector<2x32xf32>
    %304 = arith.negf %303 : vector<2x32xf32>
    %305 = math.exp %304 : vector<2x32xf32>
    %cst_57 = arith.constant 1.000000e+00 : f32
    %306 = vector.broadcast %cst_57 : f32 to vector<2x32xf32>
    %307 = arith.addf %306, %305 : vector<2x32xf32>
    %308 = arith.divf %306, %307 : vector<2x32xf32>
    %309 = vector.extract_strided_slice %296 {offsets = [0, 64], sizes = [2, 32], strides = [1, 1]} : vector<2x128xf32> to vector<2x32xf32>
    %310 = math.tanh %309 : vector<2x32xf32>
    %311 = vector.extract_strided_slice %296 {offsets = [0, 96], sizes = [2, 32], strides = [1, 1]} : vector<2x128xf32> to vector<2x32xf32>
    %312 = arith.negf %311 : vector<2x32xf32>
    %313 = math.exp %312 : vector<2x32xf32>
    %cst_58 = arith.constant 1.000000e+00 : f32
    %314 = vector.broadcast %cst_58 : f32 to vector<2x32xf32>
    %315 = arith.addf %314, %313 : vector<2x32xf32>
    %316 = arith.divf %314, %315 : vector<2x32xf32>
    %317 = arith.mulf %308, %263 : vector<2x32xf32>
    %318 = arith.mulf %302, %310 : vector<2x32xf32>
    %319 = arith.addf %317, %318 : vector<2x32xf32>
    %320 = math.tanh %319 : vector<2x32xf32>
    %321 = arith.mulf %316, %320 : vector<2x32xf32>
    %322 = vector.extract_strided_slice %12 {offsets = [4, 0], sizes = [2, 128], strides = [1, 1]} : vector<16x128xf32> to vector<2x128xf32>
    %cst_59 = arith.constant dense<0.000000e+00> : vector<2x128xf32>
    %323 = tpu.matmul %293, %5, %cst_59 {dimension_numbers = #tpu.dot_dimension_numbers<[1], [0], [0], [1], [0, 0, 1, 1], [], []>} : vector<2x32xf32>, vector<32x128xf32>, vector<2x128xf32> -> vector<2x128xf32>
    %324 = arith.addf %322, %323 : vector<2x128xf32>
    %325 = vector.extract_strided_slice %324 {offsets = [0, 0], sizes = [2, 32], strides = [1, 1]} : vector<2x128xf32> to vector<2x32xf32>
    %326 = arith.negf %325 : vector<2x32xf32>
    %327 = math.exp %326 : vector<2x32xf32>
    %cst_60 = arith.constant 1.000000e+00 : f32
    %328 = vector.broadcast %cst_60 : f32 to vector<2x32xf32>
    %329 = arith.addf %328, %327 : vector<2x32xf32>
    %330 = arith.divf %328, %329 : vector<2x32xf32>
    %331 = vector.extract_strided_slice %324 {offsets = [0, 32], sizes = [2, 32], strides = [1, 1]} : vector<2x128xf32> to vector<2x32xf32>
    %332 = arith.negf %331 : vector<2x32xf32>
    %333 = math.exp %332 : vector<2x32xf32>
    %cst_61 = arith.constant 1.000000e+00 : f32
    %334 = vector.broadcast %cst_61 : f32 to vector<2x32xf32>
    %335 = arith.addf %334, %333 : vector<2x32xf32>
    %336 = arith.divf %334, %335 : vector<2x32xf32>
    %337 = vector.extract_strided_slice %324 {offsets = [0, 64], sizes = [2, 32], strides = [1, 1]} : vector<2x128xf32> to vector<2x32xf32>
    %338 = math.tanh %337 : vector<2x32xf32>
    %339 = vector.extract_strided_slice %324 {offsets = [0, 96], sizes = [2, 32], strides = [1, 1]} : vector<2x128xf32> to vector<2x32xf32>
    %340 = arith.negf %339 : vector<2x32xf32>
    %341 = math.exp %340 : vector<2x32xf32>
    %cst_62 = arith.constant 1.000000e+00 : f32
    %342 = vector.broadcast %cst_62 : f32 to vector<2x32xf32>
    %343 = arith.addf %342, %341 : vector<2x32xf32>
    %344 = arith.divf %342, %343 : vector<2x32xf32>
    %345 = arith.mulf %336, %291 : vector<2x32xf32>
    %346 = arith.mulf %330, %338 : vector<2x32xf32>
    %347 = arith.addf %345, %346 : vector<2x32xf32>
    %348 = math.tanh %347 : vector<2x32xf32>
    %349 = arith.mulf %344, %348 : vector<2x32xf32>
    %350 = vector.extract_strided_slice %9 {offsets = [12, 0], sizes = [2, 128], strides = [1, 1]} : vector<16x128xf32> to vector<2x128xf32>
    %cst_63 = arith.constant dense<0.000000e+00> : vector<2x128xf32>
    %351 = tpu.matmul %321, %2, %cst_63 {dimension_numbers = #tpu.dot_dimension_numbers<[1], [0], [0], [1], [0, 0, 1, 1], [], []>} : vector<2x32xf32>, vector<32x128xf32>, vector<2x128xf32> -> vector<2x128xf32>
    %352 = arith.addf %350, %351 : vector<2x128xf32>
    %353 = vector.extract_strided_slice %352 {offsets = [0, 0], sizes = [2, 32], strides = [1, 1]} : vector<2x128xf32> to vector<2x32xf32>
    %354 = arith.negf %353 : vector<2x32xf32>
    %355 = math.exp %354 : vector<2x32xf32>
    %cst_64 = arith.constant 1.000000e+00 : f32
    %356 = vector.broadcast %cst_64 : f32 to vector<2x32xf32>
    %357 = arith.addf %356, %355 : vector<2x32xf32>
    %358 = arith.divf %356, %357 : vector<2x32xf32>
    %359 = vector.extract_strided_slice %352 {offsets = [0, 32], sizes = [2, 32], strides = [1, 1]} : vector<2x128xf32> to vector<2x32xf32>
    %360 = arith.negf %359 : vector<2x32xf32>
    %361 = math.exp %360 : vector<2x32xf32>
    %cst_65 = arith.constant 1.000000e+00 : f32
    %362 = vector.broadcast %cst_65 : f32 to vector<2x32xf32>
    %363 = arith.addf %362, %361 : vector<2x32xf32>
    %364 = arith.divf %362, %363 : vector<2x32xf32>
    %365 = vector.extract_strided_slice %352 {offsets = [0, 64], sizes = [2, 32], strides = [1, 1]} : vector<2x128xf32> to vector<2x32xf32>
    %366 = math.tanh %365 : vector<2x32xf32>
    %367 = vector.extract_strided_slice %352 {offsets = [0, 96], sizes = [2, 32], strides = [1, 1]} : vector<2x128xf32> to vector<2x32xf32>
    %368 = arith.negf %367 : vector<2x32xf32>
    %369 = math.exp %368 : vector<2x32xf32>
    %cst_66 = arith.constant 1.000000e+00 : f32
    %370 = vector.broadcast %cst_66 : f32 to vector<2x32xf32>
    %371 = arith.addf %370, %369 : vector<2x32xf32>
    %372 = arith.divf %370, %371 : vector<2x32xf32>
    %373 = arith.mulf %364, %319 : vector<2x32xf32>
    %374 = arith.mulf %358, %366 : vector<2x32xf32>
    %375 = arith.addf %373, %374 : vector<2x32xf32>
    %376 = math.tanh %375 : vector<2x32xf32>
    %377 = arith.mulf %372, %376 : vector<2x32xf32>
    %378 = vector.extract_strided_slice %12 {offsets = [2, 0], sizes = [2, 128], strides = [1, 1]} : vector<16x128xf32> to vector<2x128xf32>
    %cst_67 = arith.constant dense<0.000000e+00> : vector<2x128xf32>
    %379 = tpu.matmul %349, %5, %cst_67 {dimension_numbers = #tpu.dot_dimension_numbers<[1], [0], [0], [1], [0, 0, 1, 1], [], []>} : vector<2x32xf32>, vector<32x128xf32>, vector<2x128xf32> -> vector<2x128xf32>
    %380 = arith.addf %378, %379 : vector<2x128xf32>
    %381 = vector.extract_strided_slice %380 {offsets = [0, 0], sizes = [2, 32], strides = [1, 1]} : vector<2x128xf32> to vector<2x32xf32>
    %382 = arith.negf %381 : vector<2x32xf32>
    %383 = math.exp %382 : vector<2x32xf32>
    %cst_68 = arith.constant 1.000000e+00 : f32
    %384 = vector.broadcast %cst_68 : f32 to vector<2x32xf32>
    %385 = arith.addf %384, %383 : vector<2x32xf32>
    %386 = arith.divf %384, %385 : vector<2x32xf32>
    %387 = vector.extract_strided_slice %380 {offsets = [0, 32], sizes = [2, 32], strides = [1, 1]} : vector<2x128xf32> to vector<2x32xf32>
    %388 = arith.negf %387 : vector<2x32xf32>
    %389 = math.exp %388 : vector<2x32xf32>
    %cst_69 = arith.constant 1.000000e+00 : f32
    %390 = vector.broadcast %cst_69 : f32 to vector<2x32xf32>
    %391 = arith.addf %390, %389 : vector<2x32xf32>
    %392 = arith.divf %390, %391 : vector<2x32xf32>
    %393 = vector.extract_strided_slice %380 {offsets = [0, 64], sizes = [2, 32], strides = [1, 1]} : vector<2x128xf32> to vector<2x32xf32>
    %394 = math.tanh %393 : vector<2x32xf32>
    %395 = vector.extract_strided_slice %380 {offsets = [0, 96], sizes = [2, 32], strides = [1, 1]} : vector<2x128xf32> to vector<2x32xf32>
    %396 = arith.negf %395 : vector<2x32xf32>
    %397 = math.exp %396 : vector<2x32xf32>
    %cst_70 = arith.constant 1.000000e+00 : f32
    %398 = vector.broadcast %cst_70 : f32 to vector<2x32xf32>
    %399 = arith.addf %398, %397 : vector<2x32xf32>
    %400 = arith.divf %398, %399 : vector<2x32xf32>
    %401 = arith.mulf %392, %347 : vector<2x32xf32>
    %402 = arith.mulf %386, %394 : vector<2x32xf32>
    %403 = arith.addf %401, %402 : vector<2x32xf32>
    %404 = math.tanh %403 : vector<2x32xf32>
    %405 = arith.mulf %400, %404 : vector<2x32xf32>
    %406 = vector.extract_strided_slice %9 {offsets = [14, 0], sizes = [2, 128], strides = [1, 1]} : vector<16x128xf32> to vector<2x128xf32>
    %cst_71 = arith.constant dense<0.000000e+00> : vector<2x128xf32>
    %407 = tpu.matmul %377, %2, %cst_71 {dimension_numbers = #tpu.dot_dimension_numbers<[1], [0], [0], [1], [0, 0, 1, 1], [], []>} : vector<2x32xf32>, vector<32x128xf32>, vector<2x128xf32> -> vector<2x128xf32>
    %408 = arith.addf %406, %407 : vector<2x128xf32>
    %409 = vector.extract_strided_slice %408 {offsets = [0, 0], sizes = [2, 32], strides = [1, 1]} : vector<2x128xf32> to vector<2x32xf32>
    %410 = arith.negf %409 : vector<2x32xf32>
    %411 = math.exp %410 : vector<2x32xf32>
    %cst_72 = arith.constant 1.000000e+00 : f32
    %412 = vector.broadcast %cst_72 : f32 to vector<2x32xf32>
    %413 = arith.addf %412, %411 : vector<2x32xf32>
    %414 = arith.divf %412, %413 : vector<2x32xf32>
    %415 = vector.extract_strided_slice %408 {offsets = [0, 32], sizes = [2, 32], strides = [1, 1]} : vector<2x128xf32> to vector<2x32xf32>
    %416 = arith.negf %415 : vector<2x32xf32>
    %417 = math.exp %416 : vector<2x32xf32>
    %cst_73 = arith.constant 1.000000e+00 : f32
    %418 = vector.broadcast %cst_73 : f32 to vector<2x32xf32>
    %419 = arith.addf %418, %417 : vector<2x32xf32>
    %420 = arith.divf %418, %419 : vector<2x32xf32>
    %421 = vector.extract_strided_slice %408 {offsets = [0, 64], sizes = [2, 32], strides = [1, 1]} : vector<2x128xf32> to vector<2x32xf32>
    %422 = math.tanh %421 : vector<2x32xf32>
    %423 = vector.extract_strided_slice %408 {offsets = [0, 96], sizes = [2, 32], strides = [1, 1]} : vector<2x128xf32> to vector<2x32xf32>
    %424 = arith.negf %423 : vector<2x32xf32>
    %425 = math.exp %424 : vector<2x32xf32>
    %cst_74 = arith.constant 1.000000e+00 : f32
    %426 = vector.broadcast %cst_74 : f32 to vector<2x32xf32>
    %427 = arith.addf %426, %425 : vector<2x32xf32>
    %428 = arith.divf %426, %427 : vector<2x32xf32>
    %429 = arith.mulf %420, %375 : vector<2x32xf32>
    %430 = arith.mulf %414, %422 : vector<2x32xf32>
    %431 = arith.addf %429, %430 : vector<2x32xf32>
    %432 = math.tanh %431 : vector<2x32xf32>
    %433 = arith.mulf %428, %432 : vector<2x32xf32>
    %434 = vector.extract_strided_slice %12 {offsets = [0, 0], sizes = [2, 128], strides = [1, 1]} : vector<16x128xf32> to vector<2x128xf32>
    %cst_75 = arith.constant dense<0.000000e+00> : vector<2x128xf32>
    %435 = tpu.matmul %405, %5, %cst_75 {dimension_numbers = #tpu.dot_dimension_numbers<[1], [0], [0], [1], [0, 0, 1, 1], [], []>} : vector<2x32xf32>, vector<32x128xf32>, vector<2x128xf32> -> vector<2x128xf32>
    %436 = arith.addf %434, %435 : vector<2x128xf32>
    %437 = vector.extract_strided_slice %436 {offsets = [0, 0], sizes = [2, 32], strides = [1, 1]} : vector<2x128xf32> to vector<2x32xf32>
    %438 = arith.negf %437 : vector<2x32xf32>
    %439 = math.exp %438 : vector<2x32xf32>
    %cst_76 = arith.constant 1.000000e+00 : f32
    %440 = vector.broadcast %cst_76 : f32 to vector<2x32xf32>
    %441 = arith.addf %440, %439 : vector<2x32xf32>
    %442 = arith.divf %440, %441 : vector<2x32xf32>
    %443 = vector.extract_strided_slice %436 {offsets = [0, 32], sizes = [2, 32], strides = [1, 1]} : vector<2x128xf32> to vector<2x32xf32>
    %444 = arith.negf %443 : vector<2x32xf32>
    %445 = math.exp %444 : vector<2x32xf32>
    %cst_77 = arith.constant 1.000000e+00 : f32
    %446 = vector.broadcast %cst_77 : f32 to vector<2x32xf32>
    %447 = arith.addf %446, %445 : vector<2x32xf32>
    %448 = arith.divf %446, %447 : vector<2x32xf32>
    %449 = vector.extract_strided_slice %436 {offsets = [0, 64], sizes = [2, 32], strides = [1, 1]} : vector<2x128xf32> to vector<2x32xf32>
    %450 = math.tanh %449 : vector<2x32xf32>
    %451 = vector.extract_strided_slice %436 {offsets = [0, 96], sizes = [2, 32], strides = [1, 1]} : vector<2x128xf32> to vector<2x32xf32>
    %452 = arith.negf %451 : vector<2x32xf32>
    %453 = math.exp %452 : vector<2x32xf32>
    %cst_78 = arith.constant 1.000000e+00 : f32
    %454 = vector.broadcast %cst_78 : f32 to vector<2x32xf32>
    %455 = arith.addf %454, %453 : vector<2x32xf32>
    %456 = arith.divf %454, %455 : vector<2x32xf32>
    %457 = arith.mulf %448, %403 : vector<2x32xf32>
    %458 = arith.mulf %442, %450 : vector<2x32xf32>
    %459 = arith.addf %457, %458 : vector<2x32xf32>
    %460 = math.tanh %459 : vector<2x32xf32>
    %461 = arith.mulf %456, %460 : vector<2x32xf32>
    %462 = vector.shape_cast %41 : vector<2x32xf32> to vector<1x2x32xf32>
    %463 = vector.shape_cast %97 : vector<2x32xf32> to vector<1x2x32xf32>
    %464 = vector.shape_cast %153 : vector<2x32xf32> to vector<1x2x32xf32>
    %465 = vector.shape_cast %209 : vector<2x32xf32> to vector<1x2x32xf32>
    %466 = vector.shape_cast %265 : vector<2x32xf32> to vector<1x2x32xf32>
    %467 = vector.shape_cast %321 : vector<2x32xf32> to vector<1x2x32xf32>
    %468 = vector.shape_cast %377 : vector<2x32xf32> to vector<1x2x32xf32>
    %469 = vector.shape_cast %433 : vector<2x32xf32> to vector<1x2x32xf32>
    %470 = tpu.concatenate %462, %463, %464, %465, %466, %467, %468, %469 in 0 : vector<1x2x32xf32>, vector<1x2x32xf32>, vector<1x2x32xf32>, vector<1x2x32xf32>, vector<1x2x32xf32>, vector<1x2x32xf32>, vector<1x2x32xf32>, vector<1x2x32xf32> -> vector<8x2x32xf32>
    %471 = vector.shape_cast %461 : vector<2x32xf32> to vector<1x2x32xf32>
    %472 = vector.shape_cast %405 : vector<2x32xf32> to vector<1x2x32xf32>
    %473 = vector.shape_cast %349 : vector<2x32xf32> to vector<1x2x32xf32>
    %474 = vector.shape_cast %293 : vector<2x32xf32> to vector<1x2x32xf32>
    %475 = vector.shape_cast %237 : vector<2x32xf32> to vector<1x2x32xf32>
    %476 = vector.shape_cast %181 : vector<2x32xf32> to vector<1x2x32xf32>
    %477 = vector.shape_cast %125 : vector<2x32xf32> to vector<1x2x32xf32>
    %478 = vector.shape_cast %69 : vector<2x32xf32> to vector<1x2x32xf32>
    %479 = tpu.concatenate %471, %472, %473, %474, %475, %476, %477, %478 in 0 : vector<1x2x32xf32>, vector<1x2x32xf32>, vector<1x2x32xf32>, vector<1x2x32xf32>, vector<1x2x32xf32>, vector<1x2x32xf32>, vector<1x2x32xf32>, vector<1x2x32xf32> -> vector<8x2x32xf32>
    %480 = tpu.concatenate %470, %479 in 2 : vector<8x2x32xf32>, vector<8x2x32xf32> -> vector<8x2x64xf32>
    %c0_79 = arith.constant 0 : index
    %c0_80 = arith.constant 0 : index
    %c0_81 = arith.constant 0 : index
    %481 = vector.load %arg7[%c0_79, %c0_80, %c0_81] : memref<8x2x64xf32, #tpu.memory_space<vmem>>, vector<8x2x64xf32>
    tpu.vector_store %arg7[%c0_79, %c0_80, %c0_81], %480 {strides = array<i32>} : memref<8x2x64xf32, #tpu.memory_space<vmem>>, vector<8x2x64xf32>,
    return
  }
}

module attributes {stable_mosaic.version = 11 : i64} {
  func.func @_bilstm_decoder_kernel(%arg0: memref<16x64xf32, #tpu.memory_space<vmem>>, %arg1: memref<64x128xf32, #tpu.memory_space<vmem>>, %arg2: memref<32x128xf32, #tpu.memory_space<vmem>>, %arg3: memref<1x128xf32, #tpu.memory_space<vmem>>, %arg4: memref<64x128xf32, #tpu.memory_space<vmem>>, %arg5: memref<32x128xf32, #tpu.memory_space<vmem>>, %arg6: memref<1x128xf32, #tpu.memory_space<vmem>>, %arg7: memref<128x2xf32, #tpu.memory_space<vmem>>, %arg8: memref<1x2xf32, #tpu.memory_space<vmem>>, %arg9: memref<2x2xf32, #tpu.memory_space<vmem>>) attributes {dimension_semantics = [], scalar_prefetch = 0 : i64, scratch_operands = 0 : i64, tpu.core_type = #tpu.core_type<tc>} {
    %c0 = arith.constant 0 : index
    %c0_0 = arith.constant 0 : index
    %0 = vector.load %arg0[%c0, %c0_0] : memref<16x64xf32, #tpu.memory_space<vmem>>, vector<16x64xf32>
    %c0_1 = arith.constant 0 : index
    %c0_2 = arith.constant 0 : index
    %1 = vector.load %arg1[%c0_1, %c0_2] : memref<64x128xf32, #tpu.memory_space<vmem>>, vector<64x128xf32>
    %c0_3 = arith.constant 0 : index
    %c0_4 = arith.constant 0 : index
    %2 = vector.load %arg2[%c0_3, %c0_4] : memref<32x128xf32, #tpu.memory_space<vmem>>, vector<32x128xf32>
    %c0_5 = arith.constant 0 : index
    %c0_6 = arith.constant 0 : index
    %3 = vector.load %arg3[%c0_5, %c0_6] : memref<1x128xf32, #tpu.memory_space<vmem>>, vector<1x128xf32>
    %c0_7 = arith.constant 0 : index
    %c0_8 = arith.constant 0 : index
    %4 = vector.load %arg4[%c0_7, %c0_8] : memref<64x128xf32, #tpu.memory_space<vmem>>, vector<64x128xf32>
    %c0_9 = arith.constant 0 : index
    %c0_10 = arith.constant 0 : index
    %5 = vector.load %arg5[%c0_9, %c0_10] : memref<32x128xf32, #tpu.memory_space<vmem>>, vector<32x128xf32>
    %c0_11 = arith.constant 0 : index
    %c0_12 = arith.constant 0 : index
    %6 = vector.load %arg6[%c0_11, %c0_12] : memref<1x128xf32, #tpu.memory_space<vmem>>, vector<1x128xf32>
    %cst = arith.constant dense<0.000000e+00> : vector<16x128xf32>
    %7 = tpu.matmul %0, %1, %cst {dimension_numbers = #tpu.dot_dimension_numbers<[1], [0], [0], [1], [0, 0, 1, 1], [], []>} : vector<16x64xf32>, vector<64x128xf32>, vector<16x128xf32> -> vector<16x128xf32>
    %8 = vector.broadcast %3 : vector<1x128xf32> to vector<16x128xf32>
    %9 = arith.addf %7, %8 : vector<16x128xf32>
    %cst_13 = arith.constant dense<0.000000e+00> : vector<16x128xf32>
    %10 = tpu.matmul %0, %4, %cst_13 {dimension_numbers = #tpu.dot_dimension_numbers<[1], [0], [0], [1], [0, 0, 1, 1], [], []>} : vector<16x64xf32>, vector<64x128xf32>, vector<16x128xf32> -> vector<16x128xf32>
    %11 = vector.broadcast %6 : vector<1x128xf32> to vector<16x128xf32>
    %12 = arith.addf %10, %11 : vector<16x128xf32>
    %cst_14 = arith.constant 0.000000e+00 : f32
    %13 = vector.broadcast %cst_14 : f32 to vector<2x32xf32>
    %14 = vector.extract_strided_slice %9 {offsets = [0, 0], sizes = [2, 128], strides = [1, 1]} : vector<16x128xf32> to vector<2x128xf32>
    %cst_15 = arith.constant dense<0.000000e+00> : vector<2x128xf32>
    %15 = tpu.matmul %13, %2, %cst_15 {dimension_numbers = #tpu.dot_dimension_numbers<[1], [0], [0], [1], [0, 0, 1, 1], [], []>} : vector<2x32xf32>, vector<32x128xf32>, vector<2x128xf32> -> vector<2x128xf32>
    %16 = arith.addf %14, %15 : vector<2x128xf32>
    %17 = vector.extract_strided_slice %16 {offsets = [0, 0], sizes = [2, 32], strides = [1, 1]} : vector<2x128xf32> to vector<2x32xf32>
    %18 = arith.negf %17 : vector<2x32xf32>
    %19 = math.exp %18 : vector<2x32xf32>
    %cst_16 = arith.constant 1.000000e+00 : f32
    %20 = vector.broadcast %cst_16 : f32 to vector<2x32xf32>
    %21 = arith.addf %20, %19 : vector<2x32xf32>
    %22 = arith.divf %20, %21 : vector<2x32xf32>
    %23 = vector.extract_strided_slice %16 {offsets = [0, 32], sizes = [2, 32], strides = [1, 1]} : vector<2x128xf32> to vector<2x32xf32>
    %24 = arith.negf %23 : vector<2x32xf32>
    %25 = math.exp %24 : vector<2x32xf32>
    %cst_17 = arith.constant 1.000000e+00 : f32
    %26 = vector.broadcast %cst_17 : f32 to vector<2x32xf32>
    %27 = arith.addf %26, %25 : vector<2x32xf32>
    %28 = arith.divf %26, %27 : vector<2x32xf32>
    %29 = vector.extract_strided_slice %16 {offsets = [0, 64], sizes = [2, 32], strides = [1, 1]} : vector<2x128xf32> to vector<2x32xf32>
    %30 = math.tanh %29 : vector<2x32xf32>
    %31 = vector.extract_strided_slice %16 {offsets = [0, 96], sizes = [2, 32], strides = [1, 1]} : vector<2x128xf32> to vector<2x32xf32>
    %32 = arith.negf %31 : vector<2x32xf32>
    %33 = math.exp %32 : vector<2x32xf32>
    %cst_18 = arith.constant 1.000000e+00 : f32
    %34 = vector.broadcast %cst_18 : f32 to vector<2x32xf32>
    %35 = arith.addf %34, %33 : vector<2x32xf32>
    %36 = arith.divf %34, %35 : vector<2x32xf32>
    %37 = arith.mulf %28, %13 : vector<2x32xf32>
    %38 = arith.mulf %22, %30 : vector<2x32xf32>
    %39 = arith.addf %37, %38 : vector<2x32xf32>
    %40 = math.tanh %39 : vector<2x32xf32>
    %41 = arith.mulf %36, %40 : vector<2x32xf32>
    %42 = vector.extract_strided_slice %12 {offsets = [14, 0], sizes = [2, 128], strides = [1, 1]} : vector<16x128xf32> to vector<2x128xf32>
    %cst_19 = arith.constant dense<0.000000e+00> : vector<2x128xf32>
    %43 = tpu.matmul %13, %5, %cst_19 {dimension_numbers = #tpu.dot_dimension_numbers<[1], [0], [0], [1], [0, 0, 1, 1], [], []>} : vector<2x32xf32>, vector<32x128xf32>, vector<2x128xf32> -> vector<2x128xf32>
    %44 = arith.addf %42, %43 : vector<2x128xf32>
    %45 = vector.extract_strided_slice %44 {offsets = [0, 0], sizes = [2, 32], strides = [1, 1]} : vector<2x128xf32> to vector<2x32xf32>
    %46 = arith.negf %45 : vector<2x32xf32>
    %47 = math.exp %46 : vector<2x32xf32>
    %cst_20 = arith.constant 1.000000e+00 : f32
    %48 = vector.broadcast %cst_20 : f32 to vector<2x32xf32>
    %49 = arith.addf %48, %47 : vector<2x32xf32>
    %50 = arith.divf %48, %49 : vector<2x32xf32>
    %51 = vector.extract_strided_slice %44 {offsets = [0, 32], sizes = [2, 32], strides = [1, 1]} : vector<2x128xf32> to vector<2x32xf32>
    %52 = arith.negf %51 : vector<2x32xf32>
    %53 = math.exp %52 : vector<2x32xf32>
    %cst_21 = arith.constant 1.000000e+00 : f32
    %54 = vector.broadcast %cst_21 : f32 to vector<2x32xf32>
    %55 = arith.addf %54, %53 : vector<2x32xf32>
    %56 = arith.divf %54, %55 : vector<2x32xf32>
    %57 = vector.extract_strided_slice %44 {offsets = [0, 64], sizes = [2, 32], strides = [1, 1]} : vector<2x128xf32> to vector<2x32xf32>
    %58 = math.tanh %57 : vector<2x32xf32>
    %59 = vector.extract_strided_slice %44 {offsets = [0, 96], sizes = [2, 32], strides = [1, 1]} : vector<2x128xf32> to vector<2x32xf32>
    %60 = arith.negf %59 : vector<2x32xf32>
    %61 = math.exp %60 : vector<2x32xf32>
    %cst_22 = arith.constant 1.000000e+00 : f32
    %62 = vector.broadcast %cst_22 : f32 to vector<2x32xf32>
    %63 = arith.addf %62, %61 : vector<2x32xf32>
    %64 = arith.divf %62, %63 : vector<2x32xf32>
    %65 = arith.mulf %56, %13 : vector<2x32xf32>
    %66 = arith.mulf %50, %58 : vector<2x32xf32>
    %67 = arith.addf %65, %66 : vector<2x32xf32>
    %68 = math.tanh %67 : vector<2x32xf32>
    %69 = arith.mulf %64, %68 : vector<2x32xf32>
    %70 = vector.extract_strided_slice %9 {offsets = [2, 0], sizes = [2, 128], strides = [1, 1]} : vector<16x128xf32> to vector<2x128xf32>
    %cst_23 = arith.constant dense<0.000000e+00> : vector<2x128xf32>
    %71 = tpu.matmul %41, %2, %cst_23 {dimension_numbers = #tpu.dot_dimension_numbers<[1], [0], [0], [1], [0, 0, 1, 1], [], []>} : vector<2x32xf32>, vector<32x128xf32>, vector<2x128xf32> -> vector<2x128xf32>
    %72 = arith.addf %70, %71 : vector<2x128xf32>
    %73 = vector.extract_strided_slice %72 {offsets = [0, 0], sizes = [2, 32], strides = [1, 1]} : vector<2x128xf32> to vector<2x32xf32>
    %74 = arith.negf %73 : vector<2x32xf32>
    %75 = math.exp %74 : vector<2x32xf32>
    %cst_24 = arith.constant 1.000000e+00 : f32
    %76 = vector.broadcast %cst_24 : f32 to vector<2x32xf32>
    %77 = arith.addf %76, %75 : vector<2x32xf32>
    %78 = arith.divf %76, %77 : vector<2x32xf32>
    %79 = vector.extract_strided_slice %72 {offsets = [0, 32], sizes = [2, 32], strides = [1, 1]} : vector<2x128xf32> to vector<2x32xf32>
    %80 = arith.negf %79 : vector<2x32xf32>
    %81 = math.exp %80 : vector<2x32xf32>
    %cst_25 = arith.constant 1.000000e+00 : f32
    %82 = vector.broadcast %cst_25 : f32 to vector<2x32xf32>
    %83 = arith.addf %82, %81 : vector<2x32xf32>
    %84 = arith.divf %82, %83 : vector<2x32xf32>
    %85 = vector.extract_strided_slice %72 {offsets = [0, 64], sizes = [2, 32], strides = [1, 1]} : vector<2x128xf32> to vector<2x32xf32>
    %86 = math.tanh %85 : vector<2x32xf32>
    %87 = vector.extract_strided_slice %72 {offsets = [0, 96], sizes = [2, 32], strides = [1, 1]} : vector<2x128xf32> to vector<2x32xf32>
    %88 = arith.negf %87 : vector<2x32xf32>
    %89 = math.exp %88 : vector<2x32xf32>
    %cst_26 = arith.constant 1.000000e+00 : f32
    %90 = vector.broadcast %cst_26 : f32 to vector<2x32xf32>
    %91 = arith.addf %90, %89 : vector<2x32xf32>
    %92 = arith.divf %90, %91 : vector<2x32xf32>
    %93 = arith.mulf %84, %39 : vector<2x32xf32>
    %94 = arith.mulf %78, %86 : vector<2x32xf32>
    %95 = arith.addf %93, %94 : vector<2x32xf32>
    %96 = math.tanh %95 : vector<2x32xf32>
    %97 = arith.mulf %92, %96 : vector<2x32xf32>
    %98 = vector.extract_strided_slice %12 {offsets = [12, 0], sizes = [2, 128], strides = [1, 1]} : vector<16x128xf32> to vector<2x128xf32>
    %cst_27 = arith.constant dense<0.000000e+00> : vector<2x128xf32>
    %99 = tpu.matmul %69, %5, %cst_27 {dimension_numbers = #tpu.dot_dimension_numbers<[1], [0], [0], [1], [0, 0, 1, 1], [], []>} : vector<2x32xf32>, vector<32x128xf32>, vector<2x128xf32> -> vector<2x128xf32>
    %100 = arith.addf %98, %99 : vector<2x128xf32>
    %101 = vector.extract_strided_slice %100 {offsets = [0, 0], sizes = [2, 32], strides = [1, 1]} : vector<2x128xf32> to vector<2x32xf32>
    %102 = arith.negf %101 : vector<2x32xf32>
    %103 = math.exp %102 : vector<2x32xf32>
    %cst_28 = arith.constant 1.000000e+00 : f32
    %104 = vector.broadcast %cst_28 : f32 to vector<2x32xf32>
    %105 = arith.addf %104, %103 : vector<2x32xf32>
    %106 = arith.divf %104, %105 : vector<2x32xf32>
    %107 = vector.extract_strided_slice %100 {offsets = [0, 32], sizes = [2, 32], strides = [1, 1]} : vector<2x128xf32> to vector<2x32xf32>
    %108 = arith.negf %107 : vector<2x32xf32>
    %109 = math.exp %108 : vector<2x32xf32>
    %cst_29 = arith.constant 1.000000e+00 : f32
    %110 = vector.broadcast %cst_29 : f32 to vector<2x32xf32>
    %111 = arith.addf %110, %109 : vector<2x32xf32>
    %112 = arith.divf %110, %111 : vector<2x32xf32>
    %113 = vector.extract_strided_slice %100 {offsets = [0, 64], sizes = [2, 32], strides = [1, 1]} : vector<2x128xf32> to vector<2x32xf32>
    %114 = math.tanh %113 : vector<2x32xf32>
    %115 = vector.extract_strided_slice %100 {offsets = [0, 96], sizes = [2, 32], strides = [1, 1]} : vector<2x128xf32> to vector<2x32xf32>
    %116 = arith.negf %115 : vector<2x32xf32>
    %117 = math.exp %116 : vector<2x32xf32>
    %cst_30 = arith.constant 1.000000e+00 : f32
    %118 = vector.broadcast %cst_30 : f32 to vector<2x32xf32>
    %119 = arith.addf %118, %117 : vector<2x32xf32>
    %120 = arith.divf %118, %119 : vector<2x32xf32>
    %121 = arith.mulf %112, %67 : vector<2x32xf32>
    %122 = arith.mulf %106, %114 : vector<2x32xf32>
    %123 = arith.addf %121, %122 : vector<2x32xf32>
    %124 = math.tanh %123 : vector<2x32xf32>
    %125 = arith.mulf %120, %124 : vector<2x32xf32>
    %126 = vector.extract_strided_slice %9 {offsets = [4, 0], sizes = [2, 128], strides = [1, 1]} : vector<16x128xf32> to vector<2x128xf32>
    %cst_31 = arith.constant dense<0.000000e+00> : vector<2x128xf32>
    %127 = tpu.matmul %97, %2, %cst_31 {dimension_numbers = #tpu.dot_dimension_numbers<[1], [0], [0], [1], [0, 0, 1, 1], [], []>} : vector<2x32xf32>, vector<32x128xf32>, vector<2x128xf32> -> vector<2x128xf32>
    %128 = arith.addf %126, %127 : vector<2x128xf32>
    %129 = vector.extract_strided_slice %128 {offsets = [0, 0], sizes = [2, 32], strides = [1, 1]} : vector<2x128xf32> to vector<2x32xf32>
    %130 = arith.negf %129 : vector<2x32xf32>
    %131 = math.exp %130 : vector<2x32xf32>
    %cst_32 = arith.constant 1.000000e+00 : f32
    %132 = vector.broadcast %cst_32 : f32 to vector<2x32xf32>
    %133 = arith.addf %132, %131 : vector<2x32xf32>
    %134 = arith.divf %132, %133 : vector<2x32xf32>
    %135 = vector.extract_strided_slice %128 {offsets = [0, 32], sizes = [2, 32], strides = [1, 1]} : vector<2x128xf32> to vector<2x32xf32>
    %136 = arith.negf %135 : vector<2x32xf32>
    %137 = math.exp %136 : vector<2x32xf32>
    %cst_33 = arith.constant 1.000000e+00 : f32
    %138 = vector.broadcast %cst_33 : f32 to vector<2x32xf32>
    %139 = arith.addf %138, %137 : vector<2x32xf32>
    %140 = arith.divf %138, %139 : vector<2x32xf32>
    %141 = vector.extract_strided_slice %128 {offsets = [0, 64], sizes = [2, 32], strides = [1, 1]} : vector<2x128xf32> to vector<2x32xf32>
    %142 = math.tanh %141 : vector<2x32xf32>
    %143 = vector.extract_strided_slice %128 {offsets = [0, 96], sizes = [2, 32], strides = [1, 1]} : vector<2x128xf32> to vector<2x32xf32>
    %144 = arith.negf %143 : vector<2x32xf32>
    %145 = math.exp %144 : vector<2x32xf32>
    %cst_34 = arith.constant 1.000000e+00 : f32
    %146 = vector.broadcast %cst_34 : f32 to vector<2x32xf32>
    %147 = arith.addf %146, %145 : vector<2x32xf32>
    %148 = arith.divf %146, %147 : vector<2x32xf32>
    %149 = arith.mulf %140, %95 : vector<2x32xf32>
    %150 = arith.mulf %134, %142 : vector<2x32xf32>
    %151 = arith.addf %149, %150 : vector<2x32xf32>
    %152 = math.tanh %151 : vector<2x32xf32>
    %153 = arith.mulf %148, %152 : vector<2x32xf32>
    %154 = vector.extract_strided_slice %12 {offsets = [10, 0], sizes = [2, 128], strides = [1, 1]} : vector<16x128xf32> to vector<2x128xf32>
    %cst_35 = arith.constant dense<0.000000e+00> : vector<2x128xf32>
    %155 = tpu.matmul %125, %5, %cst_35 {dimension_numbers = #tpu.dot_dimension_numbers<[1], [0], [0], [1], [0, 0, 1, 1], [], []>} : vector<2x32xf32>, vector<32x128xf32>, vector<2x128xf32> -> vector<2x128xf32>
    %156 = arith.addf %154, %155 : vector<2x128xf32>
    %157 = vector.extract_strided_slice %156 {offsets = [0, 0], sizes = [2, 32], strides = [1, 1]} : vector<2x128xf32> to vector<2x32xf32>
    %158 = arith.negf %157 : vector<2x32xf32>
    %159 = math.exp %158 : vector<2x32xf32>
    %cst_36 = arith.constant 1.000000e+00 : f32
    %160 = vector.broadcast %cst_36 : f32 to vector<2x32xf32>
    %161 = arith.addf %160, %159 : vector<2x32xf32>
    %162 = arith.divf %160, %161 : vector<2x32xf32>
    %163 = vector.extract_strided_slice %156 {offsets = [0, 32], sizes = [2, 32], strides = [1, 1]} : vector<2x128xf32> to vector<2x32xf32>
    %164 = arith.negf %163 : vector<2x32xf32>
    %165 = math.exp %164 : vector<2x32xf32>
    %cst_37 = arith.constant 1.000000e+00 : f32
    %166 = vector.broadcast %cst_37 : f32 to vector<2x32xf32>
    %167 = arith.addf %166, %165 : vector<2x32xf32>
    %168 = arith.divf %166, %167 : vector<2x32xf32>
    %169 = vector.extract_strided_slice %156 {offsets = [0, 64], sizes = [2, 32], strides = [1, 1]} : vector<2x128xf32> to vector<2x32xf32>
    %170 = math.tanh %169 : vector<2x32xf32>
    %171 = vector.extract_strided_slice %156 {offsets = [0, 96], sizes = [2, 32], strides = [1, 1]} : vector<2x128xf32> to vector<2x32xf32>
    %172 = arith.negf %171 : vector<2x32xf32>
    %173 = math.exp %172 : vector<2x32xf32>
    %cst_38 = arith.constant 1.000000e+00 : f32
    %174 = vector.broadcast %cst_38 : f32 to vector<2x32xf32>
    %175 = arith.addf %174, %173 : vector<2x32xf32>
    %176 = arith.divf %174, %175 : vector<2x32xf32>
    %177 = arith.mulf %168, %123 : vector<2x32xf32>
    %178 = arith.mulf %162, %170 : vector<2x32xf32>
    %179 = arith.addf %177, %178 : vector<2x32xf32>
    %180 = math.tanh %179 : vector<2x32xf32>
    %181 = arith.mulf %176, %180 : vector<2x32xf32>
    %182 = vector.extract_strided_slice %9 {offsets = [6, 0], sizes = [2, 128], strides = [1, 1]} : vector<16x128xf32> to vector<2x128xf32>
    %cst_39 = arith.constant dense<0.000000e+00> : vector<2x128xf32>
    %183 = tpu.matmul %153, %2, %cst_39 {dimension_numbers = #tpu.dot_dimension_numbers<[1], [0], [0], [1], [0, 0, 1, 1], [], []>} : vector<2x32xf32>, vector<32x128xf32>, vector<2x128xf32> -> vector<2x128xf32>
    %184 = arith.addf %182, %183 : vector<2x128xf32>
    %185 = vector.extract_strided_slice %184 {offsets = [0, 0], sizes = [2, 32], strides = [1, 1]} : vector<2x128xf32> to vector<2x32xf32>
    %186 = arith.negf %185 : vector<2x32xf32>
    %187 = math.exp %186 : vector<2x32xf32>
    %cst_40 = arith.constant 1.000000e+00 : f32
    %188 = vector.broadcast %cst_40 : f32 to vector<2x32xf32>
    %189 = arith.addf %188, %187 : vector<2x32xf32>
    %190 = arith.divf %188, %189 : vector<2x32xf32>
    %191 = vector.extract_strided_slice %184 {offsets = [0, 32], sizes = [2, 32], strides = [1, 1]} : vector<2x128xf32> to vector<2x32xf32>
    %192 = arith.negf %191 : vector<2x32xf32>
    %193 = math.exp %192 : vector<2x32xf32>
    %cst_41 = arith.constant 1.000000e+00 : f32
    %194 = vector.broadcast %cst_41 : f32 to vector<2x32xf32>
    %195 = arith.addf %194, %193 : vector<2x32xf32>
    %196 = arith.divf %194, %195 : vector<2x32xf32>
    %197 = vector.extract_strided_slice %184 {offsets = [0, 64], sizes = [2, 32], strides = [1, 1]} : vector<2x128xf32> to vector<2x32xf32>
    %198 = math.tanh %197 : vector<2x32xf32>
    %199 = vector.extract_strided_slice %184 {offsets = [0, 96], sizes = [2, 32], strides = [1, 1]} : vector<2x128xf32> to vector<2x32xf32>
    %200 = arith.negf %199 : vector<2x32xf32>
    %201 = math.exp %200 : vector<2x32xf32>
    %cst_42 = arith.constant 1.000000e+00 : f32
    %202 = vector.broadcast %cst_42 : f32 to vector<2x32xf32>
    %203 = arith.addf %202, %201 : vector<2x32xf32>
    %204 = arith.divf %202, %203 : vector<2x32xf32>
    %205 = arith.mulf %196, %151 : vector<2x32xf32>
    %206 = arith.mulf %190, %198 : vector<2x32xf32>
    %207 = arith.addf %205, %206 : vector<2x32xf32>
    %208 = math.tanh %207 : vector<2x32xf32>
    %209 = arith.mulf %204, %208 : vector<2x32xf32>
    %210 = vector.extract_strided_slice %12 {offsets = [8, 0], sizes = [2, 128], strides = [1, 1]} : vector<16x128xf32> to vector<2x128xf32>
    %cst_43 = arith.constant dense<0.000000e+00> : vector<2x128xf32>
    %211 = tpu.matmul %181, %5, %cst_43 {dimension_numbers = #tpu.dot_dimension_numbers<[1], [0], [0], [1], [0, 0, 1, 1], [], []>} : vector<2x32xf32>, vector<32x128xf32>, vector<2x128xf32> -> vector<2x128xf32>
    %212 = arith.addf %210, %211 : vector<2x128xf32>
    %213 = vector.extract_strided_slice %212 {offsets = [0, 0], sizes = [2, 32], strides = [1, 1]} : vector<2x128xf32> to vector<2x32xf32>
    %214 = arith.negf %213 : vector<2x32xf32>
    %215 = math.exp %214 : vector<2x32xf32>
    %cst_44 = arith.constant 1.000000e+00 : f32
    %216 = vector.broadcast %cst_44 : f32 to vector<2x32xf32>
    %217 = arith.addf %216, %215 : vector<2x32xf32>
    %218 = arith.divf %216, %217 : vector<2x32xf32>
    %219 = vector.extract_strided_slice %212 {offsets = [0, 32], sizes = [2, 32], strides = [1, 1]} : vector<2x128xf32> to vector<2x32xf32>
    %220 = arith.negf %219 : vector<2x32xf32>
    %221 = math.exp %220 : vector<2x32xf32>
    %cst_45 = arith.constant 1.000000e+00 : f32
    %222 = vector.broadcast %cst_45 : f32 to vector<2x32xf32>
    %223 = arith.addf %222, %221 : vector<2x32xf32>
    %224 = arith.divf %222, %223 : vector<2x32xf32>
    %225 = vector.extract_strided_slice %212 {offsets = [0, 64], sizes = [2, 32], strides = [1, 1]} : vector<2x128xf32> to vector<2x32xf32>
    %226 = math.tanh %225 : vector<2x32xf32>
    %227 = vector.extract_strided_slice %212 {offsets = [0, 96], sizes = [2, 32], strides = [1, 1]} : vector<2x128xf32> to vector<2x32xf32>
    %228 = arith.negf %227 : vector<2x32xf32>
    %229 = math.exp %228 : vector<2x32xf32>
    %cst_46 = arith.constant 1.000000e+00 : f32
    %230 = vector.broadcast %cst_46 : f32 to vector<2x32xf32>
    %231 = arith.addf %230, %229 : vector<2x32xf32>
    %232 = arith.divf %230, %231 : vector<2x32xf32>
    %233 = arith.mulf %224, %179 : vector<2x32xf32>
    %234 = arith.mulf %218, %226 : vector<2x32xf32>
    %235 = arith.addf %233, %234 : vector<2x32xf32>
    %236 = math.tanh %235 : vector<2x32xf32>
    %237 = arith.mulf %232, %236 : vector<2x32xf32>
    %238 = vector.extract_strided_slice %9 {offsets = [8, 0], sizes = [2, 128], strides = [1, 1]} : vector<16x128xf32> to vector<2x128xf32>
    %cst_47 = arith.constant dense<0.000000e+00> : vector<2x128xf32>
    %239 = tpu.matmul %209, %2, %cst_47 {dimension_numbers = #tpu.dot_dimension_numbers<[1], [0], [0], [1], [0, 0, 1, 1], [], []>} : vector<2x32xf32>, vector<32x128xf32>, vector<2x128xf32> -> vector<2x128xf32>
    %240 = arith.addf %238, %239 : vector<2x128xf32>
    %241 = vector.extract_strided_slice %240 {offsets = [0, 0], sizes = [2, 32], strides = [1, 1]} : vector<2x128xf32> to vector<2x32xf32>
    %242 = arith.negf %241 : vector<2x32xf32>
    %243 = math.exp %242 : vector<2x32xf32>
    %cst_48 = arith.constant 1.000000e+00 : f32
    %244 = vector.broadcast %cst_48 : f32 to vector<2x32xf32>
    %245 = arith.addf %244, %243 : vector<2x32xf32>
    %246 = arith.divf %244, %245 : vector<2x32xf32>
    %247 = vector.extract_strided_slice %240 {offsets = [0, 32], sizes = [2, 32], strides = [1, 1]} : vector<2x128xf32> to vector<2x32xf32>
    %248 = arith.negf %247 : vector<2x32xf32>
    %249 = math.exp %248 : vector<2x32xf32>
    %cst_49 = arith.constant 1.000000e+00 : f32
    %250 = vector.broadcast %cst_49 : f32 to vector<2x32xf32>
    %251 = arith.addf %250, %249 : vector<2x32xf32>
    %252 = arith.divf %250, %251 : vector<2x32xf32>
    %253 = vector.extract_strided_slice %240 {offsets = [0, 64], sizes = [2, 32], strides = [1, 1]} : vector<2x128xf32> to vector<2x32xf32>
    %254 = math.tanh %253 : vector<2x32xf32>
    %255 = vector.extract_strided_slice %240 {offsets = [0, 96], sizes = [2, 32], strides = [1, 1]} : vector<2x128xf32> to vector<2x32xf32>
    %256 = arith.negf %255 : vector<2x32xf32>
    %257 = math.exp %256 : vector<2x32xf32>
    %cst_50 = arith.constant 1.000000e+00 : f32
    %258 = vector.broadcast %cst_50 : f32 to vector<2x32xf32>
    %259 = arith.addf %258, %257 : vector<2x32xf32>
    %260 = arith.divf %258, %259 : vector<2x32xf32>
    %261 = arith.mulf %252, %207 : vector<2x32xf32>
    %262 = arith.mulf %246, %254 : vector<2x32xf32>
    %263 = arith.addf %261, %262 : vector<2x32xf32>
    %264 = math.tanh %263 : vector<2x32xf32>
    %265 = arith.mulf %260, %264 : vector<2x32xf32>
    %266 = vector.extract_strided_slice %12 {offsets = [6, 0], sizes = [2, 128], strides = [1, 1]} : vector<16x128xf32> to vector<2x128xf32>
    %cst_51 = arith.constant dense<0.000000e+00> : vector<2x128xf32>
    %267 = tpu.matmul %237, %5, %cst_51 {dimension_numbers = #tpu.dot_dimension_numbers<[1], [0], [0], [1], [0, 0, 1, 1], [], []>} : vector<2x32xf32>, vector<32x128xf32>, vector<2x128xf32> -> vector<2x128xf32>
    %268 = arith.addf %266, %267 : vector<2x128xf32>
    %269 = vector.extract_strided_slice %268 {offsets = [0, 0], sizes = [2, 32], strides = [1, 1]} : vector<2x128xf32> to vector<2x32xf32>
    %270 = arith.negf %269 : vector<2x32xf32>
    %271 = math.exp %270 : vector<2x32xf32>
    %cst_52 = arith.constant 1.000000e+00 : f32
    %272 = vector.broadcast %cst_52 : f32 to vector<2x32xf32>
    %273 = arith.addf %272, %271 : vector<2x32xf32>
    %274 = arith.divf %272, %273 : vector<2x32xf32>
    %275 = vector.extract_strided_slice %268 {offsets = [0, 32], sizes = [2, 32], strides = [1, 1]} : vector<2x128xf32> to vector<2x32xf32>
    %276 = arith.negf %275 : vector<2x32xf32>
    %277 = math.exp %276 : vector<2x32xf32>
    %cst_53 = arith.constant 1.000000e+00 : f32
    %278 = vector.broadcast %cst_53 : f32 to vector<2x32xf32>
    %279 = arith.addf %278, %277 : vector<2x32xf32>
    %280 = arith.divf %278, %279 : vector<2x32xf32>
    %281 = vector.extract_strided_slice %268 {offsets = [0, 64], sizes = [2, 32], strides = [1, 1]} : vector<2x128xf32> to vector<2x32xf32>
    %282 = math.tanh %281 : vector<2x32xf32>
    %283 = vector.extract_strided_slice %268 {offsets = [0, 96], sizes = [2, 32], strides = [1, 1]} : vector<2x128xf32> to vector<2x32xf32>
    %284 = arith.negf %283 : vector<2x32xf32>
    %285 = math.exp %284 : vector<2x32xf32>
    %cst_54 = arith.constant 1.000000e+00 : f32
    %286 = vector.broadcast %cst_54 : f32 to vector<2x32xf32>
    %287 = arith.addf %286, %285 : vector<2x32xf32>
    %288 = arith.divf %286, %287 : vector<2x32xf32>
    %289 = arith.mulf %280, %235 : vector<2x32xf32>
    %290 = arith.mulf %274, %282 : vector<2x32xf32>
    %291 = arith.addf %289, %290 : vector<2x32xf32>
    %292 = math.tanh %291 : vector<2x32xf32>
    %293 = arith.mulf %288, %292 : vector<2x32xf32>
    %294 = vector.extract_strided_slice %9 {offsets = [10, 0], sizes = [2, 128], strides = [1, 1]} : vector<16x128xf32> to vector<2x128xf32>
    %cst_55 = arith.constant dense<0.000000e+00> : vector<2x128xf32>
    %295 = tpu.matmul %265, %2, %cst_55 {dimension_numbers = #tpu.dot_dimension_numbers<[1], [0], [0], [1], [0, 0, 1, 1], [], []>} : vector<2x32xf32>, vector<32x128xf32>, vector<2x128xf32> -> vector<2x128xf32>
    %296 = arith.addf %294, %295 : vector<2x128xf32>
    %297 = vector.extract_strided_slice %296 {offsets = [0, 0], sizes = [2, 32], strides = [1, 1]} : vector<2x128xf32> to vector<2x32xf32>
    %298 = arith.negf %297 : vector<2x32xf32>
    %299 = math.exp %298 : vector<2x32xf32>
    %cst_56 = arith.constant 1.000000e+00 : f32
    %300 = vector.broadcast %cst_56 : f32 to vector<2x32xf32>
    %301 = arith.addf %300, %299 : vector<2x32xf32>
    %302 = arith.divf %300, %301 : vector<2x32xf32>
    %303 = vector.extract_strided_slice %296 {offsets = [0, 32], sizes = [2, 32], strides = [1, 1]} : vector<2x128xf32> to vector<2x32xf32>
    %304 = arith.negf %303 : vector<2x32xf32>
    %305 = math.exp %304 : vector<2x32xf32>
    %cst_57 = arith.constant 1.000000e+00 : f32
    %306 = vector.broadcast %cst_57 : f32 to vector<2x32xf32>
    %307 = arith.addf %306, %305 : vector<2x32xf32>
    %308 = arith.divf %306, %307 : vector<2x32xf32>
    %309 = vector.extract_strided_slice %296 {offsets = [0, 64], sizes = [2, 32], strides = [1, 1]} : vector<2x128xf32> to vector<2x32xf32>
    %310 = math.tanh %309 : vector<2x32xf32>
    %311 = vector.extract_strided_slice %296 {offsets = [0, 96], sizes = [2, 32], strides = [1, 1]} : vector<2x128xf32> to vector<2x32xf32>
    %312 = arith.negf %311 : vector<2x32xf32>
    %313 = math.exp %312 : vector<2x32xf32>
    %cst_58 = arith.constant 1.000000e+00 : f32
    %314 = vector.broadcast %cst_58 : f32 to vector<2x32xf32>
    %315 = arith.addf %314, %313 : vector<2x32xf32>
    %316 = arith.divf %314, %315 : vector<2x32xf32>
    %317 = arith.mulf %308, %263 : vector<2x32xf32>
    %318 = arith.mulf %302, %310 : vector<2x32xf32>
    %319 = arith.addf %317, %318 : vector<2x32xf32>
    %320 = math.tanh %319 : vector<2x32xf32>
    %321 = arith.mulf %316, %320 : vector<2x32xf32>
    %322 = vector.extract_strided_slice %12 {offsets = [4, 0], sizes = [2, 128], strides = [1, 1]} : vector<16x128xf32> to vector<2x128xf32>
    %cst_59 = arith.constant dense<0.000000e+00> : vector<2x128xf32>
    %323 = tpu.matmul %293, %5, %cst_59 {dimension_numbers = #tpu.dot_dimension_numbers<[1], [0], [0], [1], [0, 0, 1, 1], [], []>} : vector<2x32xf32>, vector<32x128xf32>, vector<2x128xf32> -> vector<2x128xf32>
    %324 = arith.addf %322, %323 : vector<2x128xf32>
    %325 = vector.extract_strided_slice %324 {offsets = [0, 0], sizes = [2, 32], strides = [1, 1]} : vector<2x128xf32> to vector<2x32xf32>
    %326 = arith.negf %325 : vector<2x32xf32>
    %327 = math.exp %326 : vector<2x32xf32>
    %cst_60 = arith.constant 1.000000e+00 : f32
    %328 = vector.broadcast %cst_60 : f32 to vector<2x32xf32>
    %329 = arith.addf %328, %327 : vector<2x32xf32>
    %330 = arith.divf %328, %329 : vector<2x32xf32>
    %331 = vector.extract_strided_slice %324 {offsets = [0, 32], sizes = [2, 32], strides = [1, 1]} : vector<2x128xf32> to vector<2x32xf32>
    %332 = arith.negf %331 : vector<2x32xf32>
    %333 = math.exp %332 : vector<2x32xf32>
    %cst_61 = arith.constant 1.000000e+00 : f32
    %334 = vector.broadcast %cst_61 : f32 to vector<2x32xf32>
    %335 = arith.addf %334, %333 : vector<2x32xf32>
    %336 = arith.divf %334, %335 : vector<2x32xf32>
    %337 = vector.extract_strided_slice %324 {offsets = [0, 64], sizes = [2, 32], strides = [1, 1]} : vector<2x128xf32> to vector<2x32xf32>
    %338 = math.tanh %337 : vector<2x32xf32>
    %339 = vector.extract_strided_slice %324 {offsets = [0, 96], sizes = [2, 32], strides = [1, 1]} : vector<2x128xf32> to vector<2x32xf32>
    %340 = arith.negf %339 : vector<2x32xf32>
    %341 = math.exp %340 : vector<2x32xf32>
    %cst_62 = arith.constant 1.000000e+00 : f32
    %342 = vector.broadcast %cst_62 : f32 to vector<2x32xf32>
    %343 = arith.addf %342, %341 : vector<2x32xf32>
    %344 = arith.divf %342, %343 : vector<2x32xf32>
    %345 = arith.mulf %336, %291 : vector<2x32xf32>
    %346 = arith.mulf %330, %338 : vector<2x32xf32>
    %347 = arith.addf %345, %346 : vector<2x32xf32>
    %348 = math.tanh %347 : vector<2x32xf32>
    %349 = arith.mulf %344, %348 : vector<2x32xf32>
    %350 = vector.extract_strided_slice %9 {offsets = [12, 0], sizes = [2, 128], strides = [1, 1]} : vector<16x128xf32> to vector<2x128xf32>
    %cst_63 = arith.constant dense<0.000000e+00> : vector<2x128xf32>
    %351 = tpu.matmul %321, %2, %cst_63 {dimension_numbers = #tpu.dot_dimension_numbers<[1], [0], [0], [1], [0, 0, 1, 1], [], []>} : vector<2x32xf32>, vector<32x128xf32>, vector<2x128xf32> -> vector<2x128xf32>
    %352 = arith.addf %350, %351 : vector<2x128xf32>
    %353 = vector.extract_strided_slice %352 {offsets = [0, 0], sizes = [2, 32], strides = [1, 1]} : vector<2x128xf32> to vector<2x32xf32>
    %354 = arith.negf %353 : vector<2x32xf32>
    %355 = math.exp %354 : vector<2x32xf32>
    %cst_64 = arith.constant 1.000000e+00 : f32
    %356 = vector.broadcast %cst_64 : f32 to vector<2x32xf32>
    %357 = arith.addf %356, %355 : vector<2x32xf32>
    %358 = arith.divf %356, %357 : vector<2x32xf32>
    %359 = vector.extract_strided_slice %352 {offsets = [0, 32], sizes = [2, 32], strides = [1, 1]} : vector<2x128xf32> to vector<2x32xf32>
    %360 = arith.negf %359 : vector<2x32xf32>
    %361 = math.exp %360 : vector<2x32xf32>
    %cst_65 = arith.constant 1.000000e+00 : f32
    %362 = vector.broadcast %cst_65 : f32 to vector<2x32xf32>
    %363 = arith.addf %362, %361 : vector<2x32xf32>
    %364 = arith.divf %362, %363 : vector<2x32xf32>
    %365 = vector.extract_strided_slice %352 {offsets = [0, 64], sizes = [2, 32], strides = [1, 1]} : vector<2x128xf32> to vector<2x32xf32>
    %366 = math.tanh %365 : vector<2x32xf32>
    %367 = vector.extract_strided_slice %352 {offsets = [0, 96], sizes = [2, 32], strides = [1, 1]} : vector<2x128xf32> to vector<2x32xf32>
    %368 = arith.negf %367 : vector<2x32xf32>
    %369 = math.exp %368 : vector<2x32xf32>
    %cst_66 = arith.constant 1.000000e+00 : f32
    %370 = vector.broadcast %cst_66 : f32 to vector<2x32xf32>
    %371 = arith.addf %370, %369 : vector<2x32xf32>
    %372 = arith.divf %370, %371 : vector<2x32xf32>
    %373 = arith.mulf %364, %319 : vector<2x32xf32>
    %374 = arith.mulf %358, %366 : vector<2x32xf32>
    %375 = arith.addf %373, %374 : vector<2x32xf32>
    %376 = math.tanh %375 : vector<2x32xf32>
    %377 = arith.mulf %372, %376 : vector<2x32xf32>
    %378 = vector.extract_strided_slice %12 {offsets = [2, 0], sizes = [2, 128], strides = [1, 1]} : vector<16x128xf32> to vector<2x128xf32>
    %cst_67 = arith.constant dense<0.000000e+00> : vector<2x128xf32>
    %379 = tpu.matmul %349, %5, %cst_67 {dimension_numbers = #tpu.dot_dimension_numbers<[1], [0], [0], [1], [0, 0, 1, 1], [], []>} : vector<2x32xf32>, vector<32x128xf32>, vector<2x128xf32> -> vector<2x128xf32>
    %380 = arith.addf %378, %379 : vector<2x128xf32>
    %381 = vector.extract_strided_slice %380 {offsets = [0, 0], sizes = [2, 32], strides = [1, 1]} : vector<2x128xf32> to vector<2x32xf32>
    %382 = arith.negf %381 : vector<2x32xf32>
    %383 = math.exp %382 : vector<2x32xf32>
    %cst_68 = arith.constant 1.000000e+00 : f32
    %384 = vector.broadcast %cst_68 : f32 to vector<2x32xf32>
    %385 = arith.addf %384, %383 : vector<2x32xf32>
    %386 = arith.divf %384, %385 : vector<2x32xf32>
    %387 = vector.extract_strided_slice %380 {offsets = [0, 32], sizes = [2, 32], strides = [1, 1]} : vector<2x128xf32> to vector<2x32xf32>
    %388 = arith.negf %387 : vector<2x32xf32>
    %389 = math.exp %388 : vector<2x32xf32>
    %cst_69 = arith.constant 1.000000e+00 : f32
    %390 = vector.broadcast %cst_69 : f32 to vector<2x32xf32>
    %391 = arith.addf %390, %389 : vector<2x32xf32>
    %392 = arith.divf %390, %391 : vector<2x32xf32>
    %393 = vector.extract_strided_slice %380 {offsets = [0, 64], sizes = [2, 32], strides = [1, 1]} : vector<2x128xf32> to vector<2x32xf32>
    %394 = math.tanh %393 : vector<2x32xf32>
    %395 = vector.extract_strided_slice %380 {offsets = [0, 96], sizes = [2, 32], strides = [1, 1]} : vector<2x128xf32> to vector<2x32xf32>
    %396 = arith.negf %395 : vector<2x32xf32>
    %397 = math.exp %396 : vector<2x32xf32>
    %cst_70 = arith.constant 1.000000e+00 : f32
    %398 = vector.broadcast %cst_70 : f32 to vector<2x32xf32>
    %399 = arith.addf %398, %397 : vector<2x32xf32>
    %400 = arith.divf %398, %399 : vector<2x32xf32>
    %401 = arith.mulf %392, %347 : vector<2x32xf32>
    %402 = arith.mulf %386, %394 : vector<2x32xf32>
    %403 = arith.addf %401, %402 : vector<2x32xf32>
    %404 = math.tanh %403 : vector<2x32xf32>
    %405 = arith.mulf %400, %404 : vector<2x32xf32>
    %406 = vector.extract_strided_slice %9 {offsets = [14, 0], sizes = [2, 128], strides = [1, 1]} : vector<16x128xf32> to vector<2x128xf32>
    %cst_71 = arith.constant dense<0.000000e+00> : vector<2x128xf32>
    %407 = tpu.matmul %377, %2, %cst_71 {dimension_numbers = #tpu.dot_dimension_numbers<[1], [0], [0], [1], [0, 0, 1, 1], [], []>} : vector<2x32xf32>, vector<32x128xf32>, vector<2x128xf32> -> vector<2x128xf32>
    %408 = arith.addf %406, %407 : vector<2x128xf32>
    %409 = vector.extract_strided_slice %408 {offsets = [0, 0], sizes = [2, 32], strides = [1, 1]} : vector<2x128xf32> to vector<2x32xf32>
    %410 = arith.negf %409 : vector<2x32xf32>
    %411 = math.exp %410 : vector<2x32xf32>
    %cst_72 = arith.constant 1.000000e+00 : f32
    %412 = vector.broadcast %cst_72 : f32 to vector<2x32xf32>
    %413 = arith.addf %412, %411 : vector<2x32xf32>
    %414 = arith.divf %412, %413 : vector<2x32xf32>
    %415 = vector.extract_strided_slice %408 {offsets = [0, 32], sizes = [2, 32], strides = [1, 1]} : vector<2x128xf32> to vector<2x32xf32>
    %416 = arith.negf %415 : vector<2x32xf32>
    %417 = math.exp %416 : vector<2x32xf32>
    %cst_73 = arith.constant 1.000000e+00 : f32
    %418 = vector.broadcast %cst_73 : f32 to vector<2x32xf32>
    %419 = arith.addf %418, %417 : vector<2x32xf32>
    %420 = arith.divf %418, %419 : vector<2x32xf32>
    %421 = vector.extract_strided_slice %408 {offsets = [0, 64], sizes = [2, 32], strides = [1, 1]} : vector<2x128xf32> to vector<2x32xf32>
    %422 = math.tanh %421 : vector<2x32xf32>
    %423 = vector.extract_strided_slice %408 {offsets = [0, 96], sizes = [2, 32], strides = [1, 1]} : vector<2x128xf32> to vector<2x32xf32>
    %424 = arith.negf %423 : vector<2x32xf32>
    %425 = math.exp %424 : vector<2x32xf32>
    %cst_74 = arith.constant 1.000000e+00 : f32
    %426 = vector.broadcast %cst_74 : f32 to vector<2x32xf32>
    %427 = arith.addf %426, %425 : vector<2x32xf32>
    %428 = arith.divf %426, %427 : vector<2x32xf32>
    %429 = arith.mulf %420, %375 : vector<2x32xf32>
    %430 = arith.mulf %414, %422 : vector<2x32xf32>
    %431 = arith.addf %429, %430 : vector<2x32xf32>
    %432 = math.tanh %431 : vector<2x32xf32>
    %433 = arith.mulf %428, %432 : vector<2x32xf32>
    %434 = vector.extract_strided_slice %12 {offsets = [0, 0], sizes = [2, 128], strides = [1, 1]} : vector<16x128xf32> to vector<2x128xf32>
    %cst_75 = arith.constant dense<0.000000e+00> : vector<2x128xf32>
    %435 = tpu.matmul %405, %5, %cst_75 {dimension_numbers = #tpu.dot_dimension_numbers<[1], [0], [0], [1], [0, 0, 1, 1], [], []>} : vector<2x32xf32>, vector<32x128xf32>, vector<2x128xf32> -> vector<2x128xf32>
    %436 = arith.addf %434, %435 : vector<2x128xf32>
    %437 = vector.extract_strided_slice %436 {offsets = [0, 0], sizes = [2, 32], strides = [1, 1]} : vector<2x128xf32> to vector<2x32xf32>
    %438 = arith.negf %437 : vector<2x32xf32>
    %439 = math.exp %438 : vector<2x32xf32>
    %cst_76 = arith.constant 1.000000e+00 : f32
    %440 = vector.broadcast %cst_76 : f32 to vector<2x32xf32>
    %441 = arith.addf %440, %439 : vector<2x32xf32>
    %442 = arith.divf %440, %441 : vector<2x32xf32>
    %443 = vector.extract_strided_slice %436 {offsets = [0, 32], sizes = [2, 32], strides = [1, 1]} : vector<2x128xf32> to vector<2x32xf32>
    %444 = arith.negf %443 : vector<2x32xf32>
    %445 = math.exp %444 : vector<2x32xf32>
    %cst_77 = arith.constant 1.000000e+00 : f32
    %446 = vector.broadcast %cst_77 : f32 to vector<2x32xf32>
    %447 = arith.addf %446, %445 : vector<2x32xf32>
    %448 = arith.divf %446, %447 : vector<2x32xf32>
    %449 = vector.extract_strided_slice %436 {offsets = [0, 64], sizes = [2, 32], strides = [1, 1]} : vector<2x128xf32> to vector<2x32xf32>
    %450 = math.tanh %449 : vector<2x32xf32>
    %451 = vector.extract_strided_slice %436 {offsets = [0, 96], sizes = [2, 32], strides = [1, 1]} : vector<2x128xf32> to vector<2x32xf32>
    %452 = arith.negf %451 : vector<2x32xf32>
    %453 = math.exp %452 : vector<2x32xf32>
    %cst_78 = arith.constant 1.000000e+00 : f32
    %454 = vector.broadcast %cst_78 : f32 to vector<2x32xf32>
    %455 = arith.addf %454, %453 : vector<2x32xf32>
    %456 = arith.divf %454, %455 : vector<2x32xf32>
    %457 = arith.mulf %448, %403 : vector<2x32xf32>
    %458 = arith.mulf %442, %450 : vector<2x32xf32>
    %459 = arith.addf %457, %458 : vector<2x32xf32>
    %460 = math.tanh %459 : vector<2x32xf32>
    %461 = arith.mulf %456, %460 : vector<2x32xf32>
    %462 = tpu.concatenate %41, %461, %433, %69 in 1 : vector<2x32xf32>, vector<2x32xf32>, vector<2x32xf32>, vector<2x32xf32> -> vector<2x128xf32>
    %c0_79 = arith.constant 0 : index
    %c0_80 = arith.constant 0 : index
    %463 = vector.load %arg7[%c0_79, %c0_80] : memref<128x2xf32, #tpu.memory_space<vmem>>, vector<128x2xf32>
    %cst_81 = arith.constant dense<0.000000e+00> : vector<2x2xf32>
    %464 = tpu.matmul %462, %463, %cst_81 {dimension_numbers = #tpu.dot_dimension_numbers<[1], [0], [0], [1], [0, 0, 1, 1], [], []>} : vector<2x128xf32>, vector<128x2xf32>, vector<2x2xf32> -> vector<2x2xf32>
    %c0_82 = arith.constant 0 : index
    %c0_83 = arith.constant 0 : index
    %465 = vector.load %arg8[%c0_82, %c0_83] : memref<1x2xf32, #tpu.memory_space<vmem>>, vector<1x2xf32>
    %466 = vector.broadcast %465 : vector<1x2xf32> to vector<2x2xf32>
    %467 = arith.addf %464, %466 : vector<2x2xf32>
    %c0_84 = arith.constant 0 : index
    %c0_85 = arith.constant 0 : index
    %468 = vector.load %arg9[%c0_84, %c0_85] : memref<2x2xf32, #tpu.memory_space<vmem>>, vector<2x2xf32>
    tpu.vector_store %arg9[%c0_84, %c0_85], %467 {strides = array<i32>} : memref<2x2xf32, #tpu.memory_space<vmem>>, vector<2x2xf32>,
    return
  }
}

</mosaic_0001>

<llo_original>
// kernel: sentiment_net_forward.2
$region0: #{sentiment_net_forward.2}
  #allocation0 [shape = 'u32[]', space=smem, size = 0x4, offset = 0x4, fixed_abs, tag = 'smem constant byte address 0x4 - core index']
  #allocation1 [shape = 'u32[144,128]{1,0:T(1,128)}', space=vmem, size = 0x12000, scoped, tag = 'internal scratch']
  %s0 = inlined_call_operand.vmem [shape: f32[16,32], index: 0, kind: input, shape index: {}]
  %s1 = inlined_call_operand.vmem [shape: f32[32,128], index: 1, kind: input, shape index: {}]
  %s2 = inlined_call_operand.vmem [shape: f32[32,128], index: 2, kind: input, shape index: {}]
  %s3 = inlined_call_operand.vmem [shape: f32[1,128], index: 3, kind: input, shape index: {}]
  %s4 = inlined_call_operand.vmem [shape: f32[32,128], index: 4, kind: input, shape index: {}]
  %s5 = inlined_call_operand.vmem [shape: f32[32,128], index: 5, kind: input, shape index: {}]
  %s6 = inlined_call_operand.vmem [shape: f32[1,128], index: 6, kind: input, shape index: {}]
  %s7 = inlined_call_operand.vmem [shape: f32[8,2,64], index: 7, kind: output, shape index: {}]
  %s8 = sld [smem:[#allocation0]]
  $region38: #{sentiment_net_forward.2} parent=0
    _
  %s10 = ssub.s32 1, %s8
  %s11 = scalar_select 0, %s10, %s8
  // Predicated region
  $region2: #{sentiment_net_forward.2} parent=0 // pred_check
    _
  $region3: #{sentiment_net_forward.2} parent=0 // pred_check_branch
    %13 = sbr.rel (0) target = $region5
  $region4: #{sentiment_net_forward.2} parent=0 // pred_region
    _
  $region5: #{sentiment_net_forward.2} parent=0 // pred_fallthru
    _
  // Predicated region
  $region6: #{sentiment_net_forward.2} parent=0 // pred_check
    _
  $region7: #{sentiment_net_forward.2} parent=0 // pred_check_branch
    %15 = sbr.rel (0) target = $region9
  $region8: #{sentiment_net_forward.2} parent=0 // pred_region
    _
  $region9: #{sentiment_net_forward.2} parent=0 // pred_fallthru
    _
  // Predicated region
  $region10: #{sentiment_net_forward.2} parent=0 // pred_check
    _
  $region11: #{sentiment_net_forward.2} parent=0 // pred_check_branch
    %17 = sbr.rel (0) target = $region13
  $region12: #{sentiment_net_forward.2} parent=0 // pred_region
    _
  $region13: #{sentiment_net_forward.2} parent=0 // pred_fallthru
    _
  // Predicated region
  $region14: #{sentiment_net_forward.2} parent=0 // pred_check
    _
  $region15: #{sentiment_net_forward.2} parent=0 // pred_check_branch
    %19 = sbr.rel (0) target = $region17
  $region16: #{sentiment_net_forward.2} parent=0 // pred_region
    _
  $region17: #{sentiment_net_forward.2} parent=0 // pred_fallthru
    _
  // Predicated region
  $region18: #{sentiment_net_forward.2} parent=0 // pred_check
    _
  $region19: #{sentiment_net_forward.2} parent=0 // pred_check_branch
    %21 = sbr.rel (0) target = $region21
  $region20: #{sentiment_net_forward.2} parent=0 // pred_region
    _
  $region21: #{sentiment_net_forward.2} parent=0 // pred_fallthru
    _
  // Predicated region
  $region22: #{sentiment_net_forward.2} parent=0 // pred_check
    _
  $region23: #{sentiment_net_forward.2} parent=0 // pred_check_branch
    %23 = sbr.rel (0) target = $region25
  $region24: #{sentiment_net_forward.2} parent=0 // pred_region
    _
  $region25: #{sentiment_net_forward.2} parent=0 // pred_fallthru
    _
  // Predicated region
  $region26: #{sentiment_net_forward.2} parent=0 // pred_check
    _
  $region27: #{sentiment_net_forward.2} parent=0 // pred_check_branch
    %25 = sbr.rel (0) target = $region29
  $region28: #{sentiment_net_forward.2} parent=0 // pred_region
    _
  $region29: #{sentiment_net_forward.2} parent=0 // pred_fallthru
    _
  %v26 = vld [vmem:[%s0] sm:$0xff]
  %v27 = vld [vmem:[%s0 + $0x8] sm:$0xff]
  %v28 = vld [vmem:[%s1] sm:$0xff]
  %v29 = vld [vmem:[%s1 + $0x8] sm:$0xff]
  %v30 = vld [vmem:[%s1 + $0x10] sm:$0xff]
  %v31 = vld [vmem:[%s1 + $0x18] sm:$0xff]
  %v32 = vld [vmem:[%s2] sm:$0xff]
  %v33 = vld [vmem:[%s2 + $0x8] sm:$0xff]
  %v34 = vld [vmem:[%s2 + $0x10] sm:$0xff]
  %v35 = vld [vmem:[%s2 + $0x18] sm:$0xff]
  %v36 = vld [vmem:[%s3] sm:$0x1]
  %v37 = vld [vmem:[%s4] sm:$0xff]
  %v38 = vld [vmem:[%s4 + $0x8] sm:$0xff]
  %v39 = vld [vmem:[%s4 + $0x10] sm:$0xff]
  %v40 = vld [vmem:[%s4 + $0x18] sm:$0xff]
  %v41 = vld [vmem:[%s5] sm:$0xff]
  %v42 = vld [vmem:[%s5 + $0x8] sm:$0xff]
  %v43 = vld [vmem:[%s5 + $0x10] sm:$0xff]
  %v44 = vld [vmem:[%s5 + $0x18] sm:$0xff]
  %v45 = vld [vmem:[%s6] sm:$0x1]
  %v47 = vlaneseq
  %v48 = vshrl.u32 %v47, 7
  %v49 = vsub.s32 0, %v48
  %v50 = vrot.slane %v36, %v49
  %vm52 = vcmask 261120
  %v54 = vsel %vm52, %v26, 0
  %v57 = vsel %vm52, %v27, 0
  %59 = vmatprep.subr.mxu0 0.0
  %60 = vmatpush1.msra.mxu0 0.0
  %61 = vmatprep.subr.mxu0 0.0
  %62 = vmatpush1.msra.mxu0 0.0
  %63 = vmatprep.subr.mxu0 0.0
  %64 = vmatpush1.msra.mxu0 0.0
  %65 = vmatprep.subr.mxu0 0.0
  %66 = vmatpush1.msra.mxu0 0.0
  %67 = vmatprep.subr.mxu0 0.0
  %68 = vmatpush1.msra.mxu0 0.0
  %69 = vmatprep.subr.mxu0 0.0
  %70 = vmatpush1.msra.mxu0 0.0
  %71 = vmatprep.subr.mxu0 0.0
  %72 = vmatpush1.msra.mxu0 0.0
  %73 = vmatprep.subr.mxu0 0.0
  %74 = vmatpush1.msra.mxu0 0.0
  %75 = vmatprep.subr.mxu0 0.0
  %76 = vmatpush1.msra.mxu0 0.0
  %77 = vmatprep.subr.mxu0 0.0
  %78 = vmatpush1.msra.mxu0 0.0
  %79 = vmatprep.subr.mxu0 0.0
  %80 = vmatpush1.msra.mxu0 0.0
  %81 = vmatprep.subr.mxu0 0.0
  %82 = vmatpush1.msra.mxu0 0.0
  %83 = vmatprep.subr.mxu0 0.0
  %84 = vmatpush1.msra.mxu0 %v31
  %85 = vmatprep.subr.mxu0 0.0
  %86 = vmatpush1.msra.mxu0 %v30
  %87 = vmatprep.subr.mxu0 0.0
  %88 = vmatpush1.msra.mxu0 %v29
  %89 = vmatprep.subr.mxu0 0.0
  %90 = vmatpush1.msra.mxu0 %v28
  %91 = vmatprep.subr.mxu0 0.0
  %92 = vmatpush2.msra.mxu0 0.0
  %93 = vmatprep.subr.mxu0 0.0
  %94 = vmatpush2.msra.mxu0 0.0
  %95 = vmatprep.subr.mxu0 0.0
  %96 = vmatpush2.msra.mxu0 0.0
  %97 = vmatprep.subr.mxu0 0.0
  %98 = vmatpush2.msra.mxu0 0.0
  %99 = vmatprep.subr.mxu0 0.0
  %100 = vmatpush2.msra.mxu0 0.0
  %101 = vmatprep.subr.mxu0 0.0
  %102 = vmatpush2.msra.mxu0 0.0
  %103 = vmatprep.subr.mxu0 0.0
  %104 = vmatpush2.msra.mxu0 0.0
  %105 = vmatprep.subr.mxu0 0.0
  %106 = vmatpush2.msra.mxu0 0.0
  %107 = vmatprep.subr.mxu0 0.0
  %108 = vmatpush2.msra.mxu0 0.0
  %109 = vmatprep.subr.mxu0 0.0
  %110 = vmatpush2.msra.mxu0 0.0
  %111 = vmatprep.subr.mxu0 0.0
  %112 = vmatpush2.msra.mxu0 0.0
  %113 = vmatprep.subr.mxu0 0.0
  %114 = vmatpush2.msra.mxu0 0.0
  %115 = vmatprep.subr.mxu0 0.0
  %116 = vmatpush2.msra.mxu0 0.0
  %117 = vmatprep.subr.mxu0 0.0
  %118 = vmatpush2.msra.mxu0 0.0
  %119 = vmatprep.subr.mxu0 0.0
  %120 = vmatpush2.msra.mxu0 0.0
  %121 = vmatprep.subr.mxu0 0.0
  %122 = vmatpush2.msra.mxu0 0.0
  %123 = vmatprep.mubr.f32.mxu0 0.0
  %124 = vmatmul.mubr.f32.gmra.mxu0 %v54
  %v125 = vpop.f32.mrf.mxu0
  %v126 = vadd.f32 %v50, %v125
  %v127 = vpop.f32.mrf.mxu0
  %128 = vmatprep.mubr.f32.mxu0 0.0
  %129 = vmatmul.mubr.f32.gmra.mxu0 %v57
  %v130 = vpop.f32.mrf.mxu0
  %v131 = vadd.f32 %v50, %v130
  %v132 = vpop.f32.mrf.mxu0
  %133 = vdwg.mxu0
  %v135 = vlaneseq
  %v136 = vshrl.u32 %v135, 7
  %v137 = vsub.s32 0, %v136
  %v138 = vrot.slane %v45, %v137
  %140 = vmatprep.subr.mxu0 0.0
  %141 = vmatpush1.msra.mxu0 0.0
  %142 = vmatprep.subr.mxu0 0.0
  %143 = vmatpush1.msra.mxu0 0.0
  %144 = vmatprep.subr.mxu0 0.0
  %145 = vmatpush1.msra.mxu0 0.0
  %146 = vmatprep.subr.mxu0 0.0
  %147 = vmatpush1.msra.mxu0 0.0
  %148 = vmatprep.subr.mxu0 0.0
  %149 = vmatpush1.msra.mxu0 0.0
  %150 = vmatprep.subr.mxu0 0.0
  %151 = vmatpush1.msra.mxu0 0.0
  %152 = vmatprep.subr.mxu0 0.0
  %153 = vmatpush1.msra.mxu0 0.0
  %154 = vmatprep.subr.mxu0 0.0
  %155 = vmatpush1.msra.mxu0 0.0
  %156 = vmatprep.subr.mxu0 0.0
  %157 = vmatpush1.msra.mxu0 0.0
  %158 = vmatprep.subr.mxu0 0.0
  %159 = vmatpush1.msra.mxu0 0.0
  %160 = vmatprep.subr.mxu0 0.0
  %161 = vmatpush1.msra.mxu0 0.0
  %162 = vmatprep.subr.mxu0 0.0
  %163 = vmatpush1.msra.mxu0 0.0
  %164 = vmatprep.subr.mxu0 0.0
  %165 = vmatpush1.msra.mxu0 %v40
  %166 = vmatprep.subr.mxu0 0.0
  %167 = vmatpush1.msra.mxu0 %v39
  %168 = vmatprep.subr.mxu0 0.0
  %169 = vmatpush1.msra.mxu0 %v38
  %170 = vmatprep.subr.mxu0 0.0
  %171 = vmatpush1.msra.mxu0 %v37
  %172 = vmatprep.subr.mxu0 0.0
  %173 = vmatpush2.msra.mxu0 0.0
  %174 = vmatprep.subr.mxu0 0.0
  %175 = vmatpush2.msra.mxu0 0.0
  %176 = vmatprep.subr.mxu0 0.0
  %177 = vmatpush2.msra.mxu0 0.0
  %178 = vmatprep.subr.mxu0 0.0
  %179 = vmatpush2.msra.mxu0 0.0
  %180 = vmatprep.subr.mxu0 0.0
  %181 = vmatpush2.msra.mxu0 0.0
  %182 = vmatprep.subr.mxu0 0.0
  %183 = vmatpush2.msra.mxu0 0.0
  %184 = vmatprep.subr.mxu0 0.0
  %185 = vmatpush2.msra.mxu0 0.0
  %186 = vmatprep.subr.mxu0 0.0
  %187 = vmatpush2.msra.mxu0 0.0
  %188 = vmatprep.subr.mxu0 0.0
  %189 = vmatpush2.msra.mxu0 0.0
  %190 = vmatprep.subr.mxu0 0.0
  %191 = vmatpush2.msra.mxu0 0.0
  %192 = vmatprep.subr.mxu0 0.0
  %193 = vmatpush2.msra.mxu0 0.0
  %194 = vmatprep.subr.mxu0 0.0
  %195 = vmatpush2.msra.mxu0 0.0
  %196 = vmatprep.subr.mxu0 0.0
  %197 = vmatpush2.msra.mxu0 0.0
  %198 = vmatprep.subr.mxu0 0.0
  %199 = vmatpush2.msra.mxu0 0.0
  %200 = vmatprep.subr.mxu0 0.0
  %201 = vmatpush2.msra.mxu0 0.0
  %202 = vmatprep.subr.mxu0 0.0
  %203 = vmatpush2.msra.mxu0 0.0
  %204 = vmatprep.mubr.f32.mxu0 0.0
  %205 = vmatmul.mubr.f32.gmra.mxu0 %v54
  %v206 = vpop.f32.mrf.mxu0
  %v207 = vadd.f32 %v138, %v206
  %v208 = vpop.f32.mrf.mxu0
  %209 = vmatprep.mubr.f32.mxu0 0.0
  %210 = vmatmul.mubr.f32.gmra.mxu0 %v57
  %v211 = vpop.f32.mrf.mxu0
  %v212 = vadd.f32 %v138, %v211
  %v213 = vpop.f32.mrf.mxu0
  %214 = vdwg.mxu0
  %v216 = vsel %vm52, 0.0, 0
  %218 = vmatprep.subr.mxu0 0.0
  %219 = vmatpush1.msra.mxu0 0.0
  %220 = vmatprep.subr.mxu0 0.0
  %221 = vmatpush1.msra.mxu0 0.0
  %222 = vmatprep.subr.mxu0 0.0
  %223 = vmatpush1.msra.mxu0 0.0
  %224 = vmatprep.subr.mxu0 0.0
  %225 = vmatpush1.msra.mxu0 0.0
  %226 = vmatprep.subr.mxu0 0.0
  %227 = vmatpush1.msra.mxu0 0.0
  %228 = vmatprep.subr.mxu0 0.0
  %229 = vmatpush1.msra.mxu0 0.0
  %230 = vmatprep.subr.mxu0 0.0
  %231 = vmatpush1.msra.mxu0 0.0
  %232 = vmatprep.subr.mxu0 0.0
  %233 = vmatpush1.msra.mxu0 0.0
  %234 = vmatprep.subr.mxu0 0.0
  %235 = vmatpush1.msra.mxu0 0.0
  %236 = vmatprep.subr.mxu0 0.0
  %237 = vmatpush1.msra.mxu0 0.0
  %238 = vmatprep.subr.mxu0 0.0
  %239 = vmatpush1.msra.mxu0 0.0
  %240 = vmatprep.subr.mxu0 0.0
  %241 = vmatpush1.msra.mxu0 0.0
  %242 = vmatprep.subr.mxu0 0.0
  %243 = vmatpush1.msra.mxu0 %v35
  %244 = vmatprep.subr.mxu0 0.0
  %245 = vmatpush1.msra.mxu0 %v34
  %246 = vmatprep.subr.mxu0 0.0
  %247 = vmatpush1.msra.mxu0 %v33
  %248 = vmatprep.subr.mxu0 0.0
  %249 = vmatpush1.msra.mxu0 %v32
  %250 = vmatprep.subr.mxu0 0.0
  %251 = vmatpush2.msra.mxu0 0.0
  %252 = vmatprep.subr.mxu0 0.0
  %253 = vmatpush2.msra.mxu0 0.0
  %254 = vmatprep.subr.mxu0 0.0
  %255 = vmatpush2.msra.mxu0 0.0
  %256 = vmatprep.subr.mxu0 0.0
  %257 = vmatpush2.msra.mxu0 0.0
  %258 = vmatprep.subr.mxu0 0.0
  %259 = vmatpush2.msra.mxu0 0.0
  %260 = vmatprep.subr.mxu0 0.0
  %261 = vmatpush2.msra.mxu0 0.0
  %262 = vmatprep.subr.mxu0 0.0
  %263 = vmatpush2.msra.mxu0 0.0
  %264 = vmatprep.subr.mxu0 0.0
  %265 = vmatpush2.msra.mxu0 0.0
  %266 = vmatprep.subr.mxu0 0.0
  %267 = vmatpush2.msra.mxu0 0.0
  %268 = vmatprep.subr.mxu0 0.0
  %269 = vmatpush2.msra.mxu0 0.0
  %270 = vmatprep.subr.mxu0 0.0
  %271 = vmatpush2.msra.mxu0 0.0
  %272 = vmatprep.subr.mxu0 0.0
  %273 = vmatpush2.msra.mxu0 0.0
  %274 = vmatprep.subr.mxu0 0.0
  %275 = vmatpush2.msra.mxu0 0.0
  %276 = vmatprep.subr.mxu0 0.0
  %277 = vmatpush2.msra.mxu0 0.0
  %278 = vmatprep.subr.mxu0 0.0
  %279 = vmatpush2.msra.mxu0 0.0
  %280 = vmatprep.subr.mxu0 0.0
  %281 = vmatpush2.msra.mxu0 0.0
  %282 = vmatprep.mubr.f32.mxu0 0.0
  %283 = vmatmul.mubr.f32.gmra.mxu0 %v216
  %v284 = vpop.f32.mrf.mxu0
  %v285 = vadd.f32 0.0, %v284
  %v286 = vpop.f32.mrf.mxu0
  %287 = vdwg.mxu0
  %v288 = vadd.f32 %v126, %v285
  %v289 = vxor.u32 %v288, 2147483648
  %v290 = vmul.f32 %v289, 1.442695
  %v291 = vpow.pop %v290
  %v292 = vadd.f32 %v291, 1.0
  %v293 = vrcp.pop %v292
  %v294 = vmul.f32 1.0, %v293
  %v295 = vtanh.pop %v288
  %v296 = vmul.f32 %v294, 0.0
  %298 = vrot.lane.b32.xlu0 %v295, 64
  %v299 = vpop.permute.xlu0 %298
  %v301 = vmul.f32 %v294, %v299
  %303 = vrot.lane.b32.xlu0 %v301, 32
  %v304 = vpop.permute.xlu0 %303
  %v306 = vadd.f32 %v296, %v304
  %v307 = vtanh.pop %v306
  %309 = vrot.lane.b32.xlu0 %v307, 64
  %v310 = vpop.permute.xlu0 %309
  %v312 = vmul.f32 %v294, %v310
  %313 = vmatprep.subr.mxu0 0.0
  %314 = vmatpush1.msra.mxu0 0.0
  %315 = vmatprep.subr.mxu0 0.0
  %316 = vmatpush1.msra.mxu0 0.0
  %317 = vmatprep.subr.mxu0 0.0
  %318 = vmatpush1.msra.mxu0 0.0
  %319 = vmatprep.subr.mxu0 0.0
  %320 = vmatpush1.msra.mxu0 0.0
  %321 = vmatprep.subr.mxu0 0.0
  %322 = vmatpush1.msra.mxu0 0.0
  %323 = vmatprep.subr.mxu0 0.0
  %324 = vmatpush1.msra.mxu0 0.0
  %325 = vmatprep.subr.mxu0 0.0
  %326 = vmatpush1.msra.mxu0 0.0
  %327 = vmatprep.subr.mxu0 0.0
  %328 = vmatpush1.msra.mxu0 0.0
  %329 = vmatprep.subr.mxu0 0.0
  %330 = vmatpush1.msra.mxu0 0.0
  %331 = vmatprep.subr.mxu0 0.0
  %332 = vmatpush1.msra.mxu0 0.0
  %333 = vmatprep.subr.mxu0 0.0
  %334 = vmatpush1.msra.mxu0 0.0
  %335 = vmatprep.subr.mxu0 0.0
  %336 = vmatpush1.msra.mxu0 0.0
  %337 = vmatprep.subr.mxu0 0.0
  %338 = vmatpush1.msra.mxu0 %v44
  %339 = vmatprep.subr.mxu0 0.0
  %340 = vmatpush1.msra.mxu0 %v43
  %341 = vmatprep.subr.mxu0 0.0
  %342 = vmatpush1.msra.mxu0 %v42
  %343 = vmatprep.subr.mxu0 0.0
  %344 = vmatpush1.msra.mxu0 %v41
  %345 = vmatprep.subr.mxu0 0.0
  %346 = vmatpush2.msra.mxu0 0.0
  %347 = vmatprep.subr.mxu0 0.0
  %348 = vmatpush2.msra.mxu0 0.0
  %349 = vmatprep.subr.mxu0 0.0
  %350 = vmatpush2.msra.mxu0 0.0
  %351 = vmatprep.subr.mxu0 0.0
  %352 = vmatpush2.msra.mxu0 0.0
  %353 = vmatprep.subr.mxu0 0.0
  %354 = vmatpush2.msra.mxu0 0.0
  %355 = vmatprep.subr.mxu0 0.0
  %356 = vmatpush2.msra.mxu0 0.0
  %357 = vmatprep.subr.mxu0 0.0
  %358 = vmatpush2.msra.mxu0 0.0
  %359 = vmatprep.subr.mxu0 0.0
  %360 = vmatpush2.msra.mxu0 0.0
  %361 = vmatprep.subr.mxu0 0.0
  %362 = vmatpush2.msra.mxu0 0.0
  %363 = vmatprep.subr.mxu0 0.0
  %364 = vmatpush2.msra.mxu0 0.0
  %365 = vmatprep.subr.mxu0 0.0
  %366 = vmatpush2.msra.mxu0 0.0
  %367 = vmatprep.subr.mxu0 0.0
  %368 = vmatpush2.msra.mxu0 0.0
  %369 = vmatprep.subr.mxu0 0.0
  %370 = vmatpush2.msra.mxu0 0.0
  %371 = vmatprep.subr.mxu0 0.0
  %372 = vmatpush2.msra.mxu0 0.0
  %373 = vmatprep.subr.mxu0 0.0
  %374 = vmatpush2.msra.mxu0 0.0
  %375 = vmatprep.subr.mxu0 0.0
  %376 = vmatpush2.msra.mxu0 0.0
  %377 = vmatprep.mubr.f32.mxu0 0.0
  %378 = vmatmul.mubr.f32.gmra.mxu0 %v216
  %v379 = vpop.f32.mrf.mxu0
  %v380 = vadd.f32 0.0, %v379
  %v381 = vpop.f32.mrf.mxu0
  %382 = vdwg.mxu0
  %v384 = vrot.slane %v380, 2
  %v386 = vadd.f32 %v212, %v384
  %v387 = vxor.u32 %v386, 2147483648
  %v388 = vmul.f32 %v387, 1.442695
  %v389 = vpow.pop %v388
  %v390 = vadd.f32 %v389, 1.0
  %v391 = vrcp.pop %v390
  %v392 = vmul.f32 1.0, %v391
  %v393 = vtanh.pop %v386
  %v394 = vmul.f32 %v392, 0.0
  %396 = vrot.lane.b32.xlu0 %v393, 64
  %v397 = vpop.permute.xlu0 %396
  %v399 = vmul.f32 %v392, %v397
  %401 = vrot.lane.b32.xlu0 %v399, 32
  %v402 = vpop.permute.xlu0 %401
  %v404 = vadd.f32 %v394, %v402
  %v405 = vtanh.pop %v404
  %407 = vrot.lane.b32.xlu0 %v405, 64
  %v408 = vpop.permute.xlu0 %407
  %v410 = vmul.f32 %v392, %v408
  %412 = vrot.lane.b32.xlu0 %v312, 32
  %v413 = vpop.permute.xlu0 %412
  %v414 = vsel %vm52, %v413, 0
  %416 = vmatprep.subr.mxu0 0.0
  %417 = vmatpush1.msra.mxu0 0.0
  %418 = vmatprep.subr.mxu0 0.0
  %419 = vmatpush1.msra.mxu0 0.0
  %420 = vmatprep.subr.mxu0 0.0
  %421 = vmatpush1.msra.mxu0 0.0
  %422 = vmatprep.subr.mxu0 0.0
  %423 = vmatpush1.msra.mxu0 0.0
  %424 = vmatprep.subr.mxu0 0.0
  %425 = vmatpush1.msra.mxu0 0.0
  %426 = vmatprep.subr.mxu0 0.0
  %427 = vmatpush1.msra.mxu0 0.0
  %428 = vmatprep.subr.mxu0 0.0
  %429 = vmatpush1.msra.mxu0 0.0
  %430 = vmatprep.subr.mxu0 0.0
  %431 = vmatpush1.msra.mxu0 0.0
  %432 = vmatprep.subr.mxu0 0.0
  %433 = vmatpush1.msra.mxu0 0.0
  %434 = vmatprep.subr.mxu0 0.0
  %435 = vmatpush1.msra.mxu0 0.0
  %436 = vmatprep.subr.mxu0 0.0
  %437 = vmatpush1.msra.mxu0 0.0
  %438 = vmatprep.subr.mxu0 0.0
  %439 = vmatpush1.msra.mxu0 0.0
  %440 = vmatprep.subr.mxu0 0.0
  %441 = vmatpush1.msra.mxu0 %v35
  %442 = vmatprep.subr.mxu0 0.0
  %443 = vmatpush1.msra.mxu0 %v34
  %444 = vmatprep.subr.mxu0 0.0
  %445 = vmatpush1.msra.mxu0 %v33
  %446 = vmatprep.subr.mxu0 0.0
  %447 = vmatpush1.msra.mxu0 %v32
  %448 = vmatprep.subr.mxu0 0.0
  %449 = vmatpush2.msra.mxu0 0.0
  %450 = vmatprep.subr.mxu0 0.0
  %451 = vmatpush2.msra.mxu0 0.0
  %452 = vmatprep.subr.mxu0 0.0
  %453 = vmatpush2.msra.mxu0 0.0
  %454 = vmatprep.subr.mxu0 0.0
  %455 = vmatpush2.msra.mxu0 0.0
  %456 = vmatprep.subr.mxu0 0.0
  %457 = vmatpush2.msra.mxu0 0.0
  %458 = vmatprep.subr.mxu0 0.0
  %459 = vmatpush2.msra.mxu0 0.0
  %460 = vmatprep.subr.mxu0 0.0
  %461 = vmatpush2.msra.mxu0 0.0
  %462 = vmatprep.subr.mxu0 0.0
  %463 = vmatpush2.msra.mxu0 0.0
  %464 = vmatprep.subr.mxu0 0.0
  %465 = vmatpush2.msra.mxu0 0.0
  %466 = vmatprep.subr.mxu0 0.0
  %467 = vmatpush2.msra.mxu0 0.0
  %468 = vmatprep.subr.mxu0 0.0
  %469 = vmatpush2.msra.mxu0 0.0
  %470 = vmatprep.subr.mxu0 0.0
  %471 = vmatpush2.msra.mxu0 0.0
  %472 = vmatprep.subr.mxu0 0.0
  %473 = vmatpush2.msra.mxu0 0.0
  %474 = vmatprep.subr.mxu0 0.0
  %475 = vmatpush2.msra.mxu0 0.0
  %476 = vmatprep.subr.mxu0 0.0
  %477 = vmatpush2.msra.mxu0 0.0
  %478 = vmatprep.subr.mxu0 0.0
  %479 = vmatpush2.msra.mxu0 0.0
  %480 = vmatprep.mubr.f32.mxu0 0.0
  %481 = vmatmul.mubr.f32.gmra.mxu0 %v414
  %v482 = vpop.f32.mrf.mxu0
  %v483 = vadd.f32 0.0, %v482
  %v484 = vpop.f32.mrf.mxu0
  %485 = vdwg.mxu0
  %v487 = vrot.slane %v483, 6
  %v489 = vadd.f32 %v126, %v487
  %v490 = vxor.u32 %v489, 2147483648
  %v491 = vmul.f32 %v490, 1.442695
  %v492 = vpow.pop %v491
  %v493 = vadd.f32 %v492, 1.0
  %v494 = vrcp.pop %v493
  %v495 = vmul.f32 1.0, %v494
  %v496 = vtanh.pop %v489
  %v498 = vrot.slane %v306, 6
  %v500 = vmul.f32 %v495, %v498
  %502 = vrot.lane.b32.xlu0 %v496, 64
  %v503 = vpop.permute.xlu0 %502
  %v505 = vmul.f32 %v495, %v503
  %507 = vrot.lane.b32.xlu0 %v505, 32
  %v508 = vpop.permute.xlu0 %507
  %v510 = vadd.f32 %v500, %v508
  %v511 = vtanh.pop %v510
  %513 = vrot.lane.b32.xlu0 %v511, 64
  %v514 = vpop.permute.xlu0 %513
  %v516 = vmul.f32 %v495, %v514
  %v518 = vrot.slane %v410, 6
  %519 = vrot.lane.b32.xlu0 %v518, 32
  %v520 = vpop.permute.xlu0 %519
  %v521 = vsel %vm52, %v520, 0
  %523 = vmatprep.subr.mxu0 0.0
  %524 = vmatpush1.msra.mxu0 0.0
  %525 = vmatprep.subr.mxu0 0.0
  %526 = vmatpush1.msra.mxu0 0.0
  %527 = vmatprep.subr.mxu0 0.0
  %528 = vmatpush1.msra.mxu0 0.0
  %529 = vmatprep.subr.mxu0 0.0
  %530 = vmatpush1.msra.mxu0 0.0
  %531 = vmatprep.subr.mxu0 0.0
  %532 = vmatpush1.msra.mxu0 0.0
  %533 = vmatprep.subr.mxu0 0.0
  %534 = vmatpush1.msra.mxu0 0.0
  %535 = vmatprep.subr.mxu0 0.0
  %536 = vmatpush1.msra.mxu0 0.0
  %537 = vmatprep.subr.mxu0 0.0
  %538 = vmatpush1.msra.mxu0 0.0
  %539 = vmatprep.subr.mxu0 0.0
  %540 = vmatpush1.msra.mxu0 0.0
  %541 = vmatprep.subr.mxu0 0.0
  %542 = vmatpush1.msra.mxu0 0.0
  %543 = vmatprep.subr.mxu0 0.0
  %544 = vmatpush1.msra.mxu0 0.0
  %545 = vmatprep.subr.mxu0 0.0
  %546 = vmatpush1.msra.mxu0 0.0
  %547 = vmatprep.subr.mxu0 0.0
  %548 = vmatpush1.msra.mxu0 %v44
  %549 = vmatprep.subr.mxu0 0.0
  %550 = vmatpush1.msra.mxu0 %v43
  %551 = vmatprep.subr.mxu0 0.0
  %552 = vmatpush1.msra.mxu0 %v42
  %553 = vmatprep.subr.mxu0 0.0
  %554 = vmatpush1.msra.mxu0 %v41
  %555 = vmatprep.subr.mxu0 0.0
  %556 = vmatpush2.msra.mxu0 0.0
  %557 = vmatprep.subr.mxu0 0.0
  %558 = vmatpush2.msra.mxu0 0.0
  %559 = vmatprep.subr.mxu0 0.0
  %560 = vmatpush2.msra.mxu0 0.0
  %561 = vmatprep.subr.mxu0 0.0
  %562 = vmatpush2.msra.mxu0 0.0
  %563 = vmatprep.subr.mxu0 0.0
  %564 = vmatpush2.msra.mxu0 0.0
  %565 = vmatprep.subr.mxu0 0.0
  %566 = vmatpush2.msra.mxu0 0.0
  %567 = vmatprep.subr.mxu0 0.0
  %568 = vmatpush2.msra.mxu0 0.0
  %569 = vmatprep.subr.mxu0 0.0
  %570 = vmatpush2.msra.mxu0 0.0
  %571 = vmatprep.subr.mxu0 0.0
  %572 = vmatpush2.msra.mxu0 0.0
  %573 = vmatprep.subr.mxu0 0.0
  %574 = vmatpush2.msra.mxu0 0.0
  %575 = vmatprep.subr.mxu0 0.0
  %576 = vmatpush2.msra.mxu0 0.0
  %577 = vmatprep.subr.mxu0 0.0
  %578 = vmatpush2.msra.mxu0 0.0
  %579 = vmatprep.subr.mxu0 0.0
  %580 = vmatpush2.msra.mxu0 0.0
  %581 = vmatprep.subr.mxu0 0.0
  %582 = vmatpush2.msra.mxu0 0.0
  %583 = vmatprep.subr.mxu0 0.0
  %584 = vmatpush2.msra.mxu0 0.0
  %585 = vmatprep.subr.mxu0 0.0
  %586 = vmatpush2.msra.mxu0 0.0
  %587 = vmatprep.mubr.f32.mxu0 0.0
  %588 = vmatmul.mubr.f32.gmra.mxu0 %v521
  %v589 = vpop.f32.mrf.mxu0
  %v590 = vadd.f32 0.0, %v589
  %v591 = vpop.f32.mrf.mxu0
  %592 = vdwg.mxu0
  %v594 = vrot.slane %v590, 4
  %v596 = vadd.f32 %v212, %v594
  %v597 = vxor.u32 %v596, 2147483648
  %v598 = vmul.f32 %v597, 1.442695
  %v599 = vpow.pop %v598
  %v600 = vadd.f32 %v599, 1.0
  %v601 = vrcp.pop %v600
  %v602 = vmul.f32 1.0, %v601
  %v603 = vtanh.pop %v596
  %v605 = vrot.slane %v404, 2
  %v607 = vmul.f32 %v602, %v605
  %609 = vrot.lane.b32.xlu0 %v603, 64
  %v610 = vpop.permute.xlu0 %609
  %v612 = vmul.f32 %v602, %v610
  %614 = vrot.lane.b32.xlu0 %v612, 32
  %v615 = vpop.permute.xlu0 %614
  %v617 = vadd.f32 %v607, %v615
  %v618 = vtanh.pop %v617
  %620 = vrot.lane.b32.xlu0 %v618, 64
  %v621 = vpop.permute.xlu0 %620
  %v623 = vmul.f32 %v602, %v621
  %v625 = vrot.slane %v516, 2
  %626 = vrot.lane.b32.xlu0 %v625, 32
  %v627 = vpop.permute.xlu0 %626
  %v628 = vsel %vm52, %v627, 0
  %630 = vmatprep.subr.mxu0 0.0
  %631 = vmatpush1.msra.mxu0 0.0
  %632 = vmatprep.subr.mxu0 0.0
  %633 = vmatpush1.msra.mxu0 0.0
  %634 = vmatprep.subr.mxu0 0.0
  %635 = vmatpush1.msra.mxu0 0.0
  %636 = vmatprep.subr.mxu0 0.0
  %637 = vmatpush1.msra.mxu0 0.0
  %638 = vmatprep.subr.mxu0 0.0
  %639 = vmatpush1.msra.mxu0 0.0
  %640 = vmatprep.subr.mxu0 0.0
  %641 = vmatpush1.msra.mxu0 0.0
  %642 = vmatprep.subr.mxu0 0.0
  %643 = vmatpush1.msra.mxu0 0.0
  %644 = vmatprep.subr.mxu0 0.0
  %645 = vmatpush1.msra.mxu0 0.0
  %646 = vmatprep.subr.mxu0 0.0
  %647 = vmatpush1.msra.mxu0 0.0
  %648 = vmatprep.subr.mxu0 0.0
  %649 = vmatpush1.msra.mxu0 0.0
  %650 = vmatprep.subr.mxu0 0.0
  %651 = vmatpush1.msra.mxu0 0.0
  %652 = vmatprep.subr.mxu0 0.0
  %653 = vmatpush1.msra.mxu0 0.0
  %654 = vmatprep.subr.mxu0 0.0
  %655 = vmatpush1.msra.mxu0 %v35
  %656 = vmatprep.subr.mxu0 0.0
  %657 = vmatpush1.msra.mxu0 %v34
  %658 = vmatprep.subr.mxu0 0.0
  %659 = vmatpush1.msra.mxu0 %v33
  %660 = vmatprep.subr.mxu0 0.0
  %661 = vmatpush1.msra.mxu0 %v32
  %662 = vmatprep.subr.mxu0 0.0
  %663 = vmatpush2.msra.mxu0 0.0
  %664 = vmatprep.subr.mxu0 0.0
  %665 = vmatpush2.msra.mxu0 0.0
  %666 = vmatprep.subr.mxu0 0.0
  %667 = vmatpush2.msra.mxu0 0.0
  %668 = vmatprep.subr.mxu0 0.0
  %669 = vmatpush2.msra.mxu0 0.0
  %670 = vmatprep.subr.mxu0 0.0
  %671 = vmatpush2.msra.mxu0 0.0
  %672 = vmatprep.subr.mxu0 0.0
  %673 = vmatpush2.msra.mxu0 0.0
  %674 = vmatprep.subr.mxu0 0.0
  %675 = vmatpush2.msra.mxu0 0.0
  %676 = vmatprep.subr.mxu0 0.0
  %677 = vmatpush2.msra.mxu0 0.0
  %678 = vmatprep.subr.mxu0 0.0
  %679 = vmatpush2.msra.mxu0 0.0
  %680 = vmatprep.subr.mxu0 0.0
  %681 = vmatpush2.msra.mxu0 0.0
  %682 = vmatprep.subr.mxu0 0.0
  %683 = vmatpush2.msra.mxu0 0.0
  %684 = vmatprep.subr.mxu0 0.0
  %685 = vmatpush2.msra.mxu0 0.0
  %686 = vmatprep.subr.mxu0 0.0
  %687 = vmatpush2.msra.mxu0 0.0
  %688 = vmatprep.subr.mxu0 0.0
  %689 = vmatpush2.msra.mxu0 0.0
  %690 = vmatprep.subr.mxu0 0.0
  %691 = vmatpush2.msra.mxu0 0.0
  %692 = vmatprep.subr.mxu0 0.0
  %693 = vmatpush2.msra.mxu0 0.0
  %694 = vmatprep.mubr.f32.mxu0 0.0
  %695 = vmatmul.mubr.f32.gmra.mxu0 %v628
  %v696 = vpop.f32.mrf.mxu0
  %v697 = vadd.f32 0.0, %v696
  %v698 = vpop.f32.mrf.mxu0
  %699 = vdwg.mxu0
  %v701 = vrot.slane %v697, 4
  %v703 = vadd.f32 %v126, %v701
  %v704 = vxor.u32 %v703, 2147483648
  %v705 = vmul.f32 %v704, 1.442695
  %v706 = vpow.pop %v705
  %v707 = vadd.f32 %v706, 1.0
  %v708 = vrcp.pop %v707
  %v709 = vmul.f32 1.0, %v708
  %v710 = vtanh.pop %v703
  %v712 = vrot.slane %v510, 6
  %v714 = vmul.f32 %v709, %v712
  %716 = vrot.lane.b32.xlu0 %v710, 64
  %v717 = vpop.permute.xlu0 %716
  %v719 = vmul.f32 %v709, %v717
  %721 = vrot.lane.b32.xlu0 %v719, 32
  %v722 = vpop.permute.xlu0 %721
  %v724 = vadd.f32 %v714, %v722
  %v725 = vtanh.pop %v724
  %727 = vrot.lane.b32.xlu0 %v725, 64
  %v728 = vpop.permute.xlu0 %727
  %v730 = vmul.f32 %v709, %v728
  %v732 = vrot.slane %v623, 4
  %733 = vrot.lane.b32.xlu0 %v732, 32
  %v734 = vpop.permute.xlu0 %733
  %v735 = vsel %vm52, %v734, 0
  %737 = vmatprep.subr.mxu0 0.0
  %738 = vmatpush1.msra.mxu0 0.0
  %739 = vmatprep.subr.mxu0 0.0
  %740 = vmatpush1.msra.mxu0 0.0
  %741 = vmatprep.subr.mxu0 0.0
  %742 = vmatpush1.msra.mxu0 0.0
  %743 = vmatprep.subr.mxu0 0.0
  %744 = vmatpush1.msra.mxu0 0.0
  %745 = vmatprep.subr.mxu0 0.0
  %746 = vmatpush1.msra.mxu0 0.0
  %747 = vmatprep.subr.mxu0 0.0
  %748 = vmatpush1.msra.mxu0 0.0
  %749 = vmatprep.subr.mxu0 0.0
  %750 = vmatpush1.msra.mxu0 0.0
  %751 = vmatprep.subr.mxu0 0.0
  %752 = vmatpush1.msra.mxu0 0.0
  %753 = vmatprep.subr.mxu0 0.0
  %754 = vmatpush1.msra.mxu0 0.0
  %755 = vmatprep.subr.mxu0 0.0
  %756 = vmatpush1.msra.mxu0 0.0
  %757 = vmatprep.subr.mxu0 0.0
  %758 = vmatpush1.msra.mxu0 0.0
  %759 = vmatprep.subr.mxu0 0.0
  %760 = vmatpush1.msra.mxu0 0.0
  %761 = vmatprep.subr.mxu0 0.0
  %762 = vmatpush1.msra.mxu0 %v44
  %763 = vmatprep.subr.mxu0 0.0
  %764 = vmatpush1.msra.mxu0 %v43
  %765 = vmatprep.subr.mxu0 0.0
  %766 = vmatpush1.msra.mxu0 %v42
  %767 = vmatprep.subr.mxu0 0.0
  %768 = vmatpush1.msra.mxu0 %v41
  %769 = vmatprep.subr.mxu0 0.0
  %770 = vmatpush2.msra.mxu0 0.0
  %771 = vmatprep.subr.mxu0 0.0
  %772 = vmatpush2.msra.mxu0 0.0
  %773 = vmatprep.subr.mxu0 0.0
  %774 = vmatpush2.msra.mxu0 0.0
  %775 = vmatprep.subr.mxu0 0.0
  %776 = vmatpush2.msra.mxu0 0.0
  %777 = vmatprep.subr.mxu0 0.0
  %778 = vmatpush2.msra.mxu0 0.0
  %779 = vmatprep.subr.mxu0 0.0
  %780 = vmatpush2.msra.mxu0 0.0
  %781 = vmatprep.subr.mxu0 0.0
  %782 = vmatpush2.msra.mxu0 0.0
  %783 = vmatprep.subr.mxu0 0.0
  %784 = vmatpush2.msra.mxu0 0.0
  %785 = vmatprep.subr.mxu0 0.0
  %786 = vmatpush2.msra.mxu0 0.0
  %787 = vmatprep.subr.mxu0 0.0
  %788 = vmatpush2.msra.mxu0 0.0
  %789 = vmatprep.subr.mxu0 0.0
  %790 = vmatpush2.msra.mxu0 0.0
  %791 = vmatprep.subr.mxu0 0.0
  %792 = vmatpush2.msra.mxu0 0.0
  %793 = vmatprep.subr.mxu0 0.0
  %794 = vmatpush2.msra.mxu0 0.0
  %795 = vmatprep.subr.mxu0 0.0
  %796 = vmatpush2.msra.mxu0 0.0
  %797 = vmatprep.subr.mxu0 0.0
  %798 = vmatpush2.msra.mxu0 0.0
  %799 = vmatprep.subr.mxu0 0.0
  %800 = vmatpush2.msra.mxu0 0.0
  %801 = vmatprep.mubr.f32.mxu0 0.0
  %802 = vmatmul.mubr.f32.gmra.mxu0 %v735
  %v803 = vpop.f32.mrf.mxu0
  %v804 = vadd.f32 0.0, %v803
  %v805 = vpop.f32.mrf.mxu0
  %806 = vdwg.mxu0
  %v808 = vrot.slane %v804, 6
  %v810 = vadd.f32 %v212, %v808
  %v811 = vxor.u32 %v810, 2147483648
  %v812 = vmul.f32 %v811, 1.442695
  %v813 = vpow.pop %v812
  %v814 = vadd.f32 %v813, 1.0
  %v815 = vrcp.pop %v814
  %v816 = vmul.f32 1.0, %v815
  %v817 = vtanh.pop %v810
  %v819 = vrot.slane %v617, 2
  %v821 = vmul.f32 %v816, %v819
  %823 = vrot.lane.b32.xlu0 %v817, 64
  %v824 = vpop.permute.xlu0 %823
  %v826 = vmul.f32 %v816, %v824
  %828 = vrot.lane.b32.xlu0 %v826, 32
  %v829 = vpop.permute.xlu0 %828
  %v831 = vadd.f32 %v821, %v829
  %v832 = vtanh.pop %v831
  %834 = vrot.lane.b32.xlu0 %v832, 64
  %v835 = vpop.permute.xlu0 %834
  %v837 = vmul.f32 %v816, %v835
  %v839 = vrot.slane %v730, 4
  %840 = vrot.lane.b32.xlu0 %v839, 32
  %v841 = vpop.permute.xlu0 %840
  %v842 = vsel %vm52, %v841, 0
  %844 = vmatprep.subr.mxu0 0.0
  %845 = vmatpush1.msra.mxu0 0.0
  %846 = vmatprep.subr.mxu0 0.0
  %847 = vmatpush1.msra.mxu0 0.0
  %848 = vmatprep.subr.mxu0 0.0
  %849 = vmatpush1.msra.mxu0 0.0
  %850 = vmatprep.subr.mxu0 0.0
  %851 = vmatpush1.msra.mxu0 0.0
  %852 = vmatprep.subr.mxu0 0.0
  %853 = vmatpush1.msra.mxu0 0.0
  %854 = vmatprep.subr.mxu0 0.0
  %855 = vmatpush1.msra.mxu0 0.0
  %856 = vmatprep.subr.mxu0 0.0
  %857 = vmatpush1.msra.mxu0 0.0
  %858 = vmatprep.subr.mxu0 0.0
  %859 = vmatpush1.msra.mxu0 0.0
  %860 = vmatprep.subr.mxu0 0.0
  %861 = vmatpush1.msra.mxu0 0.0
  %862 = vmatprep.subr.mxu0 0.0
  %863 = vmatpush1.msra.mxu0 0.0
  %864 = vmatprep.subr.mxu0 0.0
  %865 = vmatpush1.msra.mxu0 0.0
  %866 = vmatprep.subr.mxu0 0.0
  %867 = vmatpush1.msra.mxu0 0.0
  %868 = vmatprep.subr.mxu0 0.0
  %869 = vmatpush1.msra.mxu0 %v35
  %870 = vmatprep.subr.mxu0 0.0
  %871 = vmatpush1.msra.mxu0 %v34
  %872 = vmatprep.subr.mxu0 0.0
  %873 = vmatpush1.msra.mxu0 %v33
  %874 = vmatprep.subr.mxu0 0.0
  %875 = vmatpush1.msra.mxu0 %v32
  %876 = vmatprep.subr.mxu0 0.0
  %877 = vmatpush2.msra.mxu0 0.0
  %878 = vmatprep.subr.mxu0 0.0
  %879 = vmatpush2.msra.mxu0 0.0
  %880 = vmatprep.subr.mxu0 0.0
  %881 = vmatpush2.msra.mxu0 0.0
  %882 = vmatprep.subr.mxu0 0.0
  %883 = vmatpush2.msra.mxu0 0.0
  %884 = vmatprep.subr.mxu0 0.0
  %885 = vmatpush2.msra.mxu0 0.0
  %886 = vmatprep.subr.mxu0 0.0
  %887 = vmatpush2.msra.mxu0 0.0
  %888 = vmatprep.subr.mxu0 0.0
  %889 = vmatpush2.msra.mxu0 0.0
  %890 = vmatprep.subr.mxu0 0.0
  %891 = vmatpush2.msra.mxu0 0.0
  %892 = vmatprep.subr.mxu0 0.0
  %893 = vmatpush2.msra.mxu0 0.0
  %894 = vmatprep.subr.mxu0 0.0
  %895 = vmatpush2.msra.mxu0 0.0
  %896 = vmatprep.subr.mxu0 0.0
  %897 = vmatpush2.msra.mxu0 0.0
  %898 = vmatprep.subr.mxu0 0.0
  %899 = vmatpush2.msra.mxu0 0.0
  %900 = vmatprep.subr.mxu0 0.0
  %901 = vmatpush2.msra.mxu0 0.0
  %902 = vmatprep.subr.mxu0 0.0
  %903 = vmatpush2.msra.mxu0 0.0
  %904 = vmatprep.subr.mxu0 0.0
  %905 = vmatpush2.msra.mxu0 0.0
  %906 = vmatprep.subr.mxu0 0.0
  %907 = vmatpush2.msra.mxu0 0.0
  %908 = vmatprep.mubr.f32.mxu0 0.0
  %909 = vmatmul.mubr.f32.gmra.mxu0 %v842
  %v910 = vpop.f32.mrf.mxu0
  %v911 = vadd.f32 0.0, %v910
  %v912 = vpop.f32.mrf.mxu0
  %913 = vdwg.mxu0
  %v915 = vrot.slane %v911, 2
  %v917 = vadd.f32 %v126, %v915
  %v918 = vxor.u32 %v917, 2147483648
  %v919 = vmul.f32 %v918, 1.442695
  %v920 = vpow.pop %v919
  %v921 = vadd.f32 %v920, 1.0
  %v922 = vrcp.pop %v921
  %v923 = vmul.f32 1.0, %v922
  %v924 = vtanh.pop %v917
  %v926 = vrot.slane %v724, 6
  %v928 = vmul.f32 %v923, %v926
  %930 = vrot.lane.b32.xlu0 %v924, 64
  %v931 = vpop.permute.xlu0 %930
  %v933 = vmul.f32 %v923, %v931
  %935 = vrot.lane.b32.xlu0 %v933, 32
  %v936 = vpop.permute.xlu0 %935
  %v938 = vadd.f32 %v928, %v936
  %v939 = vtanh.pop %v938
  %941 = vrot.lane.b32.xlu0 %v939, 64
  %v942 = vpop.permute.xlu0 %941
  %v944 = vmul.f32 %v923, %v942
  %v946 = vrot.slane %v837, 2
  %947 = vrot.lane.b32.xlu0 %v946, 32
  %v948 = vpop.permute.xlu0 %947
  %v949 = vsel %vm52, %v948, 0
  %951 = vmatprep.subr.mxu0 0.0
  %952 = vmatpush1.msra.mxu0 0.0
  %953 = vmatprep.subr.mxu0 0.0
  %954 = vmatpush1.msra.mxu0 0.0
  %955 = vmatprep.subr.mxu0 0.0
  %956 = vmatpush1.msra.mxu0 0.0
  %957 = vmatprep.subr.mxu0 0.0
  %958 = vmatpush1.msra.mxu0 0.0
  %959 = vmatprep.subr.mxu0 0.0
  %960 = vmatpush1.msra.mxu0 0.0
  %961 = vmatprep.subr.mxu0 0.0
  %962 = vmatpush1.msra.mxu0 0.0
  %963 = vmatprep.subr.mxu0 0.0
  %964 = vmatpush1.msra.mxu0 0.0
  %965 = vmatprep.subr.mxu0 0.0
  %966 = vmatpush1.msra.mxu0 0.0
  %967 = vmatprep.subr.mxu0 0.0
  %968 = vmatpush1.msra.mxu0 0.0
  %969 = vmatprep.subr.mxu0 0.0
  %970 = vmatpush1.msra.mxu0 0.0
  %971 = vmatprep.subr.mxu0 0.0
  %972 = vmatpush1.msra.mxu0 0.0
  %973 = vmatprep.subr.mxu0 0.0
  %974 = vmatpush1.msra.mxu0 0.0
  %975 = vmatprep.subr.mxu0 0.0
  %976 = vmatpush1.msra.mxu0 %v44
  %977 = vmatprep.subr.mxu0 0.0
  %978 = vmatpush1.msra.mxu0 %v43
  %979 = vmatprep.subr.mxu0 0.0
  %980 = vmatpush1.msra.mxu0 %v42
  %981 = vmatprep.subr.mxu0 0.0
  %982 = vmatpush1.msra.mxu0 %v41
  %983 = vmatprep.subr.mxu0 0.0
  %984 = vmatpush2.msra.mxu0 0.0
  %985 = vmatprep.subr.mxu0 0.0
  %986 = vmatpush2.msra.mxu0 0.0
  %987 = vmatprep.subr.mxu0 0.0
  %988 = vmatpush2.msra.mxu0 0.0
  %989 = vmatprep.subr.mxu0 0.0
  %990 = vmatpush2.msra.mxu0 0.0
  %991 = vmatprep.subr.mxu0 0.0
  %992 = vmatpush2.msra.mxu0 0.0
  %993 = vmatprep.subr.mxu0 0.0
  %994 = vmatpush2.msra.mxu0 0.0
  %995 = vmatprep.subr.mxu0 0.0
  %996 = vmatpush2.msra.mxu0 0.0
  %997 = vmatprep.subr.mxu0 0.0
  %998 = vmatpush2.msra.mxu0 0.0
  %999 = vmatprep.subr.mxu0 0.0
  %1000 = vmatpush2.msra.mxu0 0.0
  %1001 = vmatprep.subr.mxu0 0.0
  %1002 = vmatpush2.msra.mxu0 0.0
  %1003 = vmatprep.subr.mxu0 0.0
  %1004 = vmatpush2.msra.mxu0 0.0
  %1005 = vmatprep.subr.mxu0 0.0
  %1006 = vmatpush2.msra.mxu0 0.0
  %1007 = vmatprep.subr.mxu0 0.0
  %1008 = vmatpush2.msra.mxu0 0.0
  %1009 = vmatprep.subr.mxu0 0.0
  %1010 = vmatpush2.msra.mxu0 0.0
  %1011 = vmatprep.subr.mxu0 0.0
  %1012 = vmatpush2.msra.mxu0 0.0
  %1013 = vmatprep.subr.mxu0 0.0
  %1014 = vmatpush2.msra.mxu0 0.0
  %1015 = vmatprep.mubr.f32.mxu0 0.0
  %1016 = vmatmul.mubr.f32.gmra.mxu0 %v949
  %v1017 = vpop.f32.mrf.mxu0
  %v1018 = vadd.f32 0.0, %v1017
  %v1019 = vpop.f32.mrf.mxu0
  %1020 = vdwg.mxu0
  %v1021 = vadd.f32 %v212, %v1018
  %v1022 = vxor.u32 %v1021, 2147483648
  %v1023 = vmul.f32 %v1022, 1.442695
  %v1024 = vpow.pop %v1023
  %v1025 = vadd.f32 %v1024, 1.0
  %v1026 = vrcp.pop %v1025
  %v1027 = vmul.f32 1.0, %v1026
  %v1028 = vtanh.pop %v1021
  %v1030 = vrot.slane %v831, 2
  %v1032 = vmul.f32 %v1027, %v1030
  %1034 = vrot.lane.b32.xlu0 %v1028, 64
  %v1035 = vpop.permute.xlu0 %1034
  %v1037 = vmul.f32 %v1027, %v1035
  %1039 = vrot.lane.b32.xlu0 %v1037, 32
  %v1040 = vpop.permute.xlu0 %1039
  %v1042 = vadd.f32 %v1032, %v1040
  %v1043 = vtanh.pop %v1042
  %1045 = vrot.lane.b32.xlu0 %v1043, 64
  %v1046 = vpop.permute.xlu0 %1045
  %v1048 = vmul.f32 %v1027, %v1046
  %v1050 = vrot.slane %v944, 6
  %1051 = vrot.lane.b32.xlu0 %v1050, 32
  %v1052 = vpop.permute.xlu0 %1051
  %v1053 = vsel %vm52, %v1052, 0
  %1055 = vmatprep.subr.mxu0 0.0
  %1056 = vmatpush1.msra.mxu0 0.0
  %1057 = vmatprep.subr.mxu0 0.0
  %1058 = vmatpush1.msra.mxu0 0.0
  %1059 = vmatprep.subr.mxu0 0.0
  %1060 = vmatpush1.msra.mxu0 0.0
  %1061 = vmatprep.subr.mxu0 0.0
  %1062 = vmatpush1.msra.mxu0 0.0
  %1063 = vmatprep.subr.mxu0 0.0
  %1064 = vmatpush1.msra.mxu0 0.0
  %1065 = vmatprep.subr.mxu0 0.0
  %1066 = vmatpush1.msra.mxu0 0.0
  %1067 = vmatprep.subr.mxu0 0.0
  %1068 = vmatpush1.msra.mxu0 0.0
  %1069 = vmatprep.subr.mxu0 0.0
  %1070 = vmatpush1.msra.mxu0 0.0
  %1071 = vmatprep.subr.mxu0 0.0
  %1072 = vmatpush1.msra.mxu0 0.0
  %1073 = vmatprep.subr.mxu0 0.0
  %1074 = vmatpush1.msra.mxu0 0.0
  %1075 = vmatprep.subr.mxu0 0.0
  %1076 = vmatpush1.msra.mxu0 0.0
  %1077 = vmatprep.subr.mxu0 0.0
  %1078 = vmatpush1.msra.mxu0 0.0
  %1079 = vmatprep.subr.mxu0 0.0
  %1080 = vmatpush1.msra.mxu0 %v35
  %1081 = vmatprep.subr.mxu0 0.0
  %1082 = vmatpush1.msra.mxu0 %v34
  %1083 = vmatprep.subr.mxu0 0.0
  %1084 = vmatpush1.msra.mxu0 %v33
  %1085 = vmatprep.subr.mxu0 0.0
  %1086 = vmatpush1.msra.mxu0 %v32
  %1087 = vmatprep.subr.mxu0 0.0
  %1088 = vmatpush2.msra.mxu0 0.0
  %1089 = vmatprep.subr.mxu0 0.0
  %1090 = vmatpush2.msra.mxu0 0.0
  %1091 = vmatprep.subr.mxu0 0.0
  %1092 = vmatpush2.msra.mxu0 0.0
  %1093 = vmatprep.subr.mxu0 0.0
  %1094 = vmatpush2.msra.mxu0 0.0
  %1095 = vmatprep.subr.mxu0 0.0
  %1096 = vmatpush2.msra.mxu0 0.0
  %1097 = vmatprep.subr.mxu0 0.0
  %1098 = vmatpush2.msra.mxu0 0.0
  %1099 = vmatprep.subr.mxu0 0.0
  %1100 = vmatpush2.msra.mxu0 0.0
  %1101 = vmatprep.subr.mxu0 0.0
  %1102 = vmatpush2.msra.mxu0 0.0
  %1103 = vmatprep.subr.mxu0 0.0
  %1104 = vmatpush2.msra.mxu0 0.0
  %1105 = vmatprep.subr.mxu0 0.0
  %1106 = vmatpush2.msra.mxu0 0.0
  %1107 = vmatprep.subr.mxu0 0.0
  %1108 = vmatpush2.msra.mxu0 0.0
  %1109 = vmatprep.subr.mxu0 0.0
  %1110 = vmatpush2.msra.mxu0 0.0
  %1111 = vmatprep.subr.mxu0 0.0
  %1112 = vmatpush2.msra.mxu0 0.0
  %1113 = vmatprep.subr.mxu0 0.0
  %1114 = vmatpush2.msra.mxu0 0.0
  %1115 = vmatprep.subr.mxu0 0.0
  %1116 = vmatpush2.msra.mxu0 0.0
  %1117 = vmatprep.subr.mxu0 0.0
  %1118 = vmatpush2.msra.mxu0 0.0
  %1119 = vmatprep.mubr.f32.mxu0 0.0
  %1120 = vmatmul.mubr.f32.gmra.mxu0 %v1053
  %v1121 = vpop.f32.mrf.mxu0
  %v1122 = vadd.f32 0.0, %v1121
  %v1123 = vpop.f32.mrf.mxu0
  %1124 = vdwg.mxu0
  %v1125 = vadd.f32 %v131, %v1122
  %v1126 = vxor.u32 %v1125, 2147483648
  %v1127 = vmul.f32 %v1126, 1.442695
  %v1128 = vpow.pop %v1127
  %v1129 = vadd.f32 %v1128, 1.0
  %v1130 = vrcp.pop %v1129
  %v1131 = vmul.f32 1.0, %v1130
  %v1132 = vtanh.pop %v1125
  %v1134 = vrot.slane %v938, 6
  %v1136 = vmul.f32 %v1131, %v1134
  %1138 = vrot.lane.b32.xlu0 %v1132, 64
  %v1139 = vpop.permute.xlu0 %1138
  %v1141 = vmul.f32 %v1131, %v1139
  %1143 = vrot.lane.b32.xlu0 %v1141, 32
  %v1144 = vpop.permute.xlu0 %1143
  %v1146 = vadd.f32 %v1136, %v1144
  %v1147 = vtanh.pop %v1146
  %1149 = vrot.lane.b32.xlu0 %v1147, 64
  %v1150 = vpop.permute.xlu0 %1149
  %v1152 = vmul.f32 %v1131, %v1150
  %1154 = vrot.lane.b32.xlu0 %v1048, 32
  %v1155 = vpop.permute.xlu0 %1154
  %v1156 = vsel %vm52, %v1155, 0
  %1158 = vmatprep.subr.mxu0 0.0
  %1159 = vmatpush1.msra.mxu0 0.0
  %1160 = vmatprep.subr.mxu0 0.0
  %1161 = vmatpush1.msra.mxu0 0.0
  %1162 = vmatprep.subr.mxu0 0.0
  %1163 = vmatpush1.msra.mxu0 0.0
  %1164 = vmatprep.subr.mxu0 0.0
  %1165 = vmatpush1.msra.mxu0 0.0
  %1166 = vmatprep.subr.mxu0 0.0
  %1167 = vmatpush1.msra.mxu0 0.0
  %1168 = vmatprep.subr.mxu0 0.0
  %1169 = vmatpush1.msra.mxu0 0.0
  %1170 = vmatprep.subr.mxu0 0.0
  %1171 = vmatpush1.msra.mxu0 0.0
  %1172 = vmatprep.subr.mxu0 0.0
  %1173 = vmatpush1.msra.mxu0 0.0
  %1174 = vmatprep.subr.mxu0 0.0
  %1175 = vmatpush1.msra.mxu0 0.0
  %1176 = vmatprep.subr.mxu0 0.0
  %1177 = vmatpush1.msra.mxu0 0.0
  %1178 = vmatprep.subr.mxu0 0.0
  %1179 = vmatpush1.msra.mxu0 0.0
  %1180 = vmatprep.subr.mxu0 0.0
  %1181 = vmatpush1.msra.mxu0 0.0
  %1182 = vmatprep.subr.mxu0 0.0
  %1183 = vmatpush1.msra.mxu0 %v44
  %1184 = vmatprep.subr.mxu0 0.0
  %1185 = vmatpush1.msra.mxu0 %v43
  %1186 = vmatprep.subr.mxu0 0.0
  %1187 = vmatpush1.msra.mxu0 %v42
  %1188 = vmatprep.subr.mxu0 0.0
  %1189 = vmatpush1.msra.mxu0 %v41
  %1190 = vmatprep.subr.mxu0 0.0
  %1191 = vmatpush2.msra.mxu0 0.0
  %1192 = vmatprep.subr.mxu0 0.0
  %1193 = vmatpush2.msra.mxu0 0.0
  %1194 = vmatprep.subr.mxu0 0.0
  %1195 = vmatpush2.msra.mxu0 0.0
  %1196 = vmatprep.subr.mxu0 0.0
  %1197 = vmatpush2.msra.mxu0 0.0
  %1198 = vmatprep.subr.mxu0 0.0
  %1199 = vmatpush2.msra.mxu0 0.0
  %1200 = vmatprep.subr.mxu0 0.0
  %1201 = vmatpush2.msra.mxu0 0.0
  %1202 = vmatprep.subr.mxu0 0.0
  %1203 = vmatpush2.msra.mxu0 0.0
  %1204 = vmatprep.subr.mxu0 0.0
  %1205 = vmatpush2.msra.mxu0 0.0
  %1206 = vmatprep.subr.mxu0 0.0
  %1207 = vmatpush2.msra.mxu0 0.0
  %1208 = vmatprep.subr.mxu0 0.0
  %1209 = vmatpush2.msra.mxu0 0.0
  %1210 = vmatprep.subr.mxu0 0.0
  %1211 = vmatpush2.msra.mxu0 0.0
  %1212 = vmatprep.subr.mxu0 0.0
  %1213 = vmatpush2.msra.mxu0 0.0
  %1214 = vmatprep.subr.mxu0 0.0
  %1215 = vmatpush2.msra.mxu0 0.0
  %1216 = vmatprep.subr.mxu0 0.0
  %1217 = vmatpush2.msra.mxu0 0.0
  %1218 = vmatprep.subr.mxu0 0.0
  %1219 = vmatpush2.msra.mxu0 0.0
  %1220 = vmatprep.subr.mxu0 0.0
  %1221 = vmatpush2.msra.mxu0 0.0
  %1222 = vmatprep.mubr.f32.mxu0 0.0
  %1223 = vmatmul.mubr.f32.gmra.mxu0 %v1156
  %v1224 = vpop.f32.mrf.mxu0
  %v1225 = vadd.f32 0.0, %v1224
  %v1226 = vpop.f32.mrf.mxu0
  %1227 = vdwg.mxu0
  %v1229 = vrot.slane %v1225, 2
  %v1231 = vadd.f32 %v207, %v1229
  %v1232 = vxor.u32 %v1231, 2147483648
  %v1233 = vmul.f32 %v1232, 1.442695
  %v1234 = vpow.pop %v1233
  %v1235 = vadd.f32 %v1234, 1.0
  %v1236 = vrcp.pop %v1235
  %v1237 = vmul.f32 1.0, %v1236
  %v1238 = vtanh.pop %v1231
  %v1240 = vrot.slane %v1042, 2
  %v1242 = vmul.f32 %v1237, %v1240
  %1244 = vrot.lane.b32.xlu0 %v1238, 64
  %v1245 = vpop.permute.xlu0 %1244
  %v1247 = vmul.f32 %v1237, %v1245
  %1249 = vrot.lane.b32.xlu0 %v1247, 32
  %v1250 = vpop.permute.xlu0 %1249
  %v1252 = vadd.f32 %v1242, %v1250
  %v1253 = vtanh.pop %v1252
  %1255 = vrot.lane.b32.xlu0 %v1253, 64
  %v1256 = vpop.permute.xlu0 %1255
  %v1258 = vmul.f32 %v1237, %v1256
  %1260 = vrot.lane.b32.xlu0 %v1152, 32
  %v1261 = vpop.permute.xlu0 %1260
  %v1262 = vsel %vm52, %v1261, 0
  %1264 = vmatprep.subr.mxu0 0.0
  %1265 = vmatpush1.msra.mxu0 0.0
  %1266 = vmatprep.subr.mxu0 0.0
  %1267 = vmatpush1.msra.mxu0 0.0
  %1268 = vmatprep.subr.mxu0 0.0
  %1269 = vmatpush1.msra.mxu0 0.0
  %1270 = vmatprep.subr.mxu0 0.0
  %1271 = vmatpush1.msra.mxu0 0.0
  %1272 = vmatprep.subr.mxu0 0.0
  %1273 = vmatpush1.msra.mxu0 0.0
  %1274 = vmatprep.subr.mxu0 0.0
  %1275 = vmatpush1.msra.mxu0 0.0
  %1276 = vmatprep.subr.mxu0 0.0
  %1277 = vmatpush1.msra.mxu0 0.0
  %1278 = vmatprep.subr.mxu0 0.0
  %1279 = vmatpush1.msra.mxu0 0.0
  %1280 = vmatprep.subr.mxu0 0.0
  %1281 = vmatpush1.msra.mxu0 0.0
  %1282 = vmatprep.subr.mxu0 0.0
  %1283 = vmatpush1.msra.mxu0 0.0
  %1284 = vmatprep.subr.mxu0 0.0
  %1285 = vmatpush1.msra.mxu0 0.0
  %1286 = vmatprep.subr.mxu0 0.0
  %1287 = vmatpush1.msra.mxu0 0.0
  %1288 = vmatprep.subr.mxu0 0.0
  %1289 = vmatpush1.msra.mxu0 %v35
  %1290 = vmatprep.subr.mxu0 0.0
  %1291 = vmatpush1.msra.mxu0 %v34
  %1292 = vmatprep.subr.mxu0 0.0
  %1293 = vmatpush1.msra.mxu0 %v33
  %1294 = vmatprep.subr.mxu0 0.0
  %1295 = vmatpush1.msra.mxu0 %v32
  %1296 = vmatprep.subr.mxu0 0.0
  %1297 = vmatpush2.msra.mxu0 0.0
  %1298 = vmatprep.subr.mxu0 0.0
  %1299 = vmatpush2.msra.mxu0 0.0
  %1300 = vmatprep.subr.mxu0 0.0
  %1301 = vmatpush2.msra.mxu0 0.0
  %1302 = vmatprep.subr.mxu0 0.0
  %1303 = vmatpush2.msra.mxu0 0.0
  %1304 = vmatprep.subr.mxu0 0.0
  %1305 = vmatpush2.msra.mxu0 0.0
  %1306 = vmatprep.subr.mxu0 0.0
  %1307 = vmatpush2.msra.mxu0 0.0
  %1308 = vmatprep.subr.mxu0 0.0
  %1309 = vmatpush2.msra.mxu0 0.0
  %1310 = vmatprep.subr.mxu0 0.0
  %1311 = vmatpush2.msra.mxu0 0.0
  %1312 = vmatprep.subr.mxu0 0.0
  %1313 = vmatpush2.msra.mxu0 0.0
  %1314 = vmatprep.subr.mxu0 0.0
  %1315 = vmatpush2.msra.mxu0 0.0
  %1316 = vmatprep.subr.mxu0 0.0
  %1317 = vmatpush2.msra.mxu0 0.0
  %1318 = vmatprep.subr.mxu0 0.0
  %1319 = vmatpush2.msra.mxu0 0.0
  %1320 = vmatprep.subr.mxu0 0.0
  %1321 = vmatpush2.msra.mxu0 0.0
  %1322 = vmatprep.subr.mxu0 0.0
  %1323 = vmatpush2.msra.mxu0 0.0
  %1324 = vmatprep.subr.mxu0 0.0
  %1325 = vmatpush2.msra.mxu0 0.0
  %1326 = vmatprep.subr.mxu0 0.0
  %1327 = vmatpush2.msra.mxu0 0.0
  %1328 = vmatprep.mubr.f32.mxu0 0.0
  %1329 = vmatmul.mubr.f32.gmra.mxu0 %v1262
  %v1330 = vpop.f32.mrf.mxu0
  %v1331 = vadd.f32 0.0, %v1330
  %v1332 = vpop.f32.mrf.mxu0
  %1333 = vdwg.mxu0
  %v1335 = vrot.slane %v1331, 6
  %v1337 = vadd.f32 %v131, %v1335
  %v1338 = vxor.u32 %v1337, 2147483648
  %v1339 = vmul.f32 %v1338, 1.442695
  %v1340 = vpow.pop %v1339
  %v1341 = vadd.f32 %v1340, 1.0
  %v1342 = vrcp.pop %v1341
  %v1343 = vmul.f32 1.0, %v1342
  %v1344 = vtanh.pop %v1337
  %v1346 = vrot.slane %v1146, 6
  %v1348 = vmul.f32 %v1343, %v1346
  %1350 = vrot.lane.b32.xlu0 %v1344, 64
  %v1351 = vpop.permute.xlu0 %1350
  %v1353 = vmul.f32 %v1343, %v1351
  %1355 = vrot.lane.b32.xlu0 %v1353, 32
  %v1356 = vpop.permute.xlu0 %1355
  %v1358 = vadd.f32 %v1348, %v1356
  %v1359 = vtanh.pop %v1358
  %1361 = vrot.lane.b32.xlu0 %v1359, 64
  %v1362 = vpop.permute.xlu0 %1361
  %v1364 = vmul.f32 %v1343, %v1362
  %v1366 = vrot.slane %v1258, 6
  %1367 = vrot.lane.b32.xlu0 %v1366, 32
  %v1368 = vpop.permute.xlu0 %1367
  %v1369 = vsel %vm52, %v1368, 0
  %1371 = vmatprep.subr.mxu0 0.0
  %1372 = vmatpush1.msra.mxu0 0.0
  %1373 = vmatprep.subr.mxu0 0.0
  %1374 = vmatpush1.msra.mxu0 0.0
  %1375 = vmatprep.subr.mxu0 0.0
  %1376 = vmatpush1.msra.mxu0 0.0
  %1377 = vmatprep.subr.mxu0 0.0
  %1378 = vmatpush1.msra.mxu0 0.0
  %1379 = vmatprep.subr.mxu0 0.0
  %1380 = vmatpush1.msra.mxu0 0.0
  %1381 = vmatprep.subr.mxu0 0.0
  %1382 = vmatpush1.msra.mxu0 0.0
  %1383 = vmatprep.subr.mxu0 0.0
  %1384 = vmatpush1.msra.mxu0 0.0
  %1385 = vmatprep.subr.mxu0 0.0
  %1386 = vmatpush1.msra.mxu0 0.0
  %1387 = vmatprep.subr.mxu0 0.0
  %1388 = vmatpush1.msra.mxu0 0.0
  %1389 = vmatprep.subr.mxu0 0.0
  %1390 = vmatpush1.msra.mxu0 0.0
  %1391 = vmatprep.subr.mxu0 0.0
  %1392 = vmatpush1.msra.mxu0 0.0
  %1393 = vmatprep.subr.mxu0 0.0
  %1394 = vmatpush1.msra.mxu0 0.0
  %1395 = vmatprep.subr.mxu0 0.0
  %1396 = vmatpush1.msra.mxu0 %v44
  %1397 = vmatprep.subr.mxu0 0.0
  %1398 = vmatpush1.msra.mxu0 %v43
  %1399 = vmatprep.subr.mxu0 0.0
  %1400 = vmatpush1.msra.mxu0 %v42
  %1401 = vmatprep.subr.mxu0 0.0
  %1402 = vmatpush1.msra.mxu0 %v41
  %1403 = vmatprep.subr.mxu0 0.0
  %1404 = vmatpush2.msra.mxu0 0.0
  %1405 = vmatprep.subr.mxu0 0.0
  %1406 = vmatpush2.msra.mxu0 0.0
  %1407 = vmatprep.subr.mxu0 0.0
  %1408 = vmatpush2.msra.mxu0 0.0
  %1409 = vmatprep.subr.mxu0 0.0
  %1410 = vmatpush2.msra.mxu0 0.0
  %1411 = vmatprep.subr.mxu0 0.0
  %1412 = vmatpush2.msra.mxu0 0.0
  %1413 = vmatprep.subr.mxu0 0.0
  %1414 = vmatpush2.msra.mxu0 0.0
  %1415 = vmatprep.subr.mxu0 0.0
  %1416 = vmatpush2.msra.mxu0 0.0
  %1417 = vmatprep.subr.mxu0 0.0
  %1418 = vmatpush2.msra.mxu0 0.0
  %1419 = vmatprep.subr.mxu0 0.0
  %1420 = vmatpush2.msra.mxu0 0.0
  %1421 = vmatprep.subr.mxu0 0.0
  %1422 = vmatpush2.msra.mxu0 0.0
  %1423 = vmatprep.subr.mxu0 0.0
  %1424 = vmatpush2.msra.mxu0 0.0
  %1425 = vmatprep.subr.mxu0 0.0
  %1426 = vmatpush2.msra.mxu0 0.0
  %1427 = vmatprep.subr.mxu0 0.0
  %1428 = vmatpush2.msra.mxu0 0.0
  %1429 = vmatprep.subr.mxu0 0.0
  %1430 = vmatpush2.msra.mxu0 0.0
  %1431 = vmatprep.subr.mxu0 0.0
  %1432 = vmatpush2.msra.mxu0 0.0
  %1433 = vmatprep.subr.mxu0 0.0
  %1434 = vmatpush2.msra.mxu0 0.0
  %1435 = vmatprep.mubr.f32.mxu0 0.0
  %1436 = vmatmul.mubr.f32.gmra.mxu0 %v1369
  %v1437 = vpop.f32.mrf.mxu0
  %v1438 = vadd.f32 0.0, %v1437
  %v1439 = vpop.f32.mrf.mxu0
  %1440 = vdwg.mxu0
  %v1442 = vrot.slane %v1438, 4
  %v1444 = vadd.f32 %v207, %v1442
  %v1445 = vxor.u32 %v1444, 2147483648
  %v1446 = vmul.f32 %v1445, 1.442695
  %v1447 = vpow.pop %v1446
  %v1448 = vadd.f32 %v1447, 1.0
  %v1449 = vrcp.pop %v1448
  %v1450 = vmul.f32 1.0, %v1449
  %v1451 = vtanh.pop %v1444
  %v1453 = vrot.slane %v1252, 2
  %v1455 = vmul.f32 %v1450, %v1453
  %1457 = vrot.lane.b32.xlu0 %v1451, 64
  %v1458 = vpop.permute.xlu0 %1457
  %v1460 = vmul.f32 %v1450, %v1458
  %1462 = vrot.lane.b32.xlu0 %v1460, 32
  %v1463 = vpop.permute.xlu0 %1462
  %v1465 = vadd.f32 %v1455, %v1463
  %v1466 = vtanh.pop %v1465
  %1468 = vrot.lane.b32.xlu0 %v1466, 64
  %v1469 = vpop.permute.xlu0 %1468
  %v1471 = vmul.f32 %v1450, %v1469
  %v1473 = vrot.slane %v1364, 2
  %1474 = vrot.lane.b32.xlu0 %v1473, 32
  %v1475 = vpop.permute.xlu0 %1474
  %v1476 = vsel %vm52, %v1475, 0
  %1478 = vmatprep.subr.mxu0 0.0
  %1479 = vmatpush1.msra.mxu0 0.0
  %1480 = vmatprep.subr.mxu0 0.0
  %1481 = vmatpush1.msra.mxu0 0.0
  %1482 = vmatprep.subr.mxu0 0.0
  %1483 = vmatpush1.msra.mxu0 0.0
  %1484 = vmatprep.subr.mxu0 0.0
  %1485 = vmatpush1.msra.mxu0 0.0
  %1486 = vmatprep.subr.mxu0 0.0
  %1487 = vmatpush1.msra.mxu0 0.0
  %1488 = vmatprep.subr.mxu0 0.0
  %1489 = vmatpush1.msra.mxu0 0.0
  %1490 = vmatprep.subr.mxu0 0.0
  %1491 = vmatpush1.msra.mxu0 0.0
  %1492 = vmatprep.subr.mxu0 0.0
  %1493 = vmatpush1.msra.mxu0 0.0
  %1494 = vmatprep.subr.mxu0 0.0
  %1495 = vmatpush1.msra.mxu0 0.0
  %1496 = vmatprep.subr.mxu0 0.0
  %1497 = vmatpush1.msra.mxu0 0.0
  %1498 = vmatprep.subr.mxu0 0.0
  %1499 = vmatpush1.msra.mxu0 0.0
  %1500 = vmatprep.subr.mxu0 0.0
  %1501 = vmatpush1.msra.mxu0 0.0
  %1502 = vmatprep.subr.mxu0 0.0
  %1503 = vmatpush1.msra.mxu0 %v35
  %1504 = vmatprep.subr.mxu0 0.0
  %1505 = vmatpush1.msra.mxu0 %v34
  %1506 = vmatprep.subr.mxu0 0.0
  %1507 = vmatpush1.msra.mxu0 %v33
  %1508 = vmatprep.subr.mxu0 0.0
  %1509 = vmatpush1.msra.mxu0 %v32
  %1510 = vmatprep.subr.mxu0 0.0
  %1511 = vmatpush2.msra.mxu0 0.0
  %1512 = vmatprep.subr.mxu0 0.0
  %1513 = vmatpush2.msra.mxu0 0.0
  %1514 = vmatprep.subr.mxu0 0.0
  %1515 = vmatpush2.msra.mxu0 0.0
  %1516 = vmatprep.subr.mxu0 0.0
  %1517 = vmatpush2.msra.mxu0 0.0
  %1518 = vmatprep.subr.mxu0 0.0
  %1519 = vmatpush2.msra.mxu0 0.0
  %1520 = vmatprep.subr.mxu0 0.0
  %1521 = vmatpush2.msra.mxu0 0.0
  %1522 = vmatprep.subr.mxu0 0.0
  %1523 = vmatpush2.msra.mxu0 0.0
  %1524 = vmatprep.subr.mxu0 0.0
  %1525 = vmatpush2.msra.mxu0 0.0
  %1526 = vmatprep.subr.mxu0 0.0
  %1527 = vmatpush2.msra.mxu0 0.0
  %1528 = vmatprep.subr.mxu0 0.0
  %1529 = vmatpush2.msra.mxu0 0.0
  %1530 = vmatprep.subr.mxu0 0.0
  %1531 = vmatpush2.msra.mxu0 0.0
  %1532 = vmatprep.subr.mxu0 0.0
  %1533 = vmatpush2.msra.mxu0 0.0
  %1534 = vmatprep.subr.mxu0 0.0
  %1535 = vmatpush2.msra.mxu0 0.0
  %1536 = vmatprep.subr.mxu0 0.0
  %1537 = vmatpush2.msra.mxu0 0.0
  %1538 = vmatprep.subr.mxu0 0.0
  %1539 = vmatpush2.msra.mxu0 0.0
  %1540 = vmatprep.subr.mxu0 0.0
  %1541 = vmatpush2.msra.mxu0 0.0
  %1542 = vmatprep.mubr.f32.mxu0 0.0
  %1543 = vmatmul.mubr.f32.gmra.mxu0 %v1476
  %v1544 = vpop.f32.mrf.mxu0
  %v1545 = vadd.f32 0.0, %v1544
  %v1546 = vpop.f32.mrf.mxu0
  %1547 = vdwg.mxu0
  %v1549 = vrot.slane %v1545, 4
  %v1551 = vadd.f32 %v131, %v1549
  %v1552 = vxor.u32 %v1551, 2147483648
  %v1553 = vmul.f32 %v1552, 1.442695
  %v1554 = vpow.pop %v1553
  %v1555 = vadd.f32 %v1554, 1.0
  %v1556 = vrcp.pop %v1555
  %v1557 = vmul.f32 1.0, %v1556
  %v1558 = vtanh.pop %v1551
  %v1560 = vrot.slane %v1358, 6
  %v1562 = vmul.f32 %v1557, %v1560
  %1564 = vrot.lane.b32.xlu0 %v1558, 64
  %v1565 = vpop.permute.xlu0 %1564
  %v1567 = vmul.f32 %v1557, %v1565
  %1569 = vrot.lane.b32.xlu0 %v1567, 32
  %v1570 = vpop.permute.xlu0 %1569
  %v1572 = vadd.f32 %v1562, %v1570
  %v1573 = vtanh.pop %v1572
  %1575 = vrot.lane.b32.xlu0 %v1573, 64
  %v1576 = vpop.permute.xlu0 %1575
  %v1578 = vmul.f32 %v1557, %v1576
  %v1580 = vrot.slane %v1471, 4
  %1581 = vrot.lane.b32.xlu0 %v1580, 32
  %v1582 = vpop.permute.xlu0 %1581
  %v1583 = vsel %vm52, %v1582, 0
  %1585 = vmatprep.subr.mxu0 0.0
  %1586 = vmatpush1.msra.mxu0 0.0
  %1587 = vmatprep.subr.mxu0 0.0
  %1588 = vmatpush1.msra.mxu0 0.0
  %1589 = vmatprep.subr.mxu0 0.0
  %1590 = vmatpush1.msra.mxu0 0.0
  %1591 = vmatprep.subr.mxu0 0.0
  %1592 = vmatpush1.msra.mxu0 0.0
  %1593 = vmatprep.subr.mxu0 0.0
  %1594 = vmatpush1.msra.mxu0 0.0
  %1595 = vmatprep.subr.mxu0 0.0
  %1596 = vmatpush1.msra.mxu0 0.0
  %1597 = vmatprep.subr.mxu0 0.0
  %1598 = vmatpush1.msra.mxu0 0.0
  %1599 = vmatprep.subr.mxu0 0.0
  %1600 = vmatpush1.msra.mxu0 0.0
  %1601 = vmatprep.subr.mxu0 0.0
  %1602 = vmatpush1.msra.mxu0 0.0
  %1603 = vmatprep.subr.mxu0 0.0
  %1604 = vmatpush1.msra.mxu0 0.0
  %1605 = vmatprep.subr.mxu0 0.0
  %1606 = vmatpush1.msra.mxu0 0.0
  %1607 = vmatprep.subr.mxu0 0.0
  %1608 = vmatpush1.msra.mxu0 0.0
  %1609 = vmatprep.subr.mxu0 0.0
  %1610 = vmatpush1.msra.mxu0 %v44
  %1611 = vmatprep.subr.mxu0 0.0
  %1612 = vmatpush1.msra.mxu0 %v43
  %1613 = vmatprep.subr.mxu0 0.0
  %1614 = vmatpush1.msra.mxu0 %v42
  %1615 = vmatprep.subr.mxu0 0.0
  %1616 = vmatpush1.msra.mxu0 %v41
  %1617 = vmatprep.subr.mxu0 0.0
  %1618 = vmatpush2.msra.mxu0 0.0
  %1619 = vmatprep.subr.mxu0 0.0
  %1620 = vmatpush2.msra.mxu0 0.0
  %1621 = vmatprep.subr.mxu0 0.0
  %1622 = vmatpush2.msra.mxu0 0.0
  %1623 = vmatprep.subr.mxu0 0.0
  %1624 = vmatpush2.msra.mxu0 0.0
  %1625 = vmatprep.subr.mxu0 0.0
  %1626 = vmatpush2.msra.mxu0 0.0
  %1627 = vmatprep.subr.mxu0 0.0
  %1628 = vmatpush2.msra.mxu0 0.0
  %1629 = vmatprep.subr.mxu0 0.0
  %1630 = vmatpush2.msra.mxu0 0.0
  %1631 = vmatprep.subr.mxu0 0.0
  %1632 = vmatpush2.msra.mxu0 0.0
  %1633 = vmatprep.subr.mxu0 0.0
  %1634 = vmatpush2.msra.mxu0 0.0
  %1635 = vmatprep.subr.mxu0 0.0
  %1636 = vmatpush2.msra.mxu0 0.0
  %1637 = vmatprep.subr.mxu0 0.0
  %1638 = vmatpush2.msra.mxu0 0.0
  %1639 = vmatprep.subr.mxu0 0.0
  %1640 = vmatpush2.msra.mxu0 0.0
  %1641 = vmatprep.subr.mxu0 0.0
  %1642 = vmatpush2.msra.mxu0 0.0
  %1643 = vmatprep.subr.mxu0 0.0
  %1644 = vmatpush2.msra.mxu0 0.0
  %1645 = vmatprep.subr.mxu0 0.0
  %1646 = vmatpush2.msra.mxu0 0.0
  %1647 = vmatprep.subr.mxu0 0.0
  %1648 = vmatpush2.msra.mxu0 0.0
  %1649 = vmatprep.mubr.f32.mxu0 0.0
  %1650 = vmatmul.mubr.f32.gmra.mxu0 %v1583
  %v1651 = vpop.f32.mrf.mxu0
  %v1652 = vadd.f32 0.0, %v1651
  %v1653 = vpop.f32.mrf.mxu0
  %1654 = vdwg.mxu0
  %v1656 = vrot.slane %v1652, 6
  %v1658 = vadd.f32 %v207, %v1656
  %v1659 = vxor.u32 %v1658, 2147483648
  %v1660 = vmul.f32 %v1659, 1.442695
  %v1661 = vpow.pop %v1660
  %v1662 = vadd.f32 %v1661, 1.0
  %v1663 = vrcp.pop %v1662
  %v1664 = vmul.f32 1.0, %v1663
  %v1665 = vtanh.pop %v1658
  %v1667 = vrot.slane %v1465, 2
  %v1669 = vmul.f32 %v1664, %v1667
  %1671 = vrot.lane.b32.xlu0 %v1665, 64
  %v1672 = vpop.permute.xlu0 %1671
  %v1674 = vmul.f32 %v1664, %v1672
  %1676 = vrot.lane.b32.xlu0 %v1674, 32
  %v1677 = vpop.permute.xlu0 %1676
  %v1679 = vadd.f32 %v1669, %v1677
  %v1680 = vtanh.pop %v1679
  %1682 = vrot.lane.b32.xlu0 %v1680, 64
  %v1683 = vpop.permute.xlu0 %1682
  %v1685 = vmul.f32 %v1664, %v1683
  %v1687 = vrot.slane %v1578, 4
  %1688 = vrot.lane.b32.xlu0 %v1687, 32
  %v1689 = vpop.permute.xlu0 %1688
  %v1690 = vsel %vm52, %v1689, 0
  %1692 = vmatprep.subr.mxu0 0.0
  %1693 = vmatpush1.msra.mxu0 0.0
  %1694 = vmatprep.subr.mxu0 0.0
  %1695 = vmatpush1.msra.mxu0 0.0
  %1696 = vmatprep.subr.mxu0 0.0
  %1697 = vmatpush1.msra.mxu0 0.0
  %1698 = vmatprep.subr.mxu0 0.0
  %1699 = vmatpush1.msra.mxu0 0.0
  %1700 = vmatprep.subr.mxu0 0.0
  %1701 = vmatpush1.msra.mxu0 0.0
  %1702 = vmatprep.subr.mxu0 0.0
  %1703 = vmatpush1.msra.mxu0 0.0
  %1704 = vmatprep.subr.mxu0 0.0
  %1705 = vmatpush1.msra.mxu0 0.0
  %1706 = vmatprep.subr.mxu0 0.0
  %1707 = vmatpush1.msra.mxu0 0.0
  %1708 = vmatprep.subr.mxu0 0.0
  %1709 = vmatpush1.msra.mxu0 0.0
  %1710 = vmatprep.subr.mxu0 0.0
  %1711 = vmatpush1.msra.mxu0 0.0
  %1712 = vmatprep.subr.mxu0 0.0
  %1713 = vmatpush1.msra.mxu0 0.0
  %1714 = vmatprep.subr.mxu0 0.0
  %1715 = vmatpush1.msra.mxu0 0.0
  %1716 = vmatprep.subr.mxu0 0.0
  %1717 = vmatpush1.msra.mxu0 %v35
  %1718 = vmatprep.subr.mxu0 0.0
  %1719 = vmatpush1.msra.mxu0 %v34
  %1720 = vmatprep.subr.mxu0 0.0
  %1721 = vmatpush1.msra.mxu0 %v33
  %1722 = vmatprep.subr.mxu0 0.0
  %1723 = vmatpush1.msra.mxu0 %v32
  %1724 = vmatprep.subr.mxu0 0.0
  %1725 = vmatpush2.msra.mxu0 0.0
  %1726 = vmatprep.subr.mxu0 0.0
  %1727 = vmatpush2.msra.mxu0 0.0
  %1728 = vmatprep.subr.mxu0 0.0
  %1729 = vmatpush2.msra.mxu0 0.0
  %1730 = vmatprep.subr.mxu0 0.0
  %1731 = vmatpush2.msra.mxu0 0.0
  %1732 = vmatprep.subr.mxu0 0.0
  %1733 = vmatpush2.msra.mxu0 0.0
  %1734 = vmatprep.subr.mxu0 0.0
  %1735 = vmatpush2.msra.mxu0 0.0
  %1736 = vmatprep.subr.mxu0 0.0
  %1737 = vmatpush2.msra.mxu0 0.0
  %1738 = vmatprep.subr.mxu0 0.0
  %1739 = vmatpush2.msra.mxu0 0.0
  %1740 = vmatprep.subr.mxu0 0.0
  %1741 = vmatpush2.msra.mxu0 0.0
  %1742 = vmatprep.subr.mxu0 0.0
  %1743 = vmatpush2.msra.mxu0 0.0
  %1744 = vmatprep.subr.mxu0 0.0
  %1745 = vmatpush2.msra.mxu0 0.0
  %1746 = vmatprep.subr.mxu0 0.0
  %1747 = vmatpush2.msra.mxu0 0.0
  %1748 = vmatprep.subr.mxu0 0.0
  %1749 = vmatpush2.msra.mxu0 0.0
  %1750 = vmatprep.subr.mxu0 0.0
  %1751 = vmatpush2.msra.mxu0 0.0
  %1752 = vmatprep.subr.mxu0 0.0
  %1753 = vmatpush2.msra.mxu0 0.0
  %1754 = vmatprep.subr.mxu0 0.0
  %1755 = vmatpush2.msra.mxu0 0.0
  %1756 = vmatprep.mubr.f32.mxu0 0.0
  %1757 = vmatmul.mubr.f32.gmra.mxu0 %v1690
  %v1758 = vpop.f32.mrf.mxu0
  %v1759 = vadd.f32 0.0, %v1758
  %v1760 = vpop.f32.mrf.mxu0
  %1761 = vdwg.mxu0
  %v1763 = vrot.slane %v1759, 2
  %v1765 = vadd.f32 %v131, %v1763
  %v1766 = vxor.u32 %v1765, 2147483648
  %v1767 = vmul.f32 %v1766, 1.442695
  %v1768 = vpow.pop %v1767
  %v1769 = vadd.f32 %v1768, 1.0
  %v1770 = vrcp.pop %v1769
  %v1771 = vmul.f32 1.0, %v1770
  %v1772 = vtanh.pop %v1765
  %v1774 = vrot.slane %v1572, 6
  %v1776 = vmul.f32 %v1771, %v1774
  %1778 = vrot.lane.b32.xlu0 %v1772, 64
  %v1779 = vpop.permute.xlu0 %1778
  %v1781 = vmul.f32 %v1771, %v1779
  %1783 = vrot.lane.b32.xlu0 %v1781, 32
  %v1784 = vpop.permute.xlu0 %1783
  %v1786 = vadd.f32 %v1776, %v1784
  %v1787 = vtanh.pop %v1786
  %1789 = vrot.lane.b32.xlu0 %v1787, 64
  %v1790 = vpop.permute.xlu0 %1789
  %v1792 = vmul.f32 %v1771, %v1790
  %v1794 = vrot.slane %v1685, 2
  %1795 = vrot.lane.b32.xlu0 %v1794, 32
  %v1796 = vpop.permute.xlu0 %1795
  %v1797 = vsel %vm52, %v1796, 0
  %1799 = vmatprep.subr.mxu0 0.0
  %1800 = vmatpush1.msra.mxu0 0.0
  %1801 = vmatprep.subr.mxu0 0.0
  %1802 = vmatpush1.msra.mxu0 0.0
  %1803 = vmatprep.subr.mxu0 0.0
  %1804 = vmatpush1.msra.mxu0 0.0
  %1805 = vmatprep.subr.mxu0 0.0
  %1806 = vmatpush1.msra.mxu0 0.0
  %1807 = vmatprep.subr.mxu0 0.0
  %1808 = vmatpush1.msra.mxu0 0.0
  %1809 = vmatprep.subr.mxu0 0.0
  %1810 = vmatpush1.msra.mxu0 0.0
  %1811 = vmatprep.subr.mxu0 0.0
  %1812 = vmatpush1.msra.mxu0 0.0
  %1813 = vmatprep.subr.mxu0 0.0
  %1814 = vmatpush1.msra.mxu0 0.0
  %1815 = vmatprep.subr.mxu0 0.0
  %1816 = vmatpush1.msra.mxu0 0.0
  %1817 = vmatprep.subr.mxu0 0.0
  %1818 = vmatpush1.msra.mxu0 0.0
  %1819 = vmatprep.subr.mxu0 0.0
  %1820 = vmatpush1.msra.mxu0 0.0
  %1821 = vmatprep.subr.mxu0 0.0
  %1822 = vmatpush1.msra.mxu0 0.0
  %1823 = vmatprep.subr.mxu0 0.0
  %1824 = vmatpush1.msra.mxu0 %v44
  %1825 = vmatprep.subr.mxu0 0.0
  %1826 = vmatpush1.msra.mxu0 %v43
  %1827 = vmatprep.subr.mxu0 0.0
  %1828 = vmatpush1.msra.mxu0 %v42
  %1829 = vmatprep.subr.mxu0 0.0
  %1830 = vmatpush1.msra.mxu0 %v41
  %1831 = vmatprep.subr.mxu0 0.0
  %1832 = vmatpush2.msra.mxu0 0.0
  %1833 = vmatprep.subr.mxu0 0.0
  %1834 = vmatpush2.msra.mxu0 0.0
  %1835 = vmatprep.subr.mxu0 0.0
  %1836 = vmatpush2.msra.mxu0 0.0
  %1837 = vmatprep.subr.mxu0 0.0
  %1838 = vmatpush2.msra.mxu0 0.0
  %1839 = vmatprep.subr.mxu0 0.0
  %1840 = vmatpush2.msra.mxu0 0.0
  %1841 = vmatprep.subr.mxu0 0.0
  %1842 = vmatpush2.msra.mxu0 0.0
  %1843 = vmatprep.subr.mxu0 0.0
  %1844 = vmatpush2.msra.mxu0 0.0
  %1845 = vmatprep.subr.mxu0 0.0
  %1846 = vmatpush2.msra.mxu0 0.0
  %1847 = vmatprep.subr.mxu0 0.0
  %1848 = vmatpush2.msra.mxu0 0.0
  %1849 = vmatprep.subr.mxu0 0.0
  %1850 = vmatpush2.msra.mxu0 0.0
  %1851 = vmatprep.subr.mxu0 0.0
  %1852 = vmatpush2.msra.mxu0 0.0
  %1853 = vmatprep.subr.mxu0 0.0
  %1854 = vmatpush2.msra.mxu0 0.0
  %1855 = vmatprep.subr.mxu0 0.0
  %1856 = vmatpush2.msra.mxu0 0.0
  %1857 = vmatprep.subr.mxu0 0.0
  %1858 = vmatpush2.msra.mxu0 0.0
  %1859 = vmatprep.subr.mxu0 0.0
  %1860 = vmatpush2.msra.mxu0 0.0
  %1861 = vmatprep.subr.mxu0 0.0
  %1862 = vmatpush2.msra.mxu0 0.0
  %1863 = vmatprep.mubr.f32.mxu0 0.0
  %1864 = vmatmul.mubr.f32.gmra.mxu0 %v1797
  %v1865 = vpop.f32.mrf.mxu0
  %v1866 = vadd.f32 0.0, %v1865
  %v1867 = vpop.f32.mrf.mxu0
  %1868 = vdwg.mxu0
  %v1869 = vadd.f32 %v207, %v1866
  %v1870 = vxor.u32 %v1869, 2147483648
  %v1871 = vmul.f32 %v1870, 1.442695
  %v1872 = vpow.pop %v1871
  %v1873 = vadd.f32 %v1872, 1.0
  %v1874 = vrcp.pop %v1873
  %v1875 = vmul.f32 1.0, %v1874
  %v1876 = vtanh.pop %v1869
  %v1878 = vrot.slane %v1679, 2
  %v1880 = vmul.f32 %v1875, %v1878
  %1882 = vrot.lane.b32.xlu0 %v1876, 64
  %v1883 = vpop.permute.xlu0 %1882
  %v1885 = vmul.f32 %v1875, %v1883
  %1887 = vrot.lane.b32.xlu0 %v1885, 32
  %v1888 = vpop.permute.xlu0 %1887
  %v1890 = vadd.f32 %v1880, %v1888
  %v1891 = vtanh.pop %v1890
  %1893 = vrot.lane.b32.xlu0 %v1891, 64
  %v1894 = vpop.permute.xlu0 %1893
  %v1896 = vmul.f32 %v1875, %v1894
  %v1898 = vrot.slane %v1792, 6
  %1899 = vrot.lane.b32.xlu0 %v1898, 32
  %v1900 = vpop.permute.xlu0 %1899
  %1910 = vrot.lane.b32.xlu0 %v1896, 64
  %v1911 = vpop.permute.xlu0 %1910
  %1912 = vrot.lane.b32.xlu0 %v1794, 64
  %v1913 = vpop.permute.xlu0 %1912
  %1914 = vrot.lane.b32.xlu0 %v1580, 64
  %v1915 = vpop.permute.xlu0 %1914
  %1916 = vrot.lane.b32.xlu0 %v1366, 64
  %v1917 = vpop.permute.xlu0 %1916
  %1918 = vrot.lane.b32.xlu0 %v1048, 64
  %v1919 = vpop.permute.xlu0 %1918
  %1920 = vrot.lane.b32.xlu0 %v946, 64
  %v1921 = vpop.permute.xlu0 %1920
  %1922 = vrot.lane.b32.xlu0 %v732, 64
  %v1923 = vpop.permute.xlu0 %1922
  %1924 = vrot.lane.b32.xlu0 %v518, 64
  %v1925 = vpop.permute.xlu0 %1924
  %v1934 = vsel %vm52, %v413, %v1911
  %v1935 = vsel %vm52, %v627, %v1913
  %v1936 = vsel %vm52, %v841, %v1915
  %v1937 = vsel %vm52, %v1052, %v1917
  %v1938 = vsel %vm52, %v1261, %v1919
  %v1939 = vsel %vm52, %v1475, %v1921
  %v1940 = vsel %vm52, %v1689, %v1923
  %v1941 = vsel %vm52, %v1900, %v1925
  %vm1942 = vcmask 517120
  %1943 = vst.msk [vmem:[%s7] sm:$0x3] %vm1942, %v1934
  %1944 = vst.msk [vmem:[%s7 + $0x2] sm:$0x3] %vm1942, %v1935
  %1945 = vst.msk [vmem:[%s7 + $0x4] sm:$0x3] %vm1942, %v1936
  %1946 = vst.msk [vmem:[%s7 + $0x6] sm:$0x3] %vm1942, %v1937
  %1947 = vst.msk [vmem:[%s7 + $0x8] sm:$0x3] %vm1942, %v1938
  %1948 = vst.msk [vmem:[%s7 + $0xa] sm:$0x3] %vm1942, %v1939
  %1949 = vst.msk [vmem:[%s7 + $0xc] sm:$0x3] %vm1942, %v1940
  %1950 = vst.msk [vmem:[%s7 + $0xe] sm:$0x3] %vm1942, %v1941
  // Predicated region
  $region30: #{sentiment_net_forward.2} parent=0 // pred_check
    _
  $region31: #{sentiment_net_forward.2} parent=0 // pred_check_branch
    %1952 = sbr.rel (0) target = $region33
  $region32: #{sentiment_net_forward.2} parent=0 // pred_region
    _
  $region33: #{sentiment_net_forward.2} parent=0 // pred_fallthru
    _
  // Predicated region
  $region34: #{sentiment_net_forward.2} parent=0 // pred_check
    _
  $region35: #{sentiment_net_forward.2} parent=0 // pred_check_branch
    %1954 = sbr.rel (0) target = $region37
  $region36: #{sentiment_net_forward.2} parent=0 // pred_region
    _
  $region37: #{sentiment_net_forward.2} parent=0 // pred_fallthru
    _

// kernel: sentiment_net_forward.3
$region0: #{sentiment_net_forward.3}
  #allocation0 [shape = 'u32[]', space=smem, size = 0x4, offset = 0x4, fixed_abs, tag = 'smem constant byte address 0x4 - core index']
  #allocation1 [shape = 'u32[144,128]{1,0:T(1,128)}', space=vmem, size = 0x12000, scoped, tag = 'internal scratch']
  %s0 = inlined_call_operand.vmem [shape: f32[16,64], index: 0, kind: input, shape index: {}]
  %s1 = inlined_call_operand.vmem [shape: f32[64,128], index: 1, kind: input, shape index: {}]
  %s2 = inlined_call_operand.vmem [shape: f32[32,128], index: 2, kind: input, shape index: {}]
  %s3 = inlined_call_operand.vmem [shape: f32[1,128], index: 3, kind: input, shape index: {}]
  %s4 = inlined_call_operand.vmem [shape: f32[64,128], index: 4, kind: input, shape index: {}]
  %s5 = inlined_call_operand.vmem [shape: f32[32,128], index: 5, kind: input, shape index: {}]
  %s6 = inlined_call_operand.vmem [shape: f32[1,128], index: 6, kind: input, shape index: {}]
  %s7 = inlined_call_operand.vmem [shape: f32[128,2], index: 7, kind: input, shape index: {}]
  %s8 = inlined_call_operand.vmem [shape: f32[1,2], index: 8, kind: input, shape index: {}]
  %s9 = inlined_call_operand.hbm [shape: f32[2,2], index: 9, kind: output, shape index: {}]
  %s10 = sld [smem:[#allocation0]]
  $region46: #{sentiment_net_forward.3} parent=0
    _
  %s12 = ssub.s32 1, %s10
  %s13 = scalar_select 0, %s12, %s10
  $region1: #{sentiment_net_forward.3} parent=0
    #allocation2 [shape = 'u8[1024]{0}', space=vmem, size = 0x400, scoped, tag = 'output window, operand 0, single buffered']
    #allocation3 [shape = 's32[1]{0}', space=sflag, size = 0x4, scoped, tag = 'scoped memory for sentiment_net_forward.3']
    %14 = vsyncpa [#allocation3], 0
    // Predicated region
    $region2: #{sentiment_net_forward.3} parent=1 // pred_check
      _
    $region3: #{sentiment_net_forward.3} parent=1 // pred_check_branch
      %16 = sbr.rel (0) target = $region5
    $region4: #{sentiment_net_forward.3} parent=1 // pred_region
      _
    $region5: #{sentiment_net_forward.3} parent=1 // pred_fallthru
      _
    // Predicated region
    $region6: #{sentiment_net_forward.3} parent=1 // pred_check
      _
    $region7: #{sentiment_net_forward.3} parent=1 // pred_check_branch
      %18 = sbr.rel (0) target = $region9
    $region8: #{sentiment_net_forward.3} parent=1 // pred_region
      _
    $region9: #{sentiment_net_forward.3} parent=1 // pred_fallthru
      _
    // Predicated region
    $region10: #{sentiment_net_forward.3} parent=1 // pred_check
      _
    $region11: #{sentiment_net_forward.3} parent=1 // pred_check_branch
      %20 = sbr.rel (0) target = $region13
    $region12: #{sentiment_net_forward.3} parent=1 // pred_region
      _
    $region13: #{sentiment_net_forward.3} parent=1 // pred_fallthru
      _
    // Predicated region
    $region14: #{sentiment_net_forward.3} parent=1 // pred_check
      _
    $region15: #{sentiment_net_forward.3} parent=1 // pred_check_branch
      %22 = sbr.rel (0) target = $region17
    $region16: #{sentiment_net_forward.3} parent=1 // pred_region
      _
    $region17: #{sentiment_net_forward.3} parent=1 // pred_fallthru
      _
    // Predicated region
    $region18: #{sentiment_net_forward.3} parent=1 // pred_check
      _
    $region19: #{sentiment_net_forward.3} parent=1 // pred_check_branch
      %24 = sbr.rel (0) target = $region21
    $region20: #{sentiment_net_forward.3} parent=1 // pred_region
      _
    $region21: #{sentiment_net_forward.3} parent=1 // pred_fallthru
      _
    // Predicated region
    $region22: #{sentiment_net_forward.3} parent=1 // pred_check
      _
    $region23: #{sentiment_net_forward.3} parent=1 // pred_check_branch
      %26 = sbr.rel (0) target = $region25
    $region24: #{sentiment_net_forward.3} parent=1 // pred_region
      _
    $region25: #{sentiment_net_forward.3} parent=1 // pred_fallthru
      _
    // Predicated region
    $region26: #{sentiment_net_forward.3} parent=1 // pred_check
      _
    $region27: #{sentiment_net_forward.3} parent=1 // pred_check_branch
      %28 = sbr.rel (0) target = $region29
    $region28: #{sentiment_net_forward.3} parent=1 // pred_region
      _
    $region29: #{sentiment_net_forward.3} parent=1 // pred_fallthru
      _
    // Predicated region
    $region30: #{sentiment_net_forward.3} parent=1 // pred_check
      _
    $region31: #{sentiment_net_forward.3} parent=1 // pred_check_branch
      %30 = sbr.rel (0) target = $region33
    $region32: #{sentiment_net_forward.3} parent=1 // pred_region
      _
    $region33: #{sentiment_net_forward.3} parent=1 // pred_fallthru
      _
    // Predicated region
    $region34: #{sentiment_net_forward.3} parent=1 // pred_check
      _
    $region35: #{sentiment_net_forward.3} parent=1 // pred_check_branch
      %32 = sbr.rel (0) target = $region37
    $region36: #{sentiment_net_forward.3} parent=1 // pred_region
      _
    $region37: #{sentiment_net_forward.3} parent=1 // pred_fallthru
      _
    %v33 = vld [vmem:[%s0] sm:$0xff]
    %v34 = vld [vmem:[%s0 + $0x8] sm:$0xff]
    %v35 = vld [vmem:[%s1] sm:$0xff]
    %v36 = vld [vmem:[%s1 + $0x8] sm:$0xff]
    %v37 = vld [vmem:[%s1 + $0x10] sm:$0xff]
    %v38 = vld [vmem:[%s1 + $0x18] sm:$0xff]
    %v39 = vld [vmem:[%s1 + $0x20] sm:$0xff]
    %v40 = vld [vmem:[%s1 + $0x28] sm:$0xff]
    %v41 = vld [vmem:[%s1 + $0x30] sm:$0xff]
    %v42 = vld [vmem:[%s1 + $0x38] sm:$0xff]
    %v43 = vld [vmem:[%s2] sm:$0xff]
    %v44 = vld [vmem:[%s2 + $0x8] sm:$0xff]
    %v45 = vld [vmem:[%s2 + $0x10] sm:$0xff]
    %v46 = vld [vmem:[%s2 + $0x18] sm:$0xff]
    %v47 = vld [vmem:[%s3] sm:$0x1]
    %v48 = vld [vmem:[%s4] sm:$0xff]
    %v49 = vld [vmem:[%s4 + $0x8] sm:$0xff]
    %v50 = vld [vmem:[%s4 + $0x10] sm:$0xff]
    %v51 = vld [vmem:[%s4 + $0x18] sm:$0xff]
    %v52 = vld [vmem:[%s4 + $0x20] sm:$0xff]
    %v53 = vld [vmem:[%s4 + $0x28] sm:$0xff]
    %v54 = vld [vmem:[%s4 + $0x30] sm:$0xff]
    %v55 = vld [vmem:[%s4 + $0x38] sm:$0xff]
    %v56 = vld [vmem:[%s5] sm:$0xff]
    %v57 = vld [vmem:[%s5 + $0x8] sm:$0xff]
    %v58 = vld [vmem:[%s5 + $0x10] sm:$0xff]
    %v59 = vld [vmem:[%s5 + $0x18] sm:$0xff]
    %v60 = vld [vmem:[%s6] sm:$0x1]
    %v62 = vlaneseq
    %v63 = vshrl.u32 %v62, 7
    %v64 = vsub.s32 0, %v63
    %v65 = vrot.slane %v47, %v64
    %vm67 = vcmask 523264
    %v69 = vsel %vm67, %v33, 0
    %v72 = vsel %vm67, %v34, 0
    %74 = vmatprep.subr.mxu0 0.0
    %75 = vmatpush1.msra.mxu0 0.0
    %76 = vmatprep.subr.mxu0 0.0
    %77 = vmatpush1.msra.mxu0 0.0
    %78 = vmatprep.subr.mxu0 0.0
    %79 = vmatpush1.msra.mxu0 0.0
    %80 = vmatprep.subr.mxu0 0.0
    %81 = vmatpush1.msra.mxu0 0.0
    %82 = vmatprep.subr.mxu0 0.0
    %83 = vmatpush1.msra.mxu0 0.0
    %84 = vmatprep.subr.mxu0 0.0
    %85 = vmatpush1.msra.mxu0 0.0
    %86 = vmatprep.subr.mxu0 0.0
    %87 = vmatpush1.msra.mxu0 0.0
    %88 = vmatprep.subr.mxu0 0.0
    %89 = vmatpush1.msra.mxu0 0.0
    %90 = vmatprep.subr.mxu0 0.0
    %91 = vmatpush1.msra.mxu0 %v42
    %92 = vmatprep.subr.mxu0 0.0
    %93 = vmatpush1.msra.mxu0 %v41
    %94 = vmatprep.subr.mxu0 0.0
    %95 = vmatpush1.msra.mxu0 %v40
    %96 = vmatprep.subr.mxu0 0.0
    %97 = vmatpush1.msra.mxu0 %v39
    %98 = vmatprep.subr.mxu0 0.0
    %99 = vmatpush1.msra.mxu0 %v38
    %100 = vmatprep.subr.mxu0 0.0
    %101 = vmatpush1.msra.mxu0 %v37
    %102 = vmatprep.subr.mxu0 0.0
    %103 = vmatpush1.msra.mxu0 %v36
    %104 = vmatprep.subr.mxu0 0.0
    %105 = vmatpush1.msra.mxu0 %v35
    %106 = vmatprep.subr.mxu0 0.0
    %107 = vmatpush2.msra.mxu0 0.0
    %108 = vmatprep.subr.mxu0 0.0
    %109 = vmatpush2.msra.mxu0 0.0
    %110 = vmatprep.subr.mxu0 0.0
    %111 = vmatpush2.msra.mxu0 0.0
    %112 = vmatprep.subr.mxu0 0.0
    %113 = vmatpush2.msra.mxu0 0.0
    %114 = vmatprep.subr.mxu0 0.0
    %115 = vmatpush2.msra.mxu0 0.0
    %116 = vmatprep.subr.mxu0 0.0
    %117 = vmatpush2.msra.mxu0 0.0
    %118 = vmatprep.subr.mxu0 0.0
    %119 = vmatpush2.msra.mxu0 0.0
    %120 = vmatprep.subr.mxu0 0.0
    %121 = vmatpush2.msra.mxu0 0.0
    %122 = vmatprep.subr.mxu0 0.0
    %123 = vmatpush2.msra.mxu0 0.0
    %124 = vmatprep.subr.mxu0 0.0
    %125 = vmatpush2.msra.mxu0 0.0
    %126 = vmatprep.subr.mxu0 0.0
    %127 = vmatpush2.msra.mxu0 0.0
    %128 = vmatprep.subr.mxu0 0.0
    %129 = vmatpush2.msra.mxu0 0.0
    %130 = vmatprep.subr.mxu0 0.0
    %131 = vmatpush2.msra.mxu0 0.0
    %132 = vmatprep.subr.mxu0 0.0
    %133 = vmatpush2.msra.mxu0 0.0
    %134 = vmatprep.subr.mxu0 0.0
    %135 = vmatpush2.msra.mxu0 0.0
    %136 = vmatprep.subr.mxu0 0.0
    %137 = vmatpush2.msra.mxu0 0.0
    %138 = vmatprep.mubr.f32.mxu0 0.0
    %139 = vmatmul.mubr.f32.gmra.mxu0 %v69
    %v140 = vpop.f32.mrf.mxu0
    %v141 = vadd.f32 %v65, %v140
    %v142 = vpop.f32.mrf.mxu0
    %143 = vmatprep.mubr.f32.mxu0 0.0
    %144 = vmatmul.mubr.f32.gmra.mxu0 %v72
    %v145 = vpop.f32.mrf.mxu0
    %v146 = vadd.f32 %v65, %v145
    %v147 = vpop.f32.mrf.mxu0
    %148 = vdwg.mxu0
    %v150 = vlaneseq
    %v151 = vshrl.u32 %v150, 7
    %v152 = vsub.s32 0, %v151
    %v153 = vrot.slane %v60, %v152
    %155 = vmatprep.subr.mxu0 0.0
    %156 = vmatpush1.msra.mxu0 0.0
    %157 = vmatprep.subr.mxu0 0.0
    %158 = vmatpush1.msra.mxu0 0.0
    %159 = vmatprep.subr.mxu0 0.0
    %160 = vmatpush1.msra.mxu0 0.0
    %161 = vmatprep.subr.mxu0 0.0
    %162 = vmatpush1.msra.mxu0 0.0
    %163 = vmatprep.subr.mxu0 0.0
    %164 = vmatpush1.msra.mxu0 0.0
    %165 = vmatprep.subr.mxu0 0.0
    %166 = vmatpush1.msra.mxu0 0.0
    %167 = vmatprep.subr.mxu0 0.0
    %168 = vmatpush1.msra.mxu0 0.0
    %169 = vmatprep.subr.mxu0 0.0
    %170 = vmatpush1.msra.mxu0 0.0
    %171 = vmatprep.subr.mxu0 0.0
    %172 = vmatpush1.msra.mxu0 %v55
    %173 = vmatprep.subr.mxu0 0.0
    %174 = vmatpush1.msra.mxu0 %v54
    %175 = vmatprep.subr.mxu0 0.0
    %176 = vmatpush1.msra.mxu0 %v53
    %177 = vmatprep.subr.mxu0 0.0
    %178 = vmatpush1.msra.mxu0 %v52
    %179 = vmatprep.subr.mxu0 0.0
    %180 = vmatpush1.msra.mxu0 %v51
    %181 = vmatprep.subr.mxu0 0.0
    %182 = vmatpush1.msra.mxu0 %v50
    %183 = vmatprep.subr.mxu0 0.0
    %184 = vmatpush1.msra.mxu0 %v49
    %185 = vmatprep.subr.mxu0 0.0
    %186 = vmatpush1.msra.mxu0 %v48
    %187 = vmatprep.subr.mxu0 0.0
    %188 = vmatpush2.msra.mxu0 0.0
    %189 = vmatprep.subr.mxu0 0.0
    %190 = vmatpush2.msra.mxu0 0.0
    %191 = vmatprep.subr.mxu0 0.0
    %192 = vmatpush2.msra.mxu0 0.0
    %193 = vmatprep.subr.mxu0 0.0
    %194 = vmatpush2.msra.mxu0 0.0
    %195 = vmatprep.subr.mxu0 0.0
    %196 = vmatpush2.msra.mxu0 0.0
    %197 = vmatprep.subr.mxu0 0.0
    %198 = vmatpush2.msra.mxu0 0.0
    %199 = vmatprep.subr.mxu0 0.0
    %200 = vmatpush2.msra.mxu0 0.0
    %201 = vmatprep.subr.mxu0 0.0
    %202 = vmatpush2.msra.mxu0 0.0
    %203 = vmatprep.subr.mxu0 0.0
    %204 = vmatpush2.msra.mxu0 0.0
    %205 = vmatprep.subr.mxu0 0.0
    %206 = vmatpush2.msra.mxu0 0.0
    %207 = vmatprep.subr.mxu0 0.0
    %208 = vmatpush2.msra.mxu0 0.0
    %209 = vmatprep.subr.mxu0 0.0
    %210 = vmatpush2.msra.mxu0 0.0
    %211 = vmatprep.subr.mxu0 0.0
    %212 = vmatpush2.msra.mxu0 0.0
    %213 = vmatprep.subr.mxu0 0.0
    %214 = vmatpush2.msra.mxu0 0.0
    %215 = vmatprep.subr.mxu0 0.0
    %216 = vmatpush2.msra.mxu0 0.0
    %217 = vmatprep.subr.mxu0 0.0
    %218 = vmatpush2.msra.mxu0 0.0
    %219 = vmatprep.mubr.f32.mxu0 0.0
    %220 = vmatmul.mubr.f32.gmra.mxu0 %v69
    %v221 = vpop.f32.mrf.mxu0
    %v222 = vadd.f32 %v153, %v221
    %v223 = vpop.f32.mrf.mxu0
    %224 = vmatprep.mubr.f32.mxu0 0.0
    %225 = vmatmul.mubr.f32.gmra.mxu0 %v72
    %v226 = vpop.f32.mrf.mxu0
    %v227 = vadd.f32 %v153, %v226
    %v228 = vpop.f32.mrf.mxu0
    %229 = vdwg.mxu0
    %vm230 = vcmask 261120
    %v232 = vsel %vm230, 0.0, 0
    %234 = vmatprep.subr.mxu0 0.0
    %235 = vmatpush1.msra.mxu0 0.0
    %236 = vmatprep.subr.mxu0 0.0
    %237 = vmatpush1.msra.mxu0 0.0
    %238 = vmatprep.subr.mxu0 0.0
    %239 = vmatpush1.msra.mxu0 0.0
    %240 = vmatprep.subr.mxu0 0.0
    %241 = vmatpush1.msra.mxu0 0.0
    %242 = vmatprep.subr.mxu0 0.0
    %243 = vmatpush1.msra.mxu0 0.0
    %244 = vmatprep.subr.mxu0 0.0
    %245 = vmatpush1.msra.mxu0 0.0
    %246 = vmatprep.subr.mxu0 0.0
    %247 = vmatpush1.msra.mxu0 0.0
    %248 = vmatprep.subr.mxu0 0.0
    %249 = vmatpush1.msra.mxu0 0.0
    %250 = vmatprep.subr.mxu0 0.0
    %251 = vmatpush1.msra.mxu0 0.0
    %252 = vmatprep.subr.mxu0 0.0
    %253 = vmatpush1.msra.mxu0 0.0
    %254 = vmatprep.subr.mxu0 0.0
    %255 = vmatpush1.msra.mxu0 0.0
    %256 = vmatprep.subr.mxu0 0.0
    %257 = vmatpush1.msra.mxu0 0.0
    %258 = vmatprep.subr.mxu0 0.0
    %259 = vmatpush1.msra.mxu0 %v46
    %260 = vmatprep.subr.mxu0 0.0
    %261 = vmatpush1.msra.mxu0 %v45
    %262 = vmatprep.subr.mxu0 0.0
    %263 = vmatpush1.msra.mxu0 %v44
    %264 = vmatprep.subr.mxu0 0.0
    %265 = vmatpush1.msra.mxu0 %v43
    %266 = vmatprep.subr.mxu0 0.0
    %267 = vmatpush2.msra.mxu0 0.0
    %268 = vmatprep.subr.mxu0 0.0
    %269 = vmatpush2.msra.mxu0 0.0
    %270 = vmatprep.subr.mxu0 0.0
    %271 = vmatpush2.msra.mxu0 0.0
    %272 = vmatprep.subr.mxu0 0.0
    %273 = vmatpush2.msra.mxu0 0.0
    %274 = vmatprep.subr.mxu0 0.0
    %275 = vmatpush2.msra.mxu0 0.0
    %276 = vmatprep.subr.mxu0 0.0
    %277 = vmatpush2.msra.mxu0 0.0
    %278 = vmatprep.subr.mxu0 0.0
    %279 = vmatpush2.msra.mxu0 0.0
    %280 = vmatprep.subr.mxu0 0.0
    %281 = vmatpush2.msra.mxu0 0.0
    %282 = vmatprep.subr.mxu0 0.0
    %283 = vmatpush2.msra.mxu0 0.0
    %284 = vmatprep.subr.mxu0 0.0
    %285 = vmatpush2.msra.mxu0 0.0
    %286 = vmatprep.subr.mxu0 0.0
    %287 = vmatpush2.msra.mxu0 0.0
    %288 = vmatprep.subr.mxu0 0.0
    %289 = vmatpush2.msra.mxu0 0.0
    %290 = vmatprep.subr.mxu0 0.0
    %291 = vmatpush2.msra.mxu0 0.0
    %292 = vmatprep.subr.mxu0 0.0
    %293 = vmatpush2.msra.mxu0 0.0
    %294 = vmatprep.subr.mxu0 0.0
    %295 = vmatpush2.msra.mxu0 0.0
    %296 = vmatprep.subr.mxu0 0.0
    %297 = vmatpush2.msra.mxu0 0.0
    %298 = vmatprep.mubr.f32.mxu0 0.0
    %299 = vmatmul.mubr.f32.gmra.mxu0 %v232
    %v300 = vpop.f32.mrf.mxu0
    %v301 = vadd.f32 0.0, %v300
    %v302 = vpop.f32.mrf.mxu0
    %303 = vdwg.mxu0
    %v304 = vadd.f32 %v141, %v301
    %v305 = vxor.u32 %v304, 2147483648
    %v306 = vmul.f32 %v305, 1.442695
    %v307 = vpow.pop %v306
    %v308 = vadd.f32 %v307, 1.0
    %v309 = vrcp.pop %v308
    %v310 = vmul.f32 1.0, %v309
    %v311 = vtanh.pop %v304
    %v312 = vmul.f32 %v310, 0.0
    %314 = vrot.lane.b32.xlu0 %v311, 64
    %v315 = vpop.permute.xlu0 %314
    %v317 = vmul.f32 %v310, %v315
    %319 = vrot.lane.b32.xlu0 %v317, 32
    %v320 = vpop.permute.xlu0 %319
    %v322 = vadd.f32 %v312, %v320
    %v323 = vtanh.pop %v322
    %325 = vrot.lane.b32.xlu0 %v323, 64
    %v326 = vpop.permute.xlu0 %325
    %v328 = vmul.f32 %v310, %v326
    %329 = vmatprep.subr.mxu0 0.0
    %330 = vmatpush1.msra.mxu0 0.0
    %331 = vmatprep.subr.mxu0 0.0
    %332 = vmatpush1.msra.mxu0 0.0
    %333 = vmatprep.subr.mxu0 0.0
    %334 = vmatpush1.msra.mxu0 0.0
    %335 = vmatprep.subr.mxu0 0.0
    %336 = vmatpush1.msra.mxu0 0.0
    %337 = vmatprep.subr.mxu0 0.0
    %338 = vmatpush1.msra.mxu0 0.0
    %339 = vmatprep.subr.mxu0 0.0
    %340 = vmatpush1.msra.mxu0 0.0
    %341 = vmatprep.subr.mxu0 0.0
    %342 = vmatpush1.msra.mxu0 0.0
    %343 = vmatprep.subr.mxu0 0.0
    %344 = vmatpush1.msra.mxu0 0.0
    %345 = vmatprep.subr.mxu0 0.0
    %346 = vmatpush1.msra.mxu0 0.0
    %347 = vmatprep.subr.mxu0 0.0
    %348 = vmatpush1.msra.mxu0 0.0
    %349 = vmatprep.subr.mxu0 0.0
    %350 = vmatpush1.msra.mxu0 0.0
    %351 = vmatprep.subr.mxu0 0.0
    %352 = vmatpush1.msra.mxu0 0.0
    %353 = vmatprep.subr.mxu0 0.0
    %354 = vmatpush1.msra.mxu0 %v59
    %355 = vmatprep.subr.mxu0 0.0
    %356 = vmatpush1.msra.mxu0 %v58
    %357 = vmatprep.subr.mxu0 0.0
    %358 = vmatpush1.msra.mxu0 %v57
    %359 = vmatprep.subr.mxu0 0.0
    %360 = vmatpush1.msra.mxu0 %v56
    %361 = vmatprep.subr.mxu0 0.0
    %362 = vmatpush2.msra.mxu0 0.0
    %363 = vmatprep.subr.mxu0 0.0
    %364 = vmatpush2.msra.mxu0 0.0
    %365 = vmatprep.subr.mxu0 0.0
    %366 = vmatpush2.msra.mxu0 0.0
    %367 = vmatprep.subr.mxu0 0.0
    %368 = vmatpush2.msra.mxu0 0.0
    %369 = vmatprep.subr.mxu0 0.0
    %370 = vmatpush2.msra.mxu0 0.0
    %371 = vmatprep.subr.mxu0 0.0
    %372 = vmatpush2.msra.mxu0 0.0
    %373 = vmatprep.subr.mxu0 0.0
    %374 = vmatpush2.msra.mxu0 0.0
    %375 = vmatprep.subr.mxu0 0.0
    %376 = vmatpush2.msra.mxu0 0.0
    %377 = vmatprep.subr.mxu0 0.0
    %378 = vmatpush2.msra.mxu0 0.0
    %379 = vmatprep.subr.mxu0 0.0
    %380 = vmatpush2.msra.mxu0 0.0
    %381 = vmatprep.subr.mxu0 0.0
    %382 = vmatpush2.msra.mxu0 0.0
    %383 = vmatprep.subr.mxu0 0.0
    %384 = vmatpush2.msra.mxu0 0.0
    %385 = vmatprep.subr.mxu0 0.0
    %386 = vmatpush2.msra.mxu0 0.0
    %387 = vmatprep.subr.mxu0 0.0
    %388 = vmatpush2.msra.mxu0 0.0
    %389 = vmatprep.subr.mxu0 0.0
    %390 = vmatpush2.msra.mxu0 0.0
    %391 = vmatprep.subr.mxu0 0.0
    %392 = vmatpush2.msra.mxu0 0.0
    %393 = vmatprep.mubr.f32.mxu0 0.0
    %394 = vmatmul.mubr.f32.gmra.mxu0 %v232
    %v395 = vpop.f32.mrf.mxu0
    %v396 = vadd.f32 0.0, %v395
    %v397 = vpop.f32.mrf.mxu0
    %398 = vdwg.mxu0
    %v400 = vrot.slane %v396, 2
    %v402 = vadd.f32 %v227, %v400
    %v403 = vxor.u32 %v402, 2147483648
    %v404 = vmul.f32 %v403, 1.442695
    %v405 = vpow.pop %v404
    %v406 = vadd.f32 %v405, 1.0
    %v407 = vrcp.pop %v406
    %v408 = vmul.f32 1.0, %v407
    %v409 = vtanh.pop %v402
    %v410 = vmul.f32 %v408, 0.0
    %412 = vrot.lane.b32.xlu0 %v409, 64
    %v413 = vpop.permute.xlu0 %412
    %v415 = vmul.f32 %v408, %v413
    %417 = vrot.lane.b32.xlu0 %v415, 32
    %v418 = vpop.permute.xlu0 %417
    %v420 = vadd.f32 %v410, %v418
    %v421 = vtanh.pop %v420
    %423 = vrot.lane.b32.xlu0 %v421, 64
    %v424 = vpop.permute.xlu0 %423
    %v426 = vmul.f32 %v408, %v424
    %428 = vrot.lane.b32.xlu0 %v328, 32
    %v429 = vpop.permute.xlu0 %428
    %v430 = vsel %vm230, %v429, 0
    %432 = vmatprep.subr.mxu0 0.0
    %433 = vmatpush1.msra.mxu0 0.0
    %434 = vmatprep.subr.mxu0 0.0
    %435 = vmatpush1.msra.mxu0 0.0
    %436 = vmatprep.subr.mxu0 0.0
    %437 = vmatpush1.msra.mxu0 0.0
    %438 = vmatprep.subr.mxu0 0.0
    %439 = vmatpush1.msra.mxu0 0.0
    %440 = vmatprep.subr.mxu0 0.0
    %441 = vmatpush1.msra.mxu0 0.0
    %442 = vmatprep.subr.mxu0 0.0
    %443 = vmatpush1.msra.mxu0 0.0
    %444 = vmatprep.subr.mxu0 0.0
    %445 = vmatpush1.msra.mxu0 0.0
    %446 = vmatprep.subr.mxu0 0.0
    %447 = vmatpush1.msra.mxu0 0.0
    %448 = vmatprep.subr.mxu0 0.0
    %449 = vmatpush1.msra.mxu0 0.0
    %450 = vmatprep.subr.mxu0 0.0
    %451 = vmatpush1.msra.mxu0 0.0
    %452 = vmatprep.subr.mxu0 0.0
    %453 = vmatpush1.msra.mxu0 0.0
    %454 = vmatprep.subr.mxu0 0.0
    %455 = vmatpush1.msra.mxu0 0.0
    %456 = vmatprep.subr.mxu0 0.0
    %457 = vmatpush1.msra.mxu0 %v46
    %458 = vmatprep.subr.mxu0 0.0
    %459 = vmatpush1.msra.mxu0 %v45
    %460 = vmatprep.subr.mxu0 0.0
    %461 = vmatpush1.msra.mxu0 %v44
    %462 = vmatprep.subr.mxu0 0.0
    %463 = vmatpush1.msra.mxu0 %v43
    %464 = vmatprep.subr.mxu0 0.0
    %465 = vmatpush2.msra.mxu0 0.0
    %466 = vmatprep.subr.mxu0 0.0
    %467 = vmatpush2.msra.mxu0 0.0
    %468 = vmatprep.subr.mxu0 0.0
    %469 = vmatpush2.msra.mxu0 0.0
    %470 = vmatprep.subr.mxu0 0.0
    %471 = vmatpush2.msra.mxu0 0.0
    %472 = vmatprep.subr.mxu0 0.0
    %473 = vmatpush2.msra.mxu0 0.0
    %474 = vmatprep.subr.mxu0 0.0
    %475 = vmatpush2.msra.mxu0 0.0
    %476 = vmatprep.subr.mxu0 0.0
    %477 = vmatpush2.msra.mxu0 0.0
    %478 = vmatprep.subr.mxu0 0.0
    %479 = vmatpush2.msra.mxu0 0.0
    %480 = vmatprep.subr.mxu0 0.0
    %481 = vmatpush2.msra.mxu0 0.0
    %482 = vmatprep.subr.mxu0 0.0
    %483 = vmatpush2.msra.mxu0 0.0
    %484 = vmatprep.subr.mxu0 0.0
    %485 = vmatpush2.msra.mxu0 0.0
    %486 = vmatprep.subr.mxu0 0.0
    %487 = vmatpush2.msra.mxu0 0.0
    %488 = vmatprep.subr.mxu0 0.0
    %489 = vmatpush2.msra.mxu0 0.0
    %490 = vmatprep.subr.mxu0 0.0
    %491 = vmatpush2.msra.mxu0 0.0
    %492 = vmatprep.subr.mxu0 0.0
    %493 = vmatpush2.msra.mxu0 0.0
    %494 = vmatprep.subr.mxu0 0.0
    %495 = vmatpush2.msra.mxu0 0.0
    %496 = vmatprep.mubr.f32.mxu0 0.0
    %497 = vmatmul.mubr.f32.gmra.mxu0 %v430
    %v498 = vpop.f32.mrf.mxu0
    %v499 = vadd.f32 0.0, %v498
    %v500 = vpop.f32.mrf.mxu0
    %501 = vdwg.mxu0
    %v503 = vrot.slane %v499, 6
    %v505 = vadd.f32 %v141, %v503
    %v506 = vxor.u32 %v505, 2147483648
    %v507 = vmul.f32 %v506, 1.442695
    %v508 = vpow.pop %v507
    %v509 = vadd.f32 %v508, 1.0
    %v510 = vrcp.pop %v509
    %v511 = vmul.f32 1.0, %v510
    %v512 = vtanh.pop %v505
    %v514 = vrot.slane %v322, 6
    %v516 = vmul.f32 %v511, %v514
    %518 = vrot.lane.b32.xlu0 %v512, 64
    %v519 = vpop.permute.xlu0 %518
    %v521 = vmul.f32 %v511, %v519
    %523 = vrot.lane.b32.xlu0 %v521, 32
    %v524 = vpop.permute.xlu0 %523
    %v526 = vadd.f32 %v516, %v524
    %v527 = vtanh.pop %v526
    %529 = vrot.lane.b32.xlu0 %v527, 64
    %v530 = vpop.permute.xlu0 %529
    %v532 = vmul.f32 %v511, %v530
    %v534 = vrot.slane %v426, 6
    %535 = vrot.lane.b32.xlu0 %v534, 32
    %v536 = vpop.permute.xlu0 %535
    %v537 = vsel %vm230, %v536, 0
    %539 = vmatprep.subr.mxu0 0.0
    %540 = vmatpush1.msra.mxu0 0.0
    %541 = vmatprep.subr.mxu0 0.0
    %542 = vmatpush1.msra.mxu0 0.0
    %543 = vmatprep.subr.mxu0 0.0
    %544 = vmatpush1.msra.mxu0 0.0
    %545 = vmatprep.subr.mxu0 0.0
    %546 = vmatpush1.msra.mxu0 0.0
    %547 = vmatprep.subr.mxu0 0.0
    %548 = vmatpush1.msra.mxu0 0.0
    %549 = vmatprep.subr.mxu0 0.0
    %550 = vmatpush1.msra.mxu0 0.0
    %551 = vmatprep.subr.mxu0 0.0
    %552 = vmatpush1.msra.mxu0 0.0
    %553 = vmatprep.subr.mxu0 0.0
    %554 = vmatpush1.msra.mxu0 0.0
    %555 = vmatprep.subr.mxu0 0.0
    %556 = vmatpush1.msra.mxu0 0.0
    %557 = vmatprep.subr.mxu0 0.0
    %558 = vmatpush1.msra.mxu0 0.0
    %559 = vmatprep.subr.mxu0 0.0
    %560 = vmatpush1.msra.mxu0 0.0
    %561 = vmatprep.subr.mxu0 0.0
    %562 = vmatpush1.msra.mxu0 0.0
    %563 = vmatprep.subr.mxu0 0.0
    %564 = vmatpush1.msra.mxu0 %v59
    %565 = vmatprep.subr.mxu0 0.0
    %566 = vmatpush1.msra.mxu0 %v58
    %567 = vmatprep.subr.mxu0 0.0
    %568 = vmatpush1.msra.mxu0 %v57
    %569 = vmatprep.subr.mxu0 0.0
    %570 = vmatpush1.msra.mxu0 %v56
    %571 = vmatprep.subr.mxu0 0.0
    %572 = vmatpush2.msra.mxu0 0.0
    %573 = vmatprep.subr.mxu0 0.0
    %574 = vmatpush2.msra.mxu0 0.0
    %575 = vmatprep.subr.mxu0 0.0
    %576 = vmatpush2.msra.mxu0 0.0
    %577 = vmatprep.subr.mxu0 0.0
    %578 = vmatpush2.msra.mxu0 0.0
    %579 = vmatprep.subr.mxu0 0.0
    %580 = vmatpush2.msra.mxu0 0.0
    %581 = vmatprep.subr.mxu0 0.0
    %582 = vmatpush2.msra.mxu0 0.0
    %583 = vmatprep.subr.mxu0 0.0
    %584 = vmatpush2.msra.mxu0 0.0
    %585 = vmatprep.subr.mxu0 0.0
    %586 = vmatpush2.msra.mxu0 0.0
    %587 = vmatprep.subr.mxu0 0.0
    %588 = vmatpush2.msra.mxu0 0.0
    %589 = vmatprep.subr.mxu0 0.0
    %590 = vmatpush2.msra.mxu0 0.0
    %591 = vmatprep.subr.mxu0 0.0
    %592 = vmatpush2.msra.mxu0 0.0
    %593 = vmatprep.subr.mxu0 0.0
    %594 = vmatpush2.msra.mxu0 0.0
    %595 = vmatprep.subr.mxu0 0.0
    %596 = vmatpush2.msra.mxu0 0.0
    %597 = vmatprep.subr.mxu0 0.0
    %598 = vmatpush2.msra.mxu0 0.0
    %599 = vmatprep.subr.mxu0 0.0
    %600 = vmatpush2.msra.mxu0 0.0
    %601 = vmatprep.subr.mxu0 0.0
    %602 = vmatpush2.msra.mxu0 0.0
    %603 = vmatprep.mubr.f32.mxu0 0.0
    %604 = vmatmul.mubr.f32.gmra.mxu0 %v537
    %v605 = vpop.f32.mrf.mxu0
    %v606 = vadd.f32 0.0, %v605
    %v607 = vpop.f32.mrf.mxu0
    %608 = vdwg.mxu0
    %v610 = vrot.slane %v606, 4
    %v612 = vadd.f32 %v227, %v610
    %v613 = vxor.u32 %v612, 2147483648
    %v614 = vmul.f32 %v613, 1.442695
    %v615 = vpow.pop %v614
    %v616 = vadd.f32 %v615, 1.0
    %v617 = vrcp.pop %v616
    %v618 = vmul.f32 1.0, %v617
    %v619 = vtanh.pop %v612
    %v621 = vrot.slane %v420, 2
    %v623 = vmul.f32 %v618, %v621
    %625 = vrot.lane.b32.xlu0 %v619, 64
    %v626 = vpop.permute.xlu0 %625
    %v628 = vmul.f32 %v618, %v626
    %630 = vrot.lane.b32.xlu0 %v628, 32
    %v631 = vpop.permute.xlu0 %630
    %v633 = vadd.f32 %v623, %v631
    %v634 = vtanh.pop %v633
    %636 = vrot.lane.b32.xlu0 %v634, 64
    %v637 = vpop.permute.xlu0 %636
    %v639 = vmul.f32 %v618, %v637
    %v641 = vrot.slane %v532, 2
    %642 = vrot.lane.b32.xlu0 %v641, 32
    %v643 = vpop.permute.xlu0 %642
    %v644 = vsel %vm230, %v643, 0
    %646 = vmatprep.subr.mxu0 0.0
    %647 = vmatpush1.msra.mxu0 0.0
    %648 = vmatprep.subr.mxu0 0.0
    %649 = vmatpush1.msra.mxu0 0.0
    %650 = vmatprep.subr.mxu0 0.0
    %651 = vmatpush1.msra.mxu0 0.0
    %652 = vmatprep.subr.mxu0 0.0
    %653 = vmatpush1.msra.mxu0 0.0
    %654 = vmatprep.subr.mxu0 0.0
    %655 = vmatpush1.msra.mxu0 0.0
    %656 = vmatprep.subr.mxu0 0.0
    %657 = vmatpush1.msra.mxu0 0.0
    %658 = vmatprep.subr.mxu0 0.0
    %659 = vmatpush1.msra.mxu0 0.0
    %660 = vmatprep.subr.mxu0 0.0
    %661 = vmatpush1.msra.mxu0 0.0
    %662 = vmatprep.subr.mxu0 0.0
    %663 = vmatpush1.msra.mxu0 0.0
    %664 = vmatprep.subr.mxu0 0.0
    %665 = vmatpush1.msra.mxu0 0.0
    %666 = vmatprep.subr.mxu0 0.0
    %667 = vmatpush1.msra.mxu0 0.0
    %668 = vmatprep.subr.mxu0 0.0
    %669 = vmatpush1.msra.mxu0 0.0
    %670 = vmatprep.subr.mxu0 0.0
    %671 = vmatpush1.msra.mxu0 %v46
    %672 = vmatprep.subr.mxu0 0.0
    %673 = vmatpush1.msra.mxu0 %v45
    %674 = vmatprep.subr.mxu0 0.0
    %675 = vmatpush1.msra.mxu0 %v44
    %676 = vmatprep.subr.mxu0 0.0
    %677 = vmatpush1.msra.mxu0 %v43
    %678 = vmatprep.subr.mxu0 0.0
    %679 = vmatpush2.msra.mxu0 0.0
    %680 = vmatprep.subr.mxu0 0.0
    %681 = vmatpush2.msra.mxu0 0.0
    %682 = vmatprep.subr.mxu0 0.0
    %683 = vmatpush2.msra.mxu0 0.0
    %684 = vmatprep.subr.mxu0 0.0
    %685 = vmatpush2.msra.mxu0 0.0
    %686 = vmatprep.subr.mxu0 0.0
    %687 = vmatpush2.msra.mxu0 0.0
    %688 = vmatprep.subr.mxu0 0.0
    %689 = vmatpush2.msra.mxu0 0.0
    %690 = vmatprep.subr.mxu0 0.0
    %691 = vmatpush2.msra.mxu0 0.0
    %692 = vmatprep.subr.mxu0 0.0
    %693 = vmatpush2.msra.mxu0 0.0
    %694 = vmatprep.subr.mxu0 0.0
    %695 = vmatpush2.msra.mxu0 0.0
    %696 = vmatprep.subr.mxu0 0.0
    %697 = vmatpush2.msra.mxu0 0.0
    %698 = vmatprep.subr.mxu0 0.0
    %699 = vmatpush2.msra.mxu0 0.0
    %700 = vmatprep.subr.mxu0 0.0
    %701 = vmatpush2.msra.mxu0 0.0
    %702 = vmatprep.subr.mxu0 0.0
    %703 = vmatpush2.msra.mxu0 0.0
    %704 = vmatprep.subr.mxu0 0.0
    %705 = vmatpush2.msra.mxu0 0.0
    %706 = vmatprep.subr.mxu0 0.0
    %707 = vmatpush2.msra.mxu0 0.0
    %708 = vmatprep.subr.mxu0 0.0
    %709 = vmatpush2.msra.mxu0 0.0
    %710 = vmatprep.mubr.f32.mxu0 0.0
    %711 = vmatmul.mubr.f32.gmra.mxu0 %v644
    %v712 = vpop.f32.mrf.mxu0
    %v713 = vadd.f32 0.0, %v712
    %v714 = vpop.f32.mrf.mxu0
    %715 = vdwg.mxu0
    %v717 = vrot.slane %v713, 4
    %v719 = vadd.f32 %v141, %v717
    %v720 = vxor.u32 %v719, 2147483648
    %v721 = vmul.f32 %v720, 1.442695
    %v722 = vpow.pop %v721
    %v723 = vadd.f32 %v722, 1.0
    %v724 = vrcp.pop %v723
    %v725 = vmul.f32 1.0, %v724
    %v726 = vtanh.pop %v719
    %v728 = vrot.slane %v526, 6
    %v730 = vmul.f32 %v725, %v728
    %732 = vrot.lane.b32.xlu0 %v726, 64
    %v733 = vpop.permute.xlu0 %732
    %v735 = vmul.f32 %v725, %v733
    %737 = vrot.lane.b32.xlu0 %v735, 32
    %v738 = vpop.permute.xlu0 %737
    %v740 = vadd.f32 %v730, %v738
    %v741 = vtanh.pop %v740
    %743 = vrot.lane.b32.xlu0 %v741, 64
    %v744 = vpop.permute.xlu0 %743
    %v746 = vmul.f32 %v725, %v744
    %v748 = vrot.slane %v639, 4
    %749 = vrot.lane.b32.xlu0 %v748, 32
    %v750 = vpop.permute.xlu0 %749
    %v751 = vsel %vm230, %v750, 0
    %753 = vmatprep.subr.mxu0 0.0
    %754 = vmatpush1.msra.mxu0 0.0
    %755 = vmatprep.subr.mxu0 0.0
    %756 = vmatpush1.msra.mxu0 0.0
    %757 = vmatprep.subr.mxu0 0.0
    %758 = vmatpush1.msra.mxu0 0.0
    %759 = vmatprep.subr.mxu0 0.0
    %760 = vmatpush1.msra.mxu0 0.0
    %761 = vmatprep.subr.mxu0 0.0
    %762 = vmatpush1.msra.mxu0 0.0
    %763 = vmatprep.subr.mxu0 0.0
    %764 = vmatpush1.msra.mxu0 0.0
    %765 = vmatprep.subr.mxu0 0.0
    %766 = vmatpush1.msra.mxu0 0.0
    %767 = vmatprep.subr.mxu0 0.0
    %768 = vmatpush1.msra.mxu0 0.0
    %769 = vmatprep.subr.mxu0 0.0
    %770 = vmatpush1.msra.mxu0 0.0
    %771 = vmatprep.subr.mxu0 0.0
    %772 = vmatpush1.msra.mxu0 0.0
    %773 = vmatprep.subr.mxu0 0.0
    %774 = vmatpush1.msra.mxu0 0.0
    %775 = vmatprep.subr.mxu0 0.0
    %776 = vmatpush1.msra.mxu0 0.0
    %777 = vmatprep.subr.mxu0 0.0
    %778 = vmatpush1.msra.mxu0 %v59
    %779 = vmatprep.subr.mxu0 0.0
    %780 = vmatpush1.msra.mxu0 %v58
    %781 = vmatprep.subr.mxu0 0.0
    %782 = vmatpush1.msra.mxu0 %v57
    %783 = vmatprep.subr.mxu0 0.0
    %784 = vmatpush1.msra.mxu0 %v56
    %785 = vmatprep.subr.mxu0 0.0
    %786 = vmatpush2.msra.mxu0 0.0
    %787 = vmatprep.subr.mxu0 0.0
    %788 = vmatpush2.msra.mxu0 0.0
    %789 = vmatprep.subr.mxu0 0.0
    %790 = vmatpush2.msra.mxu0 0.0
    %791 = vmatprep.subr.mxu0 0.0
    %792 = vmatpush2.msra.mxu0 0.0
    %793 = vmatprep.subr.mxu0 0.0
    %794 = vmatpush2.msra.mxu0 0.0
    %795 = vmatprep.subr.mxu0 0.0
    %796 = vmatpush2.msra.mxu0 0.0
    %797 = vmatprep.subr.mxu0 0.0
    %798 = vmatpush2.msra.mxu0 0.0
    %799 = vmatprep.subr.mxu0 0.0
    %800 = vmatpush2.msra.mxu0 0.0
    %801 = vmatprep.subr.mxu0 0.0
    %802 = vmatpush2.msra.mxu0 0.0
    %803 = vmatprep.subr.mxu0 0.0
    %804 = vmatpush2.msra.mxu0 0.0
    %805 = vmatprep.subr.mxu0 0.0
    %806 = vmatpush2.msra.mxu0 0.0
    %807 = vmatprep.subr.mxu0 0.0
    %808 = vmatpush2.msra.mxu0 0.0
    %809 = vmatprep.subr.mxu0 0.0
    %810 = vmatpush2.msra.mxu0 0.0
    %811 = vmatprep.subr.mxu0 0.0
    %812 = vmatpush2.msra.mxu0 0.0
    %813 = vmatprep.subr.mxu0 0.0
    %814 = vmatpush2.msra.mxu0 0.0
    %815 = vmatprep.subr.mxu0 0.0
    %816 = vmatpush2.msra.mxu0 0.0
    %817 = vmatprep.mubr.f32.mxu0 0.0
    %818 = vmatmul.mubr.f32.gmra.mxu0 %v751
    %v819 = vpop.f32.mrf.mxu0
    %v820 = vadd.f32 0.0, %v819
    %v821 = vpop.f32.mrf.mxu0
    %822 = vdwg.mxu0
    %v824 = vrot.slane %v820, 6
    %v826 = vadd.f32 %v227, %v824
    %v827 = vxor.u32 %v826, 2147483648
    %v828 = vmul.f32 %v827, 1.442695
    %v829 = vpow.pop %v828
    %v830 = vadd.f32 %v829, 1.0
    %v831 = vrcp.pop %v830
    %v832 = vmul.f32 1.0, %v831
    %v833 = vtanh.pop %v826
    %v835 = vrot.slane %v633, 2
    %v837 = vmul.f32 %v832, %v835
    %839 = vrot.lane.b32.xlu0 %v833, 64
    %v840 = vpop.permute.xlu0 %839
    %v842 = vmul.f32 %v832, %v840
    %844 = vrot.lane.b32.xlu0 %v842, 32
    %v845 = vpop.permute.xlu0 %844
    %v847 = vadd.f32 %v837, %v845
    %v848 = vtanh.pop %v847
    %850 = vrot.lane.b32.xlu0 %v848, 64
    %v851 = vpop.permute.xlu0 %850
    %v853 = vmul.f32 %v832, %v851
    %v855 = vrot.slane %v746, 4
    %856 = vrot.lane.b32.xlu0 %v855, 32
    %v857 = vpop.permute.xlu0 %856
    %v858 = vsel %vm230, %v857, 0
    %860 = vmatprep.subr.mxu0 0.0
    %861 = vmatpush1.msra.mxu0 0.0
    %862 = vmatprep.subr.mxu0 0.0
    %863 = vmatpush1.msra.mxu0 0.0
    %864 = vmatprep.subr.mxu0 0.0
    %865 = vmatpush1.msra.mxu0 0.0
    %866 = vmatprep.subr.mxu0 0.0
    %867 = vmatpush1.msra.mxu0 0.0
    %868 = vmatprep.subr.mxu0 0.0
    %869 = vmatpush1.msra.mxu0 0.0
    %870 = vmatprep.subr.mxu0 0.0
    %871 = vmatpush1.msra.mxu0 0.0
    %872 = vmatprep.subr.mxu0 0.0
    %873 = vmatpush1.msra.mxu0 0.0
    %874 = vmatprep.subr.mxu0 0.0
    %875 = vmatpush1.msra.mxu0 0.0
    %876 = vmatprep.subr.mxu0 0.0
    %877 = vmatpush1.msra.mxu0 0.0
    %878 = vmatprep.subr.mxu0 0.0
    %879 = vmatpush1.msra.mxu0 0.0
    %880 = vmatprep.subr.mxu0 0.0
    %881 = vmatpush1.msra.mxu0 0.0
    %882 = vmatprep.subr.mxu0 0.0
    %883 = vmatpush1.msra.mxu0 0.0
    %884 = vmatprep.subr.mxu0 0.0
    %885 = vmatpush1.msra.mxu0 %v46
    %886 = vmatprep.subr.mxu0 0.0
    %887 = vmatpush1.msra.mxu0 %v45
    %888 = vmatprep.subr.mxu0 0.0
    %889 = vmatpush1.msra.mxu0 %v44
    %890 = vmatprep.subr.mxu0 0.0
    %891 = vmatpush1.msra.mxu0 %v43
    %892 = vmatprep.subr.mxu0 0.0
    %893 = vmatpush2.msra.mxu0 0.0
    %894 = vmatprep.subr.mxu0 0.0
    %895 = vmatpush2.msra.mxu0 0.0
    %896 = vmatprep.subr.mxu0 0.0
    %897 = vmatpush2.msra.mxu0 0.0
    %898 = vmatprep.subr.mxu0 0.0
    %899 = vmatpush2.msra.mxu0 0.0
    %900 = vmatprep.subr.mxu0 0.0
    %901 = vmatpush2.msra.mxu0 0.0
    %902 = vmatprep.subr.mxu0 0.0
    %903 = vmatpush2.msra.mxu0 0.0
    %904 = vmatprep.subr.mxu0 0.0
    %905 = vmatpush2.msra.mxu0 0.0
    %906 = vmatprep.subr.mxu0 0.0
    %907 = vmatpush2.msra.mxu0 0.0
    %908 = vmatprep.subr.mxu0 0.0
    %909 = vmatpush2.msra.mxu0 0.0
    %910 = vmatprep.subr.mxu0 0.0
    %911 = vmatpush2.msra.mxu0 0.0
    %912 = vmatprep.subr.mxu0 0.0
    %913 = vmatpush2.msra.mxu0 0.0
    %914 = vmatprep.subr.mxu0 0.0
    %915 = vmatpush2.msra.mxu0 0.0
    %916 = vmatprep.subr.mxu0 0.0
    %917 = vmatpush2.msra.mxu0 0.0
    %918 = vmatprep.subr.mxu0 0.0
    %919 = vmatpush2.msra.mxu0 0.0
    %920 = vmatprep.subr.mxu0 0.0
    %921 = vmatpush2.msra.mxu0 0.0
    %922 = vmatprep.subr.mxu0 0.0
    %923 = vmatpush2.msra.mxu0 0.0
    %924 = vmatprep.mubr.f32.mxu0 0.0
    %925 = vmatmul.mubr.f32.gmra.mxu0 %v858
    %v926 = vpop.f32.mrf.mxu0
    %v927 = vadd.f32 0.0, %v926
    %v928 = vpop.f32.mrf.mxu0
    %929 = vdwg.mxu0
    %v931 = vrot.slane %v927, 2
    %v933 = vadd.f32 %v141, %v931
    %v934 = vxor.u32 %v933, 2147483648
    %v935 = vmul.f32 %v934, 1.442695
    %v936 = vpow.pop %v935
    %v937 = vadd.f32 %v936, 1.0
    %v938 = vrcp.pop %v937
    %v939 = vmul.f32 1.0, %v938
    %v940 = vtanh.pop %v933
    %v942 = vrot.slane %v740, 6
    %v944 = vmul.f32 %v939, %v942
    %946 = vrot.lane.b32.xlu0 %v940, 64
    %v947 = vpop.permute.xlu0 %946
    %v949 = vmul.f32 %v939, %v947
    %951 = vrot.lane.b32.xlu0 %v949, 32
    %v952 = vpop.permute.xlu0 %951
    %v954 = vadd.f32 %v944, %v952
    %v955 = vtanh.pop %v954
    %957 = vrot.lane.b32.xlu0 %v955, 64
    %v958 = vpop.permute.xlu0 %957
    %v960 = vmul.f32 %v939, %v958
    %v962 = vrot.slane %v853, 2
    %963 = vrot.lane.b32.xlu0 %v962, 32
    %v964 = vpop.permute.xlu0 %963
    %v965 = vsel %vm230, %v964, 0
    %967 = vmatprep.subr.mxu0 0.0
    %968 = vmatpush1.msra.mxu0 0.0
    %969 = vmatprep.subr.mxu0 0.0
    %970 = vmatpush1.msra.mxu0 0.0
    %971 = vmatprep.subr.mxu0 0.0
    %972 = vmatpush1.msra.mxu0 0.0
    %973 = vmatprep.subr.mxu0 0.0
    %974 = vmatpush1.msra.mxu0 0.0
    %975 = vmatprep.subr.mxu0 0.0
    %976 = vmatpush1.msra.mxu0 0.0
    %977 = vmatprep.subr.mxu0 0.0
    %978 = vmatpush1.msra.mxu0 0.0
    %979 = vmatprep.subr.mxu0 0.0
    %980 = vmatpush1.msra.mxu0 0.0
    %981 = vmatprep.subr.mxu0 0.0
    %982 = vmatpush1.msra.mxu0 0.0
    %983 = vmatprep.subr.mxu0 0.0
    %984 = vmatpush1.msra.mxu0 0.0
    %985 = vmatprep.subr.mxu0 0.0
    %986 = vmatpush1.msra.mxu0 0.0
    %987 = vmatprep.subr.mxu0 0.0
    %988 = vmatpush1.msra.mxu0 0.0
    %989 = vmatprep.subr.mxu0 0.0
    %990 = vmatpush1.msra.mxu0 0.0
    %991 = vmatprep.subr.mxu0 0.0
    %992 = vmatpush1.msra.mxu0 %v59
    %993 = vmatprep.subr.mxu0 0.0
    %994 = vmatpush1.msra.mxu0 %v58
    %995 = vmatprep.subr.mxu0 0.0
    %996 = vmatpush1.msra.mxu0 %v57
    %997 = vmatprep.subr.mxu0 0.0
    %998 = vmatpush1.msra.mxu0 %v56
    %999 = vmatprep.subr.mxu0 0.0
    %1000 = vmatpush2.msra.mxu0 0.0
    %1001 = vmatprep.subr.mxu0 0.0
    %1002 = vmatpush2.msra.mxu0 0.0
    %1003 = vmatprep.subr.mxu0 0.0
    %1004 = vmatpush2.msra.mxu0 0.0
    %1005 = vmatprep.subr.mxu0 0.0
    %1006 = vmatpush2.msra.mxu0 0.0
    %1007 = vmatprep.subr.mxu0 0.0
    %1008 = vmatpush2.msra.mxu0 0.0
    %1009 = vmatprep.subr.mxu0 0.0
    %1010 = vmatpush2.msra.mxu0 0.0
    %1011 = vmatprep.subr.mxu0 0.0
    %1012 = vmatpush2.msra.mxu0 0.0
    %1013 = vmatprep.subr.mxu0 0.0
    %1014 = vmatpush2.msra.mxu0 0.0
    %1015 = vmatprep.subr.mxu0 0.0
    %1016 = vmatpush2.msra.mxu0 0.0
    %1017 = vmatprep.subr.mxu0 0.0
    %1018 = vmatpush2.msra.mxu0 0.0
    %1019 = vmatprep.subr.mxu0 0.0
    %1020 = vmatpush2.msra.mxu0 0.0
    %1021 = vmatprep.subr.mxu0 0.0
    %1022 = vmatpush2.msra.mxu0 0.0
    %1023 = vmatprep.subr.mxu0 0.0
    %1024 = vmatpush2.msra.mxu0 0.0
    %1025 = vmatprep.subr.mxu0 0.0
    %1026 = vmatpush2.msra.mxu0 0.0
    %1027 = vmatprep.subr.mxu0 0.0
    %1028 = vmatpush2.msra.mxu0 0.0
    %1029 = vmatprep.subr.mxu0 0.0
    %1030 = vmatpush2.msra.mxu0 0.0
    %1031 = vmatprep.mubr.f32.mxu0 0.0
    %1032 = vmatmul.mubr.f32.gmra.mxu0 %v965
    %v1033 = vpop.f32.mrf.mxu0
    %v1034 = vadd.f32 0.0, %v1033
    %v1035 = vpop.f32.mrf.mxu0
    %1036 = vdwg.mxu0
    %v1037 = vadd.f32 %v227, %v1034
    %v1038 = vxor.u32 %v1037, 2147483648
    %v1039 = vmul.f32 %v1038, 1.442695
    %v1040 = vpow.pop %v1039
    %v1041 = vadd.f32 %v1040, 1.0
    %v1042 = vrcp.pop %v1041
    %v1043 = vmul.f32 1.0, %v1042
    %v1044 = vtanh.pop %v1037
    %v1046 = vrot.slane %v847, 2
    %v1048 = vmul.f32 %v1043, %v1046
    %1050 = vrot.lane.b32.xlu0 %v1044, 64
    %v1051 = vpop.permute.xlu0 %1050
    %v1053 = vmul.f32 %v1043, %v1051
    %1055 = vrot.lane.b32.xlu0 %v1053, 32
    %v1056 = vpop.permute.xlu0 %1055
    %v1058 = vadd.f32 %v1048, %v1056
    %v1059 = vtanh.pop %v1058
    %1061 = vrot.lane.b32.xlu0 %v1059, 64
    %v1062 = vpop.permute.xlu0 %1061
    %v1064 = vmul.f32 %v1043, %v1062
    %v1066 = vrot.slane %v960, 6
    %1067 = vrot.lane.b32.xlu0 %v1066, 32
    %v1068 = vpop.permute.xlu0 %1067
    %v1069 = vsel %vm230, %v1068, 0
    %1071 = vmatprep.subr.mxu0 0.0
    %1072 = vmatpush1.msra.mxu0 0.0
    %1073 = vmatprep.subr.mxu0 0.0
    %1074 = vmatpush1.msra.mxu0 0.0
    %1075 = vmatprep.subr.mxu0 0.0
    %1076 = vmatpush1.msra.mxu0 0.0
    %1077 = vmatprep.subr.mxu0 0.0
    %1078 = vmatpush1.msra.mxu0 0.0
    %1079 = vmatprep.subr.mxu0 0.0
    %1080 = vmatpush1.msra.mxu0 0.0
    %1081 = vmatprep.subr.mxu0 0.0
    %1082 = vmatpush1.msra.mxu0 0.0
    %1083 = vmatprep.subr.mxu0 0.0
    %1084 = vmatpush1.msra.mxu0 0.0
    %1085 = vmatprep.subr.mxu0 0.0
    %1086 = vmatpush1.msra.mxu0 0.0
    %1087 = vmatprep.subr.mxu0 0.0
    %1088 = vmatpush1.msra.mxu0 0.0
    %1089 = vmatprep.subr.mxu0 0.0
    %1090 = vmatpush1.msra.mxu0 0.0
    %1091 = vmatprep.subr.mxu0 0.0
    %1092 = vmatpush1.msra.mxu0 0.0
    %1093 = vmatprep.subr.mxu0 0.0
    %1094 = vmatpush1.msra.mxu0 0.0
    %1095 = vmatprep.subr.mxu0 0.0
    %1096 = vmatpush1.msra.mxu0 %v46
    %1097 = vmatprep.subr.mxu0 0.0
    %1098 = vmatpush1.msra.mxu0 %v45
    %1099 = vmatprep.subr.mxu0 0.0
    %1100 = vmatpush1.msra.mxu0 %v44
    %1101 = vmatprep.subr.mxu0 0.0
    %1102 = vmatpush1.msra.mxu0 %v43
    %1103 = vmatprep.subr.mxu0 0.0
    %1104 = vmatpush2.msra.mxu0 0.0
    %1105 = vmatprep.subr.mxu0 0.0
    %1106 = vmatpush2.msra.mxu0 0.0
    %1107 = vmatprep.subr.mxu0 0.0
    %1108 = vmatpush2.msra.mxu0 0.0
    %1109 = vmatprep.subr.mxu0 0.0
    %1110 = vmatpush2.msra.mxu0 0.0
    %1111 = vmatprep.subr.mxu0 0.0
    %1112 = vmatpush2.msra.mxu0 0.0
    %1113 = vmatprep.subr.mxu0 0.0
    %1114 = vmatpush2.msra.mxu0 0.0
    %1115 = vmatprep.subr.mxu0 0.0
    %1116 = vmatpush2.msra.mxu0 0.0
    %1117 = vmatprep.subr.mxu0 0.0
    %1118 = vmatpush2.msra.mxu0 0.0
    %1119 = vmatprep.subr.mxu0 0.0
    %1120 = vmatpush2.msra.mxu0 0.0
    %1121 = vmatprep.subr.mxu0 0.0
    %1122 = vmatpush2.msra.mxu0 0.0
    %1123 = vmatprep.subr.mxu0 0.0
    %1124 = vmatpush2.msra.mxu0 0.0
    %1125 = vmatprep.subr.mxu0 0.0
    %1126 = vmatpush2.msra.mxu0 0.0
    %1127 = vmatprep.subr.mxu0 0.0
    %1128 = vmatpush2.msra.mxu0 0.0
    %1129 = vmatprep.subr.mxu0 0.0
    %1130 = vmatpush2.msra.mxu0 0.0
    %1131 = vmatprep.subr.mxu0 0.0
    %1132 = vmatpush2.msra.mxu0 0.0
    %1133 = vmatprep.subr.mxu0 0.0
    %1134 = vmatpush2.msra.mxu0 0.0
    %1135 = vmatprep.mubr.f32.mxu0 0.0
    %1136 = vmatmul.mubr.f32.gmra.mxu0 %v1069
    %v1137 = vpop.f32.mrf.mxu0
    %v1138 = vadd.f32 0.0, %v1137
    %v1139 = vpop.f32.mrf.mxu0
    %1140 = vdwg.mxu0
    %v1141 = vadd.f32 %v146, %v1138
    %v1142 = vxor.u32 %v1141, 2147483648
    %v1143 = vmul.f32 %v1142, 1.442695
    %v1144 = vpow.pop %v1143
    %v1145 = vadd.f32 %v1144, 1.0
    %v1146 = vrcp.pop %v1145
    %v1147 = vmul.f32 1.0, %v1146
    %v1148 = vtanh.pop %v1141
    %v1150 = vrot.slane %v954, 6
    %v1152 = vmul.f32 %v1147, %v1150
    %1154 = vrot.lane.b32.xlu0 %v1148, 64
    %v1155 = vpop.permute.xlu0 %1154
    %v1157 = vmul.f32 %v1147, %v1155
    %1159 = vrot.lane.b32.xlu0 %v1157, 32
    %v1160 = vpop.permute.xlu0 %1159
    %v1162 = vadd.f32 %v1152, %v1160
    %v1163 = vtanh.pop %v1162
    %1165 = vrot.lane.b32.xlu0 %v1163, 64
    %v1166 = vpop.permute.xlu0 %1165
    %v1168 = vmul.f32 %v1147, %v1166
    %1170 = vrot.lane.b32.xlu0 %v1064, 32
    %v1171 = vpop.permute.xlu0 %1170
    %v1172 = vsel %vm230, %v1171, 0
    %1174 = vmatprep.subr.mxu0 0.0
    %1175 = vmatpush1.msra.mxu0 0.0
    %1176 = vmatprep.subr.mxu0 0.0
    %1177 = vmatpush1.msra.mxu0 0.0
    %1178 = vmatprep.subr.mxu0 0.0
    %1179 = vmatpush1.msra.mxu0 0.0
    %1180 = vmatprep.subr.mxu0 0.0
    %1181 = vmatpush1.msra.mxu0 0.0
    %1182 = vmatprep.subr.mxu0 0.0
    %1183 = vmatpush1.msra.mxu0 0.0
    %1184 = vmatprep.subr.mxu0 0.0
    %1185 = vmatpush1.msra.mxu0 0.0
    %1186 = vmatprep.subr.mxu0 0.0
    %1187 = vmatpush1.msra.mxu0 0.0
    %1188 = vmatprep.subr.mxu0 0.0
    %1189 = vmatpush1.msra.mxu0 0.0
    %1190 = vmatprep.subr.mxu0 0.0
    %1191 = vmatpush1.msra.mxu0 0.0
    %1192 = vmatprep.subr.mxu0 0.0
    %1193 = vmatpush1.msra.mxu0 0.0
    %1194 = vmatprep.subr.mxu0 0.0
    %1195 = vmatpush1.msra.mxu0 0.0
    %1196 = vmatprep.subr.mxu0 0.0
    %1197 = vmatpush1.msra.mxu0 0.0
    %1198 = vmatprep.subr.mxu0 0.0
    %1199 = vmatpush1.msra.mxu0 %v59
    %1200 = vmatprep.subr.mxu0 0.0
    %1201 = vmatpush1.msra.mxu0 %v58
    %1202 = vmatprep.subr.mxu0 0.0
    %1203 = vmatpush1.msra.mxu0 %v57
    %1204 = vmatprep.subr.mxu0 0.0
    %1205 = vmatpush1.msra.mxu0 %v56
    %1206 = vmatprep.subr.mxu0 0.0
    %1207 = vmatpush2.msra.mxu0 0.0
    %1208 = vmatprep.subr.mxu0 0.0
    %1209 = vmatpush2.msra.mxu0 0.0
    %1210 = vmatprep.subr.mxu0 0.0
    %1211 = vmatpush2.msra.mxu0 0.0
    %1212 = vmatprep.subr.mxu0 0.0
    %1213 = vmatpush2.msra.mxu0 0.0
    %1214 = vmatprep.subr.mxu0 0.0
    %1215 = vmatpush2.msra.mxu0 0.0
    %1216 = vmatprep.subr.mxu0 0.0
    %1217 = vmatpush2.msra.mxu0 0.0
    %1218 = vmatprep.subr.mxu0 0.0
    %1219 = vmatpush2.msra.mxu0 0.0
    %1220 = vmatprep.subr.mxu0 0.0
    %1221 = vmatpush2.msra.mxu0 0.0
    %1222 = vmatprep.subr.mxu0 0.0
    %1223 = vmatpush2.msra.mxu0 0.0
    %1224 = vmatprep.subr.mxu0 0.0
    %1225 = vmatpush2.msra.mxu0 0.0
    %1226 = vmatprep.subr.mxu0 0.0
    %1227 = vmatpush2.msra.mxu0 0.0
    %1228 = vmatprep.subr.mxu0 0.0
    %1229 = vmatpush2.msra.mxu0 0.0
    %1230 = vmatprep.subr.mxu0 0.0
    %1231 = vmatpush2.msra.mxu0 0.0
    %1232 = vmatprep.subr.mxu0 0.0
    %1233 = vmatpush2.msra.mxu0 0.0
    %1234 = vmatprep.subr.mxu0 0.0
    %1235 = vmatpush2.msra.mxu0 0.0
    %1236 = vmatprep.subr.mxu0 0.0
    %1237 = vmatpush2.msra.mxu0 0.0
    %1238 = vmatprep.mubr.f32.mxu0 0.0
    %1239 = vmatmul.mubr.f32.gmra.mxu0 %v1172
    %v1240 = vpop.f32.mrf.mxu0
    %v1241 = vadd.f32 0.0, %v1240
    %v1242 = vpop.f32.mrf.mxu0
    %1243 = vdwg.mxu0
    %v1245 = vrot.slane %v1241, 2
    %v1247 = vadd.f32 %v222, %v1245
    %v1248 = vxor.u32 %v1247, 2147483648
    %v1249 = vmul.f32 %v1248, 1.442695
    %v1250 = vpow.pop %v1249
    %v1251 = vadd.f32 %v1250, 1.0
    %v1252 = vrcp.pop %v1251
    %v1253 = vmul.f32 1.0, %v1252
    %v1254 = vtanh.pop %v1247
    %v1256 = vrot.slane %v1058, 2
    %v1258 = vmul.f32 %v1253, %v1256
    %1260 = vrot.lane.b32.xlu0 %v1254, 64
    %v1261 = vpop.permute.xlu0 %1260
    %v1263 = vmul.f32 %v1253, %v1261
    %1265 = vrot.lane.b32.xlu0 %v1263, 32
    %v1266 = vpop.permute.xlu0 %1265
    %v1268 = vadd.f32 %v1258, %v1266
    %v1269 = vtanh.pop %v1268
    %1271 = vrot.lane.b32.xlu0 %v1269, 64
    %v1272 = vpop.permute.xlu0 %1271
    %v1274 = vmul.f32 %v1253, %v1272
    %1276 = vrot.lane.b32.xlu0 %v1168, 32
    %v1277 = vpop.permute.xlu0 %1276
    %v1278 = vsel %vm230, %v1277, 0
    %1280 = vmatprep.subr.mxu0 0.0
    %1281 = vmatpush1.msra.mxu0 0.0
    %1282 = vmatprep.subr.mxu0 0.0
    %1283 = vmatpush1.msra.mxu0 0.0
    %1284 = vmatprep.subr.mxu0 0.0
    %1285 = vmatpush1.msra.mxu0 0.0
    %1286 = vmatprep.subr.mxu0 0.0
    %1287 = vmatpush1.msra.mxu0 0.0
    %1288 = vmatprep.subr.mxu0 0.0
    %1289 = vmatpush1.msra.mxu0 0.0
    %1290 = vmatprep.subr.mxu0 0.0
    %1291 = vmatpush1.msra.mxu0 0.0
    %1292 = vmatprep.subr.mxu0 0.0
    %1293 = vmatpush1.msra.mxu0 0.0
    %1294 = vmatprep.subr.mxu0 0.0
    %1295 = vmatpush1.msra.mxu0 0.0
    %1296 = vmatprep.subr.mxu0 0.0
    %1297 = vmatpush1.msra.mxu0 0.0
    %1298 = vmatprep.subr.mxu0 0.0
    %1299 = vmatpush1.msra.mxu0 0.0
    %1300 = vmatprep.subr.mxu0 0.0
    %1301 = vmatpush1.msra.mxu0 0.0
    %1302 = vmatprep.subr.mxu0 0.0
    %1303 = vmatpush1.msra.mxu0 0.0
    %1304 = vmatprep.subr.mxu0 0.0
    %1305 = vmatpush1.msra.mxu0 %v46
    %1306 = vmatprep.subr.mxu0 0.0
    %1307 = vmatpush1.msra.mxu0 %v45
    %1308 = vmatprep.subr.mxu0 0.0
    %1309 = vmatpush1.msra.mxu0 %v44
    %1310 = vmatprep.subr.mxu0 0.0
    %1311 = vmatpush1.msra.mxu0 %v43
    %1312 = vmatprep.subr.mxu0 0.0
    %1313 = vmatpush2.msra.mxu0 0.0
    %1314 = vmatprep.subr.mxu0 0.0
    %1315 = vmatpush2.msra.mxu0 0.0
    %1316 = vmatprep.subr.mxu0 0.0
    %1317 = vmatpush2.msra.mxu0 0.0
    %1318 = vmatprep.subr.mxu0 0.0
    %1319 = vmatpush2.msra.mxu0 0.0
    %1320 = vmatprep.subr.mxu0 0.0
    %1321 = vmatpush2.msra.mxu0 0.0
    %1322 = vmatprep.subr.mxu0 0.0
    %1323 = vmatpush2.msra.mxu0 0.0
    %1324 = vmatprep.subr.mxu0 0.0
    %1325 = vmatpush2.msra.mxu0 0.0
    %1326 = vmatprep.subr.mxu0 0.0
    %1327 = vmatpush2.msra.mxu0 0.0
    %1328 = vmatprep.subr.mxu0 0.0
    %1329 = vmatpush2.msra.mxu0 0.0
    %1330 = vmatprep.subr.mxu0 0.0
    %1331 = vmatpush2.msra.mxu0 0.0
    %1332 = vmatprep.subr.mxu0 0.0
    %1333 = vmatpush2.msra.mxu0 0.0
    %1334 = vmatprep.subr.mxu0 0.0
    %1335 = vmatpush2.msra.mxu0 0.0
    %1336 = vmatprep.subr.mxu0 0.0
    %1337 = vmatpush2.msra.mxu0 0.0
    %1338 = vmatprep.subr.mxu0 0.0
    %1339 = vmatpush2.msra.mxu0 0.0
    %1340 = vmatprep.subr.mxu0 0.0
    %1341 = vmatpush2.msra.mxu0 0.0
    %1342 = vmatprep.subr.mxu0 0.0
    %1343 = vmatpush2.msra.mxu0 0.0
    %1344 = vmatprep.mubr.f32.mxu0 0.0
    %1345 = vmatmul.mubr.f32.gmra.mxu0 %v1278
    %v1346 = vpop.f32.mrf.mxu0
    %v1347 = vadd.f32 0.0, %v1346
    %v1348 = vpop.f32.mrf.mxu0
    %1349 = vdwg.mxu0
    %v1351 = vrot.slane %v1347, 6
    %v1353 = vadd.f32 %v146, %v1351
    %v1354 = vxor.u32 %v1353, 2147483648
    %v1355 = vmul.f32 %v1354, 1.442695
    %v1356 = vpow.pop %v1355
    %v1357 = vadd.f32 %v1356, 1.0
    %v1358 = vrcp.pop %v1357
    %v1359 = vmul.f32 1.0, %v1358
    %v1360 = vtanh.pop %v1353
    %v1362 = vrot.slane %v1162, 6
    %v1364 = vmul.f32 %v1359, %v1362
    %1366 = vrot.lane.b32.xlu0 %v1360, 64
    %v1367 = vpop.permute.xlu0 %1366
    %v1369 = vmul.f32 %v1359, %v1367
    %1371 = vrot.lane.b32.xlu0 %v1369, 32
    %v1372 = vpop.permute.xlu0 %1371
    %v1374 = vadd.f32 %v1364, %v1372
    %v1375 = vtanh.pop %v1374
    %1377 = vrot.lane.b32.xlu0 %v1375, 64
    %v1378 = vpop.permute.xlu0 %1377
    %v1380 = vmul.f32 %v1359, %v1378
    %v1382 = vrot.slane %v1274, 6
    %1383 = vrot.lane.b32.xlu0 %v1382, 32
    %v1384 = vpop.permute.xlu0 %1383
    %v1385 = vsel %vm230, %v1384, 0
    %1387 = vmatprep.subr.mxu0 0.0
    %1388 = vmatpush1.msra.mxu0 0.0
    %1389 = vmatprep.subr.mxu0 0.0
    %1390 = vmatpush1.msra.mxu0 0.0
    %1391 = vmatprep.subr.mxu0 0.0
    %1392 = vmatpush1.msra.mxu0 0.0
    %1393 = vmatprep.subr.mxu0 0.0
    %1394 = vmatpush1.msra.mxu0 0.0
    %1395 = vmatprep.subr.mxu0 0.0
    %1396 = vmatpush1.msra.mxu0 0.0
    %1397 = vmatprep.subr.mxu0 0.0
    %1398 = vmatpush1.msra.mxu0 0.0
    %1399 = vmatprep.subr.mxu0 0.0
    %1400 = vmatpush1.msra.mxu0 0.0
    %1401 = vmatprep.subr.mxu0 0.0
    %1402 = vmatpush1.msra.mxu0 0.0
    %1403 = vmatprep.subr.mxu0 0.0
    %1404 = vmatpush1.msra.mxu0 0.0
    %1405 = vmatprep.subr.mxu0 0.0
    %1406 = vmatpush1.msra.mxu0 0.0
    %1407 = vmatprep.subr.mxu0 0.0
    %1408 = vmatpush1.msra.mxu0 0.0
    %1409 = vmatprep.subr.mxu0 0.0
    %1410 = vmatpush1.msra.mxu0 0.0
    %1411 = vmatprep.subr.mxu0 0.0
    %1412 = vmatpush1.msra.mxu0 %v59
    %1413 = vmatprep.subr.mxu0 0.0
    %1414 = vmatpush1.msra.mxu0 %v58
    %1415 = vmatprep.subr.mxu0 0.0
    %1416 = vmatpush1.msra.mxu0 %v57
    %1417 = vmatprep.subr.mxu0 0.0
    %1418 = vmatpush1.msra.mxu0 %v56
    %1419 = vmatprep.subr.mxu0 0.0
    %1420 = vmatpush2.msra.mxu0 0.0
    %1421 = vmatprep.subr.mxu0 0.0
    %1422 = vmatpush2.msra.mxu0 0.0
    %1423 = vmatprep.subr.mxu0 0.0
    %1424 = vmatpush2.msra.mxu0 0.0
    %1425 = vmatprep.subr.mxu0 0.0
    %1426 = vmatpush2.msra.mxu0 0.0
    %1427 = vmatprep.subr.mxu0 0.0
    %1428 = vmatpush2.msra.mxu0 0.0
    %1429 = vmatprep.subr.mxu0 0.0
    %1430 = vmatpush2.msra.mxu0 0.0
    %1431 = vmatprep.subr.mxu0 0.0
    %1432 = vmatpush2.msra.mxu0 0.0
    %1433 = vmatprep.subr.mxu0 0.0
    %1434 = vmatpush2.msra.mxu0 0.0
    %1435 = vmatprep.subr.mxu0 0.0
    %1436 = vmatpush2.msra.mxu0 0.0
    %1437 = vmatprep.subr.mxu0 0.0
    %1438 = vmatpush2.msra.mxu0 0.0
    %1439 = vmatprep.subr.mxu0 0.0
    %1440 = vmatpush2.msra.mxu0 0.0
    %1441 = vmatprep.subr.mxu0 0.0
    %1442 = vmatpush2.msra.mxu0 0.0
    %1443 = vmatprep.subr.mxu0 0.0
    %1444 = vmatpush2.msra.mxu0 0.0
    %1445 = vmatprep.subr.mxu0 0.0
    %1446 = vmatpush2.msra.mxu0 0.0
    %1447 = vmatprep.subr.mxu0 0.0
    %1448 = vmatpush2.msra.mxu0 0.0
    %1449 = vmatprep.subr.mxu0 0.0
    %1450 = vmatpush2.msra.mxu0 0.0
    %1451 = vmatprep.mubr.f32.mxu0 0.0
    %1452 = vmatmul.mubr.f32.gmra.mxu0 %v1385
    %v1453 = vpop.f32.mrf.mxu0
    %v1454 = vadd.f32 0.0, %v1453
    %v1455 = vpop.f32.mrf.mxu0
    %1456 = vdwg.mxu0
    %v1458 = vrot.slane %v1454, 4
    %v1460 = vadd.f32 %v222, %v1458
    %v1461 = vxor.u32 %v1460, 2147483648
    %v1462 = vmul.f32 %v1461, 1.442695
    %v1463 = vpow.pop %v1462
    %v1464 = vadd.f32 %v1463, 1.0
    %v1465 = vrcp.pop %v1464
    %v1466 = vmul.f32 1.0, %v1465
    %v1467 = vtanh.pop %v1460
    %v1469 = vrot.slane %v1268, 2
    %v1471 = vmul.f32 %v1466, %v1469
    %1473 = vrot.lane.b32.xlu0 %v1467, 64
    %v1474 = vpop.permute.xlu0 %1473
    %v1476 = vmul.f32 %v1466, %v1474
    %1478 = vrot.lane.b32.xlu0 %v1476, 32
    %v1479 = vpop.permute.xlu0 %1478
    %v1481 = vadd.f32 %v1471, %v1479
    %v1482 = vtanh.pop %v1481
    %1484 = vrot.lane.b32.xlu0 %v1482, 64
    %v1485 = vpop.permute.xlu0 %1484
    %v1487 = vmul.f32 %v1466, %v1485
    %v1489 = vrot.slane %v1380, 2
    %1490 = vrot.lane.b32.xlu0 %v1489, 32
    %v1491 = vpop.permute.xlu0 %1490
    %v1492 = vsel %vm230, %v1491, 0
    %1494 = vmatprep.subr.mxu0 0.0
    %1495 = vmatpush1.msra.mxu0 0.0
    %1496 = vmatprep.subr.mxu0 0.0
    %1497 = vmatpush1.msra.mxu0 0.0
    %1498 = vmatprep.subr.mxu0 0.0
    %1499 = vmatpush1.msra.mxu0 0.0
    %1500 = vmatprep.subr.mxu0 0.0
    %1501 = vmatpush1.msra.mxu0 0.0
    %1502 = vmatprep.subr.mxu0 0.0
    %1503 = vmatpush1.msra.mxu0 0.0
    %1504 = vmatprep.subr.mxu0 0.0
    %1505 = vmatpush1.msra.mxu0 0.0
    %1506 = vmatprep.subr.mxu0 0.0
    %1507 = vmatpush1.msra.mxu0 0.0
    %1508 = vmatprep.subr.mxu0 0.0
    %1509 = vmatpush1.msra.mxu0 0.0
    %1510 = vmatprep.subr.mxu0 0.0
    %1511 = vmatpush1.msra.mxu0 0.0
    %1512 = vmatprep.subr.mxu0 0.0
    %1513 = vmatpush1.msra.mxu0 0.0
    %1514 = vmatprep.subr.mxu0 0.0
    %1515 = vmatpush1.msra.mxu0 0.0
    %1516 = vmatprep.subr.mxu0 0.0
    %1517 = vmatpush1.msra.mxu0 0.0
    %1518 = vmatprep.subr.mxu0 0.0
    %1519 = vmatpush1.msra.mxu0 %v46
    %1520 = vmatprep.subr.mxu0 0.0
    %1521 = vmatpush1.msra.mxu0 %v45
    %1522 = vmatprep.subr.mxu0 0.0
    %1523 = vmatpush1.msra.mxu0 %v44
    %1524 = vmatprep.subr.mxu0 0.0
    %1525 = vmatpush1.msra.mxu0 %v43
    %1526 = vmatprep.subr.mxu0 0.0
    %1527 = vmatpush2.msra.mxu0 0.0
    %1528 = vmatprep.subr.mxu0 0.0
    %1529 = vmatpush2.msra.mxu0 0.0
    %1530 = vmatprep.subr.mxu0 0.0
    %1531 = vmatpush2.msra.mxu0 0.0
    %1532 = vmatprep.subr.mxu0 0.0
    %1533 = vmatpush2.msra.mxu0 0.0
    %1534 = vmatprep.subr.mxu0 0.0
    %1535 = vmatpush2.msra.mxu0 0.0
    %1536 = vmatprep.subr.mxu0 0.0
    %1537 = vmatpush2.msra.mxu0 0.0
    %1538 = vmatprep.subr.mxu0 0.0
    %1539 = vmatpush2.msra.mxu0 0.0
    %1540 = vmatprep.subr.mxu0 0.0
    %1541 = vmatpush2.msra.mxu0 0.0
    %1542 = vmatprep.subr.mxu0 0.0
    %1543 = vmatpush2.msra.mxu0 0.0
    %1544 = vmatprep.subr.mxu0 0.0
    %1545 = vmatpush2.msra.mxu0 0.0
    %1546 = vmatprep.subr.mxu0 0.0
    %1547 = vmatpush2.msra.mxu0 0.0
    %1548 = vmatprep.subr.mxu0 0.0
    %1549 = vmatpush2.msra.mxu0 0.0
    %1550 = vmatprep.subr.mxu0 0.0
    %1551 = vmatpush2.msra.mxu0 0.0
    %1552 = vmatprep.subr.mxu0 0.0
    %1553 = vmatpush2.msra.mxu0 0.0
    %1554 = vmatprep.subr.mxu0 0.0
    %1555 = vmatpush2.msra.mxu0 0.0
    %1556 = vmatprep.subr.mxu0 0.0
    %1557 = vmatpush2.msra.mxu0 0.0
    %1558 = vmatprep.mubr.f32.mxu0 0.0
    %1559 = vmatmul.mubr.f32.gmra.mxu0 %v1492
    %v1560 = vpop.f32.mrf.mxu0
    %v1561 = vadd.f32 0.0, %v1560
    %v1562 = vpop.f32.mrf.mxu0
    %1563 = vdwg.mxu0
    %v1565 = vrot.slane %v1561, 4
    %v1567 = vadd.f32 %v146, %v1565
    %v1568 = vxor.u32 %v1567, 2147483648
    %v1569 = vmul.f32 %v1568, 1.442695
    %v1570 = vpow.pop %v1569
    %v1571 = vadd.f32 %v1570, 1.0
    %v1572 = vrcp.pop %v1571
    %v1573 = vmul.f32 1.0, %v1572
    %v1574 = vtanh.pop %v1567
    %v1576 = vrot.slane %v1374, 6
    %v1578 = vmul.f32 %v1573, %v1576
    %1580 = vrot.lane.b32.xlu0 %v1574, 64
    %v1581 = vpop.permute.xlu0 %1580
    %v1583 = vmul.f32 %v1573, %v1581
    %1585 = vrot.lane.b32.xlu0 %v1583, 32
    %v1586 = vpop.permute.xlu0 %1585
    %v1588 = vadd.f32 %v1578, %v1586
    %v1589 = vtanh.pop %v1588
    %1591 = vrot.lane.b32.xlu0 %v1589, 64
    %v1592 = vpop.permute.xlu0 %1591
    %v1594 = vmul.f32 %v1573, %v1592
    %v1596 = vrot.slane %v1487, 4
    %1597 = vrot.lane.b32.xlu0 %v1596, 32
    %v1598 = vpop.permute.xlu0 %1597
    %v1599 = vsel %vm230, %v1598, 0
    %1601 = vmatprep.subr.mxu0 0.0
    %1602 = vmatpush1.msra.mxu0 0.0
    %1603 = vmatprep.subr.mxu0 0.0
    %1604 = vmatpush1.msra.mxu0 0.0
    %1605 = vmatprep.subr.mxu0 0.0
    %1606 = vmatpush1.msra.mxu0 0.0
    %1607 = vmatprep.subr.mxu0 0.0
    %1608 = vmatpush1.msra.mxu0 0.0
    %1609 = vmatprep.subr.mxu0 0.0
    %1610 = vmatpush1.msra.mxu0 0.0
    %1611 = vmatprep.subr.mxu0 0.0
    %1612 = vmatpush1.msra.mxu0 0.0
    %1613 = vmatprep.subr.mxu0 0.0
    %1614 = vmatpush1.msra.mxu0 0.0
    %1615 = vmatprep.subr.mxu0 0.0
    %1616 = vmatpush1.msra.mxu0 0.0
    %1617 = vmatprep.subr.mxu0 0.0
    %1618 = vmatpush1.msra.mxu0 0.0
    %1619 = vmatprep.subr.mxu0 0.0
    %1620 = vmatpush1.msra.mxu0 0.0
    %1621 = vmatprep.subr.mxu0 0.0
    %1622 = vmatpush1.msra.mxu0 0.0
    %1623 = vmatprep.subr.mxu0 0.0
    %1624 = vmatpush1.msra.mxu0 0.0
    %1625 = vmatprep.subr.mxu0 0.0
    %1626 = vmatpush1.msra.mxu0 %v59
    %1627 = vmatprep.subr.mxu0 0.0
    %1628 = vmatpush1.msra.mxu0 %v58
    %1629 = vmatprep.subr.mxu0 0.0
    %1630 = vmatpush1.msra.mxu0 %v57
    %1631 = vmatprep.subr.mxu0 0.0
    %1632 = vmatpush1.msra.mxu0 %v56
    %1633 = vmatprep.subr.mxu0 0.0
    %1634 = vmatpush2.msra.mxu0 0.0
    %1635 = vmatprep.subr.mxu0 0.0
    %1636 = vmatpush2.msra.mxu0 0.0
    %1637 = vmatprep.subr.mxu0 0.0
    %1638 = vmatpush2.msra.mxu0 0.0
    %1639 = vmatprep.subr.mxu0 0.0
    %1640 = vmatpush2.msra.mxu0 0.0
    %1641 = vmatprep.subr.mxu0 0.0
    %1642 = vmatpush2.msra.mxu0 0.0
    %1643 = vmatprep.subr.mxu0 0.0
    %1644 = vmatpush2.msra.mxu0 0.0
    %1645 = vmatprep.subr.mxu0 0.0
    %1646 = vmatpush2.msra.mxu0 0.0
    %1647 = vmatprep.subr.mxu0 0.0
    %1648 = vmatpush2.msra.mxu0 0.0
    %1649 = vmatprep.subr.mxu0 0.0
    %1650 = vmatpush2.msra.mxu0 0.0
    %1651 = vmatprep.subr.mxu0 0.0
    %1652 = vmatpush2.msra.mxu0 0.0
    %1653 = vmatprep.subr.mxu0 0.0
    %1654 = vmatpush2.msra.mxu0 0.0
    %1655 = vmatprep.subr.mxu0 0.0
    %1656 = vmatpush2.msra.mxu0 0.0
    %1657 = vmatprep.subr.mxu0 0.0
    %1658 = vmatpush2.msra.mxu0 0.0
    %1659 = vmatprep.subr.mxu0 0.0
    %1660 = vmatpush2.msra.mxu0 0.0
    %1661 = vmatprep.subr.mxu0 0.0
    %1662 = vmatpush2.msra.mxu0 0.0
    %1663 = vmatprep.subr.mxu0 0.0
    %1664 = vmatpush2.msra.mxu0 0.0
    %1665 = vmatprep.mubr.f32.mxu0 0.0
    %1666 = vmatmul.mubr.f32.gmra.mxu0 %v1599
    %v1667 = vpop.f32.mrf.mxu0
    %v1668 = vadd.f32 0.0, %v1667
    %v1669 = vpop.f32.mrf.mxu0
    %1670 = vdwg.mxu0
    %v1672 = vrot.slane %v1668, 6
    %v1674 = vadd.f32 %v222, %v1672
    %v1675 = vxor.u32 %v1674, 2147483648
    %v1676 = vmul.f32 %v1675, 1.442695
    %v1677 = vpow.pop %v1676
    %v1678 = vadd.f32 %v1677, 1.0
    %v1679 = vrcp.pop %v1678
    %v1680 = vmul.f32 1.0, %v1679
    %v1681 = vtanh.pop %v1674
    %v1683 = vrot.slane %v1481, 2
    %v1685 = vmul.f32 %v1680, %v1683
    %1687 = vrot.lane.b32.xlu0 %v1681, 64
    %v1688 = vpop.permute.xlu0 %1687
    %v1690 = vmul.f32 %v1680, %v1688
    %1692 = vrot.lane.b32.xlu0 %v1690, 32
    %v1693 = vpop.permute.xlu0 %1692
    %v1695 = vadd.f32 %v1685, %v1693
    %v1696 = vtanh.pop %v1695
    %1698 = vrot.lane.b32.xlu0 %v1696, 64
    %v1699 = vpop.permute.xlu0 %1698
    %v1701 = vmul.f32 %v1680, %v1699
    %v1703 = vrot.slane %v1594, 4
    %1704 = vrot.lane.b32.xlu0 %v1703, 32
    %v1705 = vpop.permute.xlu0 %1704
    %v1706 = vsel %vm230, %v1705, 0
    %1708 = vmatprep.subr.mxu0 0.0
    %1709 = vmatpush1.msra.mxu0 0.0
    %1710 = vmatprep.subr.mxu0 0.0
    %1711 = vmatpush1.msra.mxu0 0.0
    %1712 = vmatprep.subr.mxu0 0.0
    %1713 = vmatpush1.msra.mxu0 0.0
    %1714 = vmatprep.subr.mxu0 0.0
    %1715 = vmatpush1.msra.mxu0 0.0
    %1716 = vmatprep.subr.mxu0 0.0
    %1717 = vmatpush1.msra.mxu0 0.0
    %1718 = vmatprep.subr.mxu0 0.0
    %1719 = vmatpush1.msra.mxu0 0.0
    %1720 = vmatprep.subr.mxu0 0.0
    %1721 = vmatpush1.msra.mxu0 0.0
    %1722 = vmatprep.subr.mxu0 0.0
    %1723 = vmatpush1.msra.mxu0 0.0
    %1724 = vmatprep.subr.mxu0 0.0
    %1725 = vmatpush1.msra.mxu0 0.0
    %1726 = vmatprep.subr.mxu0 0.0
    %1727 = vmatpush1.msra.mxu0 0.0
    %1728 = vmatprep.subr.mxu0 0.0
    %1729 = vmatpush1.msra.mxu0 0.0
    %1730 = vmatprep.subr.mxu0 0.0
    %1731 = vmatpush1.msra.mxu0 0.0
    %1732 = vmatprep.subr.mxu0 0.0
    %1733 = vmatpush1.msra.mxu0 %v46
    %1734 = vmatprep.subr.mxu0 0.0
    %1735 = vmatpush1.msra.mxu0 %v45
    %1736 = vmatprep.subr.mxu0 0.0
    %1737 = vmatpush1.msra.mxu0 %v44
    %1738 = vmatprep.subr.mxu0 0.0
    %1739 = vmatpush1.msra.mxu0 %v43
    %1740 = vmatprep.subr.mxu0 0.0
    %1741 = vmatpush2.msra.mxu0 0.0
    %1742 = vmatprep.subr.mxu0 0.0
    %1743 = vmatpush2.msra.mxu0 0.0
    %1744 = vmatprep.subr.mxu0 0.0
    %1745 = vmatpush2.msra.mxu0 0.0
    %1746 = vmatprep.subr.mxu0 0.0
    %1747 = vmatpush2.msra.mxu0 0.0
    %1748 = vmatprep.subr.mxu0 0.0
    %1749 = vmatpush2.msra.mxu0 0.0
    %1750 = vmatprep.subr.mxu0 0.0
    %1751 = vmatpush2.msra.mxu0 0.0
    %1752 = vmatprep.subr.mxu0 0.0
    %1753 = vmatpush2.msra.mxu0 0.0
    %1754 = vmatprep.subr.mxu0 0.0
    %1755 = vmatpush2.msra.mxu0 0.0
    %1756 = vmatprep.subr.mxu0 0.0
    %1757 = vmatpush2.msra.mxu0 0.0
    %1758 = vmatprep.subr.mxu0 0.0
    %1759 = vmatpush2.msra.mxu0 0.0
    %1760 = vmatprep.subr.mxu0 0.0
    %1761 = vmatpush2.msra.mxu0 0.0
    %1762 = vmatprep.subr.mxu0 0.0
    %1763 = vmatpush2.msra.mxu0 0.0
    %1764 = vmatprep.subr.mxu0 0.0
    %1765 = vmatpush2.msra.mxu0 0.0
    %1766 = vmatprep.subr.mxu0 0.0
    %1767 = vmatpush2.msra.mxu0 0.0
    %1768 = vmatprep.subr.mxu0 0.0
    %1769 = vmatpush2.msra.mxu0 0.0
    %1770 = vmatprep.subr.mxu0 0.0
    %1771 = vmatpush2.msra.mxu0 0.0
    %1772 = vmatprep.mubr.f32.mxu0 0.0
    %1773 = vmatmul.mubr.f32.gmra.mxu0 %v1706
    %v1774 = vpop.f32.mrf.mxu0
    %v1775 = vadd.f32 0.0, %v1774
    %v1776 = vpop.f32.mrf.mxu0
    %1777 = vdwg.mxu0
    %v1779 = vrot.slane %v1775, 2
    %v1781 = vadd.f32 %v146, %v1779
    %v1782 = vxor.u32 %v1781, 2147483648
    %v1783 = vmul.f32 %v1782, 1.442695
    %v1784 = vpow.pop %v1783
    %v1785 = vadd.f32 %v1784, 1.0
    %v1786 = vrcp.pop %v1785
    %v1787 = vmul.f32 1.0, %v1786
    %v1788 = vtanh.pop %v1781
    %v1790 = vrot.slane %v1588, 6
    %v1792 = vmul.f32 %v1787, %v1790
    %1794 = vrot.lane.b32.xlu0 %v1788, 64
    %v1795 = vpop.permute.xlu0 %1794
    %v1797 = vmul.f32 %v1787, %v1795
    %1799 = vrot.lane.b32.xlu0 %v1797, 32
    %v1800 = vpop.permute.xlu0 %1799
    %v1802 = vadd.f32 %v1792, %v1800
    %v1803 = vtanh.pop %v1802
    %1805 = vrot.lane.b32.xlu0 %v1803, 64
    %v1806 = vpop.permute.xlu0 %1805
    %v1808 = vmul.f32 %v1787, %v1806
    %v1810 = vrot.slane %v1701, 2
    %1811 = vrot.lane.b32.xlu0 %v1810, 32
    %v1812 = vpop.permute.xlu0 %1811
    %v1813 = vsel %vm230, %v1812, 0
    %1815 = vmatprep.subr.mxu0 0.0
    %1816 = vmatpush1.msra.mxu0 0.0
    %1817 = vmatprep.subr.mxu0 0.0
    %1818 = vmatpush1.msra.mxu0 0.0
    %1819 = vmatprep.subr.mxu0 0.0
    %1820 = vmatpush1.msra.mxu0 0.0
    %1821 = vmatprep.subr.mxu0 0.0
    %1822 = vmatpush1.msra.mxu0 0.0
    %1823 = vmatprep.subr.mxu0 0.0
    %1824 = vmatpush1.msra.mxu0 0.0
    %1825 = vmatprep.subr.mxu0 0.0
    %1826 = vmatpush1.msra.mxu0 0.0
    %1827 = vmatprep.subr.mxu0 0.0
    %1828 = vmatpush1.msra.mxu0 0.0
    %1829 = vmatprep.subr.mxu0 0.0
    %1830 = vmatpush1.msra.mxu0 0.0
    %1831 = vmatprep.subr.mxu0 0.0
    %1832 = vmatpush1.msra.mxu0 0.0
    %1833 = vmatprep.subr.mxu0 0.0
    %1834 = vmatpush1.msra.mxu0 0.0
    %1835 = vmatprep.subr.mxu0 0.0
    %1836 = vmatpush1.msra.mxu0 0.0
    %1837 = vmatprep.subr.mxu0 0.0
    %1838 = vmatpush1.msra.mxu0 0.0
    %1839 = vmatprep.subr.mxu0 0.0
    %1840 = vmatpush1.msra.mxu0 %v59
    %1841 = vmatprep.subr.mxu0 0.0
    %1842 = vmatpush1.msra.mxu0 %v58
    %1843 = vmatprep.subr.mxu0 0.0
    %1844 = vmatpush1.msra.mxu0 %v57
    %1845 = vmatprep.subr.mxu0 0.0
    %1846 = vmatpush1.msra.mxu0 %v56
    %1847 = vmatprep.subr.mxu0 0.0
    %1848 = vmatpush2.msra.mxu0 0.0
    %1849 = vmatprep.subr.mxu0 0.0
    %1850 = vmatpush2.msra.mxu0 0.0
    %1851 = vmatprep.subr.mxu0 0.0
    %1852 = vmatpush2.msra.mxu0 0.0
    %1853 = vmatprep.subr.mxu0 0.0
    %1854 = vmatpush2.msra.mxu0 0.0
    %1855 = vmatprep.subr.mxu0 0.0
    %1856 = vmatpush2.msra.mxu0 0.0
    %1857 = vmatprep.subr.mxu0 0.0
    %1858 = vmatpush2.msra.mxu0 0.0
    %1859 = vmatprep.subr.mxu0 0.0
    %1860 = vmatpush2.msra.mxu0 0.0
    %1861 = vmatprep.subr.mxu0 0.0
    %1862 = vmatpush2.msra.mxu0 0.0
    %1863 = vmatprep.subr.mxu0 0.0
    %1864 = vmatpush2.msra.mxu0 0.0
    %1865 = vmatprep.subr.mxu0 0.0
    %1866 = vmatpush2.msra.mxu0 0.0
    %1867 = vmatprep.subr.mxu0 0.0
    %1868 = vmatpush2.msra.mxu0 0.0
    %1869 = vmatprep.subr.mxu0 0.0
    %1870 = vmatpush2.msra.mxu0 0.0
    %1871 = vmatprep.subr.mxu0 0.0
    %1872 = vmatpush2.msra.mxu0 0.0
    %1873 = vmatprep.subr.mxu0 0.0
    %1874 = vmatpush2.msra.mxu0 0.0
    %1875 = vmatprep.subr.mxu0 0.0
    %1876 = vmatpush2.msra.mxu0 0.0
    %1877 = vmatprep.subr.mxu0 0.0
    %1878 = vmatpush2.msra.mxu0 0.0
    %1879 = vmatprep.mubr.f32.mxu0 0.0
    %1880 = vmatmul.mubr.f32.gmra.mxu0 %v1813
    %v1881 = vpop.f32.mrf.mxu0
    %v1882 = vadd.f32 0.0, %v1881
    %v1883 = vpop.f32.mrf.mxu0
    %1884 = vdwg.mxu0
    %v1885 = vadd.f32 %v222, %v1882
    %v1886 = vxor.u32 %v1885, 2147483648
    %v1887 = vmul.f32 %v1886, 1.442695
    %v1888 = vpow.pop %v1887
    %v1889 = vadd.f32 %v1888, 1.0
    %v1890 = vrcp.pop %v1889
    %v1891 = vmul.f32 1.0, %v1890
    %v1892 = vtanh.pop %v1885
    %v1894 = vrot.slane %v1695, 2
    %v1896 = vmul.f32 %v1891, %v1894
    %1898 = vrot.lane.b32.xlu0 %v1892, 64
    %v1899 = vpop.permute.xlu0 %1898
    %v1901 = vmul.f32 %v1891, %v1899
    %1903 = vrot.lane.b32.xlu0 %v1901, 32
    %v1904 = vpop.permute.xlu0 %1903
    %v1906 = vadd.f32 %v1896, %v1904
    %v1907 = vtanh.pop %v1906
    %1909 = vrot.lane.b32.xlu0 %v1907, 64
    %v1910 = vpop.permute.xlu0 %1909
    %v1912 = vmul.f32 %v1891, %v1910
    %1915 = vrot.lane.b32.xlu0 %v1912, 64
    %v1916 = vpop.permute.xlu0 %1915
    %v1919 = vrot.slane %v1808, 6
    %1920 = vrot.lane.b32.xlu0 %v1919, 96
    %v1921 = vpop.permute.xlu0 %1920
    %v1924 = vsel %vm230, %v429, %v1916
    %v1925 = vsel %vm67, %v1924, %v1921
    %vm1926 = vcmask 785408
    %v1927 = vsel %vm1926, %v1925, %v534
    %v1928 = vld [vmem:[%s7] sm:$0xff]
    %v1929 = vld [vmem:[%s7 + $0x8] sm:$0xff]
    %v1930 = vld [vmem:[%s7 + $0x10] sm:$0xff]
    %v1931 = vld [vmem:[%s7 + $0x18] sm:$0xff]
    %v1932 = vld [vmem:[%s7 + $0x20] sm:$0xff]
    %v1933 = vld [vmem:[%s7 + $0x28] sm:$0xff]
    %v1934 = vld [vmem:[%s7 + $0x30] sm:$0xff]
    %v1935 = vld [vmem:[%s7 + $0x38] sm:$0xff]
    %v1936 = vld [vmem:[%s7 + $0x40] sm:$0xff]
    %v1937 = vld [vmem:[%s7 + $0x48] sm:$0xff]
    %v1938 = vld [vmem:[%s7 + $0x50] sm:$0xff]
    %v1939 = vld [vmem:[%s7 + $0x58] sm:$0xff]
    %v1940 = vld [vmem:[%s7 + $0x60] sm:$0xff]
    %v1941 = vld [vmem:[%s7 + $0x68] sm:$0xff]
    %v1942 = vld [vmem:[%s7 + $0x70] sm:$0xff]
    %v1943 = vld [vmem:[%s7 + $0x78] sm:$0xff]
    %v1944 = vld [vmem:[%s8] sm:$0x1]
    %v1946 = vlaneseq
    %v1947 = vshrl.u32 %v1946, 7
    %v1948 = vsub.s32 0, %v1947
    %v1949 = vrot.slane %v1944, %v1948
    %1951 = vmatprep.subr.mxu0 0.0
    %1952 = vmatpush1.msra.mxu0 %v1943
    %1953 = vmatprep.subr.mxu0 0.0
    %1954 = vmatpush1.msra.mxu0 %v1942
    %1955 = vmatprep.subr.mxu0 0.0
    %1956 = vmatpush1.msra.mxu0 %v1941
    %1957 = vmatprep.subr.mxu0 0.0
    %1958 = vmatpush1.msra.mxu0 %v1940
    %1959 = vmatprep.subr.mxu0 0.0
    %1960 = vmatpush1.msra.mxu0 %v1939
    %1961 = vmatprep.subr.mxu0 0.0
    %1962 = vmatpush1.msra.mxu0 %v1938
    %1963 = vmatprep.subr.mxu0 0.0
    %1964 = vmatpush1.msra.mxu0 %v1937
    %1965 = vmatprep.subr.mxu0 0.0
    %1966 = vmatpush1.msra.mxu0 %v1936
    %1967 = vmatprep.subr.mxu0 0.0
    %1968 = vmatpush1.msra.mxu0 %v1935
    %1969 = vmatprep.subr.mxu0 0.0
    %1970 = vmatpush1.msra.mxu0 %v1934
    %1971 = vmatprep.subr.mxu0 0.0
    %1972 = vmatpush1.msra.mxu0 %v1933
    %1973 = vmatprep.subr.mxu0 0.0
    %1974 = vmatpush1.msra.mxu0 %v1932
    %1975 = vmatprep.subr.mxu0 0.0
    %1976 = vmatpush1.msra.mxu0 %v1931
    %1977 = vmatprep.subr.mxu0 0.0
    %1978 = vmatpush1.msra.mxu0 %v1930
    %1979 = vmatprep.subr.mxu0 0.0
    %1980 = vmatpush1.msra.mxu0 %v1929
    %1981 = vmatprep.subr.mxu0 0.0
    %1982 = vmatpush1.msra.mxu0 %v1928
    %1983 = vmatprep.subr.mxu0 0.0
    %1984 = vmatpush2.msra.mxu0 0.0
    %1985 = vmatprep.subr.mxu0 0.0
    %1986 = vmatpush2.msra.mxu0 0.0
    %1987 = vmatprep.subr.mxu0 0.0
    %1988 = vmatpush2.msra.mxu0 0.0
    %1989 = vmatprep.subr.mxu0 0.0
    %1990 = vmatpush2.msra.mxu0 0.0
    %1991 = vmatprep.subr.mxu0 0.0
    %1992 = vmatpush2.msra.mxu0 0.0
    %1993 = vmatprep.subr.mxu0 0.0
    %1994 = vmatpush2.msra.mxu0 0.0
    %1995 = vmatprep.subr.mxu0 0.0
    %1996 = vmatpush2.msra.mxu0 0.0
    %1997 = vmatprep.subr.mxu0 0.0
    %1998 = vmatpush2.msra.mxu0 0.0
    %1999 = vmatprep.subr.mxu0 0.0
    %2000 = vmatpush2.msra.mxu0 0.0
    %2001 = vmatprep.subr.mxu0 0.0
    %2002 = vmatpush2.msra.mxu0 0.0
    %2003 = vmatprep.subr.mxu0 0.0
    %2004 = vmatpush2.msra.mxu0 0.0
    %2005 = vmatprep.subr.mxu0 0.0
    %2006 = vmatpush2.msra.mxu0 0.0
    %2007 = vmatprep.subr.mxu0 0.0
    %2008 = vmatpush2.msra.mxu0 0.0
    %2009 = vmatprep.subr.mxu0 0.0
    %2010 = vmatpush2.msra.mxu0 0.0
    %2011 = vmatprep.subr.mxu0 0.0
    %2012 = vmatpush2.msra.mxu0 0.0
    %2013 = vmatprep.subr.mxu0 0.0
    %2014 = vmatpush2.msra.mxu0 0.0
    %2015 = vmatprep.mubr.f32.mxu0 0.0
    %2016 = vmatmul.mubr.f32.gmra.mxu0 %v1927
    %v2017 = vpop.f32.mrf.mxu0
    %v2018 = vadd.f32 %v1949, %v2017
    %v2019 = vpop.f32.mrf.mxu0
    %2020 = vdwg.mxu0
    %vm2021 = vcmask 9216
    %2022 = vst.msk [vmem:[#allocation2] sm:$0x3] %vm2021, %v2018
    // Predicated region
    $region38: #{sentiment_net_forward.3} parent=1 // pred_check
      _
    $region39: #{sentiment_net_forward.3} parent=1 // pred_check_branch
      %2024 = sbr.rel (0) target = $region41
    $region40: #{sentiment_net_forward.3} parent=1 // pred_region
      %s2026 = ssub.s32 32, 32
      %2027 = vsyncadd [#allocation3], %s2026
      %s2029 = sshll.u32 [#allocation2], 4
      %s2030 = int_to_ptr.vmem [resolvable:$true] %s2029
      %2032 = dma.vmem_to_hbm [thread:$0]  %s2030, 32, %s9, [#allocation3]
    $region41: #{sentiment_net_forward.3} parent=1 // pred_fallthru
      _
    // Predicated region
    $region42: #{sentiment_net_forward.3} parent=1 // pred_check
      _
    $region43: #{sentiment_net_forward.3} parent=1 // pred_check_branch
      %2034 = sbr.rel (0) target = $region45
    $region44: #{sentiment_net_forward.3} parent=1 // pred_region
      %2035 = dma.done [#allocation3], 32
    $region45: #{sentiment_net_forward.3} parent=1 // pred_fallthru
      _
    %2036 = vsyncpa [#allocation3], 1

</llo_original>
